<compile_context>
chip_gen: v5e
topology: v5e:2x2
jax: 0.10.0
libtpu: 0.0.40
codegen_flags: <defaults>
</compile_context>

<pallas_src>
import functools
import math

import jax
import jax.numpy as jnp
from jax import lax
from jax.experimental import pallas as pl
from jax.experimental.pallas import tpu as pltpu

LN_EPS = 1e-5
NEG_INF = -1e30


def _layer_norm(z, gamma, beta):
    # LayerNormalization: biased variance, eps=1e-5, gamma * y + beta
    mean = jnp.mean(z, axis=-1, keepdims=True)
    var = jnp.mean((z - mean) ** 2, axis=-1, keepdims=True)
    return (z - mean) * lax.rsqrt(var + LN_EPS) * gamma + beta


# ---------------------------------------------------------------- kernel ----
def _make_kernel(*, n_chunk, seq_len, d_model, n_head, n_layers, n_cls_pad):
    BC, S, D, H, L, CP = n_chunk, seq_len, d_model, n_head, n_layers, n_cls_pad
    M = BC * S
    bf16, f32 = jnp.bfloat16, jnp.float32

    def kernel(x_ref, w_in_ref, b_in_ref,
               wq_ref, bq_ref, wk_ref, bk_ref, wv_ref, bv_ref, er_ref,
               g1_ref, be1_ref, w1_ref, bf1_ref, w2_ref, bf2_ref,
               g2_ref, be2_ref, wcls_ref, bcls_ref,
               hmask_ref, diag_ref, nbias_ref, out_ref):
        # Static masks: precomputed host-side, loaded once per grid step.
        nbias = nbias_ref[...]          # (S, S)   additive causal mask
        diag = diag_ref[...]            # (S, S, S) skew one-hots
        hmask = hmask_ref[...]          # (H, 1, D) per-head column masks

        # ----- input projection: all BC*S rows in one bf16 matmul -----------
        h = (jnp.dot(x_ref[0], w_in_ref[...],
                     preferred_element_type=f32) + b_in_ref[...])   # (M, D)

        def layer(l, h):
            resid = h
            hb = h.astype(bf16)
            # Q columns/bias already carry 1/sqrt(d_head) (folded host-side,
            # which also correctly scales Srel in the Huang-2018 formulation).
            q = jnp.dot(hb, wq_ref[l], preferred_element_type=f32) + bq_ref[l]
            k = jnp.dot(hb, wk_ref[l], preferred_element_type=f32) + bk_ref[l]
            v = jnp.dot(hb, wv_ref[l], preferred_element_type=f32) + bv_ref[l]
            qb = q.astype(bf16)                       # (M, D)
            q3 = q.reshape(BC, S, D)                  # f32 (no-op split)
            k3 = k.reshape(BC, S, D).astype(bf16)
            v3 = v.reshape(BC, S, D).astype(bf16)

            attn = jnp.zeros((BC, S, D), f32)
            for hh in range(H):
                hm = hmask[hh]                        # (1, D)
                # (q*m_h).k over full D == q_h.k_h : mask only one operand,
                # no unaligned 32-lane slices anywhere.
                qh = (q3 * hm).astype(bf16)
                qk = jnp.einsum('bqd,bkd->bqk', qh, k3,
                                preferred_element_type=f32)      # (BC,S,S)
                # Er is zero-expanded to full width per head host-side.
                qer = jnp.dot(qb, er_ref[l, hh],
                              preferred_element_type=f32)        # (M, S)
                qer = qer.reshape(BC, S, S)
                # Skew: srel[b,i,j] = qer[b,i, j - i + S - 1]
                # TODO(synk): for large S replace this O(S) MAC with a strided
                # pltpu.roll along lanes (XLU slot, O(1) VPU work).
                srel = qer[:, :, 0:1] * diag[0]
                for r in range(1, S):
                    srel = srel + qer[:, :, r:r + 1] * diag[r]
                scores = qk + srel + nbias
                mx = jnp.max(scores, axis=-1, keepdims=True)
                e = jnp.exp(scores - mx)
                p = e * pl.reciprocal(jnp.sum(e, axis=-1, keepdims=True),
                                      approx=True)
                pv = jnp.einsum('bqk,bkd->bqd', p.astype(bf16), v3,
                                preferred_element_type=f32)
                # TODO(synk): at larger H write each head into 128-aligned
                # padded columns instead of full-width PV + column mask.
                attn = attn + pv * hm
            attn2 = attn.reshape(M, D)

            # Add & LayerNorm 1, FFN, Add & LayerNorm 2 (dropout = identity).
            h1 = _layer_norm(attn2 + resid, g1_ref[l], be1_ref[l])
            ffh = jnp.maximum(
                jnp.dot(h1.astype(bf16), w1_ref[l],
                        preferred_element_type=f32) + bf1_ref[l], 0.0)
            ff = jnp.dot(ffh.astype(bf16), w2_ref[l],
                         preferred_element_type=f32) + bf2_ref[l]
            return _layer_norm(ff + h1, g2_ref[l], be2_ref[l])

        h = lax.fori_loop(0, L, layer, h)

        # ----- classification head: flatten(S*D) -> Linear, single store ----
        # TODO(synk): exact ClassificationHead source not provided; assumed
        # flatten(seq, d_model) -> Linear(seq_len*d_model, n_classes).
        hb_all = h.astype(bf16)                               # (M, D)
        rowb = lax.broadcasted_iota(jnp.int32, (BC, M), 0)
        colm = lax.broadcasted_iota(jnp.int32, (BC, M), 1)
        logits = jnp.zeros((BC, CP), f32)
        for s in range(S):
            # Row-gather via a one-hot matmul (pure 2-D MXU ops, no relayouts).
            sel = (colm == rowb * S + s).astype(bf16)         # (BC, M)
            hs = jnp.dot(sel, hb_all, preferred_element_type=f32)   # (BC, D)
            logits = logits + jnp.dot(hs.astype(bf16), wcls_ref[s],
                                      preferred_element_type=f32)
        out_ref[0] = logits + bcls_ref[...]                   # lane-dense store

    return kernel


# --------------------------------------------------------------- wrapper ----
def transformer_forward(x, fp, *, n_classes):
    B, S, n_in = x.shape
    NPAD, D = fp["w_in"].shape
    L = fp["wq"].shape[0]
    H = fp["hmask"].shape[0]
    CP = fp["bcls"].shape[1]

    # Two parallel grid steps so v7x's two TensorCores both get work; the
    # batch rows of each chunk are folded into the matmul M dimension.
    G = 2 if (B % 2 == 0 and B >= 2) else 1
    BC = B // G
    M = BC * S

    xp = jnp.pad(x, ((0, 0), (0, 0), (0, NPAD - n_in))).astype(jnp.bfloat16)
    xg = xp.reshape(G, M, NPAD)

    kernel = _make_kernel(n_chunk=BC, seq_len=S, d_model=D, n_head=H,
                          n_layers=L, n_cls_pad=CP)

    def const(a):
        shp = a.shape
        return pl.BlockSpec(shp, lambda g, _n=len(shp): (0,) * _n)

    ordered = [fp[k] for k in ("w_in", "b_in", "wq", "bq", "wk", "bk", "wv",
                               "bv", "er", "g1", "be1", "w1", "bf1", "w2",
                               "bf2", "g2", "be2", "wcls", "bcls", "hmask",
                               "diag", "nbias")]

    total_bytes = (xg.size * xg.dtype.itemsize
                   + sum(a.size * a.dtype.itemsize for a in ordered)
                   + G * BC * CP * 4)
    vmem_limit = int(min(max(4 * total_bytes + (4 << 20), 16 << 20), 64 << 20))

    out = pl.pallas_call(
        kernel,
        out_shape=jax.ShapeDtypeStruct((G, BC, CP), jnp.float32),
        grid=(G,),
        in_specs=[pl.BlockSpec((1, M, NPAD), lambda g: (g, 0, 0))]
                 + [const(a) for a in ordered],
        out_specs=pl.BlockSpec((1, BC, CP), lambda g: (g, 0, 0)),
        compiler_params=pltpu.CompilerParams(
            dimension_semantics=("parallel",),
            vmem_limit_bytes=vmem_limit),
    )(xg, *ordered)
    return out.reshape(B, CP)[:, :n_classes]


# ---------------------------------------------------------------- params ----
def init_params(key, *, n_in, d_model, n_head, ffn_hidden, n_layers,
                max_len, seq_len, n_classes):
    d_head = d_model // n_head
    del d_head  # (only used implicitly through shapes below)
    keys = iter(jax.random.split(key, 4 + 8 * n_layers))

    def dense(k, fan_in, fan_out):
        kw, kb = jax.random.split(k)
        lim = 1.0 / math.sqrt(fan_in)
        w = jax.random.uniform(kw, (fan_in, fan_out), jnp.float32, -lim, lim)
        b = jax.random.uniform(kb, (fan_out,), jnp.float32, -lim, lim)
        return w, b

    params = {}
    params["w_in"], params["b_in"] = dense(next(keys), n_in, d_model)
    layers = []
    for _ in range(n_layers):
        lp = {"attn": {}}
        a = lp["attn"]
        a["wq"], a["bq"] = dense(next(keys), d_model, d_model)
        a["wk"], a["bk"] = dense(next(keys), d_model, d_model)
        a["wv"], a["bv"] = dense(next(keys), d_model, d_model)
        a["Er"] = jax.random.normal(next(keys), (max_len, d_model // n_head),
                                    jnp.float32)
        lp["g1"] = jnp.ones((d_model,), jnp.float32)
        lp["be1"] = jnp.zeros((d_model,), jnp.float32)
        lp["w1"], lp["bf1"] = dense(next(keys), d_model, ffn_hidden)
        lp["w2"], lp["bf2"] = dense(next(keys), ffn_hidden, d_model)
        lp["g2"] = jnp.ones((d_model,), jnp.float32)
        lp["be2"] = jnp.zeros((d_model,), jnp.float32)
        layers.append(lp)
    params["layers"] = layers
    params["w_cls"], params["b_cls"] = dense(next(keys),
                                             seq_len * d_model, n_classes)
    return params


def pack_params(params, *, n_head, max_len, seq_len,
                n_in_pad=128, n_cls_pad=128):
    """Stack per-layer weights (bf16), fold 1/sqrt(d_head) into Q, expand Er
    per head, pad n_in/class dims lane-dense, precompute static masks."""
    bf16 = jnp.bfloat16
    n_in, d_model = params["w_in"].shape
    d_head = d_model // n_head
    scale = 1.0 / math.sqrt(d_head)
    S = seq_len
    C = params["b_cls"].shape[0]

    fp = {}
    w_in = jnp.zeros((n_in_pad, d_model), jnp.float32).at[:n_in].set(
        params["w_in"])
    fp["w_in"] = w_in.astype(bf16)
    fp["b_in"] = params["b_in"][None, :]

    def stk(fn, dtype=jnp.float32):
        return jnp.stack([fn(lp) for lp in params["layers"]]).astype(dtype)

    fp["wq"] = stk(lambda lp: lp["attn"]["wq"] * scale, bf16)
    fp["bq"] = stk(lambda lp: (lp["attn"]["bq"] * scale)[None, :])
    fp["wk"] = stk(lambda lp: lp["attn"]["wk"], bf16)
    fp["bk"] = stk(lambda lp: lp["attn"]["bk"][None, :])
    fp["wv"] = stk(lambda lp: lp["attn"]["wv"], bf16)
    fp["bv"] = stk(lambda lp: lp["attn"]["bv"][None, :])

    # Er[max_len-S:] expanded per head into a zero-padded (D, S) block so QEr
    # is a full-width matmul with no per-head slicing inside the kernel.
    ers = []
    for lp in params["layers"]:
        er_t = lp["attn"]["Er"][max_len - S:, :].T          # (Dh, S)
        heads = []
        for hh in range(n_head):
            e = jnp.zeros((d_model, S), jnp.float32)
            e = e.at[hh * d_head:(hh + 1) * d_head, :].set(er_t)
            heads.append(e)
        ers.append(jnp.stack(heads))
    fp["er"] = jnp.stack(ers).astype(bf16)                  # (L, H, D, S)

    fp["g1"] = stk(lambda lp: lp["g1"][None, :])
    fp["be1"] = stk(lambda lp: lp["be1"][None, :])
    fp["w1"] = stk(lambda lp: lp["w1"], bf16)
    fp["bf1"] = stk(lambda lp: lp["bf1"][None, :])
    fp["w2"] = stk(lambda lp: lp["w2"], bf16)
    fp["bf2"] = stk(lambda lp: lp["bf2"][None, :])
    fp["g2"] = stk(lambda lp: lp["g2"][None, :])
    fp["be2"] = stk(lambda lp: lp["be2"][None, :])

    # Classification head: flatten index s*d_model + d; pad class dim to 128
    # lanes so the final store is unmasked (sliced back host-side).
    wcls = params["w_cls"].reshape(S, d_model, C)
    wcls_p = jnp.zeros((S, d_model, n_cls_pad), jnp.float32).at[..., :C].set(
        wcls)
    fp["wcls"] = wcls_p.astype(bf16)
    fp["bcls"] = jnp.zeros((1, n_cls_pad), jnp.float32).at[0, :C].set(
        params["b_cls"])

    # Static attention masks, precomputed once (never rebuilt per grid step).
    row = jnp.arange(S)[:, None]
    col = jnp.arange(S)[None, :]
    fp["nbias"] = jnp.where(col <= row, 0.0, NEG_INF).astype(jnp.float32)
    fp["diag"] = jnp.stack(
        [(col - row == (r - (S - 1))).astype(jnp.float32) for r in range(S)])
    lane = jnp.arange(d_model)[None, :]
    fp["hmask"] = jnp.stack(
        [((lane >= hh * d_head) & (lane < (hh + 1) * d_head))
         .astype(jnp.float32) for hh in range(n_head)])      # (H, 1, D)
    return fp


# ------------------------------------------------------------------ main ----
if __name__ == "__main__":
    # Small config consistent with Transformer(__init__) semantics.
    batch, seq_len, n_in = 8, 8, 40
    d_model, n_head, ffn_hidden, n_layers = 64, 2, 32, 2
    max_len, n_classes = 64, 2

    key = jax.random.PRNGKey(0)
    kx, kp = jax.random.split(key)
    x = jax.random.normal(kx, (batch, seq_len, n_in), dtype=jnp.float32)
    params = init_params(kp, n_in=n_in, d_model=d_model, n_head=n_head,
                         ffn_hidden=ffn_hidden, n_layers=n_layers,
                         max_len=max_len, seq_len=seq_len,
                         n_classes=n_classes)
    fp = pack_params(params, n_head=n_head, max_len=max_len, seq_len=seq_len)

    fwd = jax.jit(functools.partial(transformer_forward, n_classes=n_classes))
    out = jax.block_until_ready(fwd(x, fp))
    assert out.shape == (batch, n_classes)
    assert bool(jnp.all(jnp.isfinite(out)))
    print("KERNEL_OK")
</pallas_src>

<mosaic_0001>
module attributes {stable_mosaic.version = 11 : i64} {
  func.func @kernel(%arg0: i32, %arg1: memref<1x32x128xbf16, #tpu.memory_space<vmem>>, %arg2: memref<128x64xbf16, #tpu.memory_space<vmem>>, %arg3: memref<1x64xf32, #tpu.memory_space<vmem>>, %arg4: memref<2x64x64xbf16, #tpu.memory_space<vmem>>, %arg5: memref<2x1x64xf32, #tpu.memory_space<vmem>>, %arg6: memref<2x64x64xbf16, #tpu.memory_space<vmem>>, %arg7: memref<2x1x64xf32, #tpu.memory_space<vmem>>, %arg8: memref<2x64x64xbf16, #tpu.memory_space<vmem>>, %arg9: memref<2x1x64xf32, #tpu.memory_space<vmem>>, %arg10: memref<2x2x64x8xbf16, #tpu.memory_space<vmem>>, %arg11: memref<2x1x64xf32, #tpu.memory_space<vmem>>, %arg12: memref<2x1x64xf32, #tpu.memory_space<vmem>>, %arg13: memref<2x64x32xbf16, #tpu.memory_space<vmem>>, %arg14: memref<2x1x32xf32, #tpu.memory_space<vmem>>, %arg15: memref<2x32x64xbf16, #tpu.memory_space<vmem>>, %arg16: memref<2x1x64xf32, #tpu.memory_space<vmem>>, %arg17: memref<2x1x64xf32, #tpu.memory_space<vmem>>, %arg18: memref<2x1x64xf32, #tpu.memory_space<vmem>>, %arg19: memref<8x64x128xbf16, #tpu.memory_space<vmem>>, %arg20: memref<1x128xf32, #tpu.memory_space<vmem>>, %arg21: memref<2x1x64xf32, #tpu.memory_space<vmem>>, %arg22: memref<8x8x8xf32, #tpu.memory_space<vmem>>, %arg23: memref<8x8xf32, #tpu.memory_space<vmem>>, %arg24: memref<1x4x128xf32, #tpu.memory_space<vmem>>) attributes {dimension_semantics = [#tpu.dimension_semantics<parallel>], iteration_bounds = array<i64: 2>, scalar_prefetch = 0 : i64, scratch_operands = 0 : i64, tpu.core_type = #tpu.core_type<tc>, window_params = [{transform_indices = @transform_0, window_bounds = array<i64: 1, 32, 128>}, {pipeline_mode = #tpu.pipeline_mode<synchronous>, transform_indices = @transform_1, window_bounds = array<i64: 128, 64>}, {pipeline_mode = #tpu.pipeline_mode<synchronous>, transform_indices = @transform_2, window_bounds = array<i64: 1, 64>}, {pipeline_mode = #tpu.pipeline_mode<synchronous>, transform_indices = @transform_3, window_bounds = array<i64: 2, 64, 64>}, {pipeline_mode = #tpu.pipeline_mode<synchronous>, transform_indices = @transform_4, window_bounds = array<i64: 2, 1, 64>}, {pipeline_mode = #tpu.pipeline_mode<synchronous>, transform_indices = @transform_5, window_bounds = array<i64: 2, 64, 64>}, {pipeline_mode = #tpu.pipeline_mode<synchronous>, transform_indices = @transform_6, window_bounds = array<i64: 2, 1, 64>}, {pipeline_mode = #tpu.pipeline_mode<synchronous>, transform_indices = @transform_7, window_bounds = array<i64: 2, 64, 64>}, {pipeline_mode = #tpu.pipeline_mode<synchronous>, transform_indices = @transform_8, window_bounds = array<i64: 2, 1, 64>}, {pipeline_mode = #tpu.pipeline_mode<synchronous>, transform_indices = @transform_9, window_bounds = array<i64: 2, 2, 64, 8>}, {pipeline_mode = #tpu.pipeline_mode<synchronous>, transform_indices = @transform_10, window_bounds = array<i64: 2, 1, 64>}, {pipeline_mode = #tpu.pipeline_mode<synchronous>, transform_indices = @transform_11, window_bounds = array<i64: 2, 1, 64>}, {pipeline_mode = #tpu.pipeline_mode<synchronous>, transform_indices = @transform_12, window_bounds = array<i64: 2, 64, 32>}, {pipeline_mode = #tpu.pipeline_mode<synchronous>, transform_indices = @transform_13, window_bounds = array<i64: 2, 1, 32>}, {pipeline_mode = #tpu.pipeline_mode<synchronous>, transform_indices = @transform_14, window_bounds = array<i64: 2, 32, 64>}, {pipeline_mode = #tpu.pipeline_mode<synchronous>, transform_indices = @transform_15, window_bounds = array<i64: 2, 1, 64>}, {pipeline_mode = #tpu.pipeline_mode<synchronous>, transform_indices = @transform_16, window_bounds = array<i64: 2, 1, 64>}, {pipeline_mode = #tpu.pipeline_mode<synchronous>, transform_indices = @transform_17, window_bounds = array<i64: 2, 1, 64>}, {pipeline_mode = #tpu.pipeline_mode<synchronous>, transform_indices = @transform_18, window_bounds = array<i64: 8, 64, 128>}, {pipeline_mode = #tpu.pipeline_mode<synchronous>, transform_indices = @transform_19, window_bounds = array<i64: 1, 128>}, {pipeline_mode = #tpu.pipeline_mode<synchronous>, transform_indices = @transform_20, window_bounds = array<i64: 2, 1, 64>}, {pipeline_mode = #tpu.pipeline_mode<synchronous>, transform_indices = @transform_21, window_bounds = array<i64: 8, 8, 8>}, {pipeline_mode = #tpu.pipeline_mode<synchronous>, transform_indices = @transform_22, window_bounds = array<i64: 8, 8>}, {transform_indices = @transform_23, window_bounds = array<i64: 1, 4, 128>}]} {
    %c0 = arith.constant 0 : index
    %c0_0 = arith.constant 0 : index
    %0 = vector.load %arg23[%c0, %c0_0] : memref<8x8xf32, #tpu.memory_space<vmem>>, vector<8x8xf32>
    %c0_1 = arith.constant 0 : index
    %c0_2 = arith.constant 0 : index
    %c0_3 = arith.constant 0 : index
    %1 = vector.load %arg22[%c0_1, %c0_2, %c0_3] : memref<8x8x8xf32, #tpu.memory_space<vmem>>, vector<8x8x8xf32>
    %c0_4 = arith.constant 0 : index
    %c0_5 = arith.constant 0 : index
    %c0_6 = arith.constant 0 : index
    %2 = vector.load %arg21[%c0_4, %c0_5, %c0_6] : memref<2x1x64xf32, #tpu.memory_space<vmem>>, vector<2x1x64xf32>
    %c0_7 = arith.constant 0 : index
    %c0_8 = arith.constant 0 : index
    %c0_9 = arith.constant 0 : index
    %3 = vector.load %arg1[%c0_7, %c0_8, %c0_9] : memref<1x32x128xbf16, #tpu.memory_space<vmem>>, vector<1x32x128xbf16>
    %4 = vector.shape_cast %3 : vector<1x32x128xbf16> to vector<32x128xbf16>
    %c0_10 = arith.constant 0 : index
    %c0_11 = arith.constant 0 : index
    %5 = vector.load %arg2[%c0_10, %c0_11] : memref<128x64xbf16, #tpu.memory_space<vmem>>, vector<128x64xbf16>
    %cst = arith.constant dense<0.000000e+00> : vector<32x64xf32>
    %6 = tpu.matmul %4, %5, %cst {dimension_numbers = #tpu.dot_dimension_numbers<[1], [0], [0], [1], [0, 0, 1, 1], [], []>} : vector<32x128xbf16>, vector<128x64xbf16>, vector<32x64xf32> -> vector<32x64xf32>
    %c0_12 = arith.constant 0 : index
    %c0_13 = arith.constant 0 : index
    %7 = vector.load %arg3[%c0_12, %c0_13] : memref<1x64xf32, #tpu.memory_space<vmem>>, vector<1x64xf32>
    %8 = vector.broadcast %7 : vector<1x64xf32> to vector<32x64xf32>
    %9 = arith.addf %6, %8 : vector<32x64xf32>
    %c0_i32 = arith.constant 0 : i32
    %c2_i32 = arith.constant 2 : i32
    %10 = arith.addi %c0_i32, %c2_i32 : i32
    %c1_i32 = arith.constant 1 : i32
    %11 = scf.for %arg25 = %c0_i32 to %10 step %c1_i32 iter_args(%arg26 = %9) -> (vector<32x64xf32>)  : i32 {
      %134 = arith.truncf %arg26 : vector<32x64xf32> to vector<32x64xbf16>
      %135 = arith.index_cast %arg25 : i32 to index
      %c0_64 = arith.constant 0 : index
      %c0_65 = arith.constant 0 : index
      %136 = vector.load %arg4[%135, %c0_64, %c0_65] : memref<2x64x64xbf16, #tpu.memory_space<vmem>>, vector<1x64x64xbf16>
      %137 = vector.shape_cast %136 : vector<1x64x64xbf16> to vector<64x64xbf16>
      %cst_66 = arith.constant dense<0.000000e+00> : vector<32x64xf32>
      %138 = tpu.matmul %134, %137, %cst_66 {dimension_numbers = #tpu.dot_dimension_numbers<[1], [0], [0], [1], [0, 0, 1, 1], [], []>} : vector<32x64xbf16>, vector<64x64xbf16>, vector<32x64xf32> -> vector<32x64xf32>
      %139 = arith.index_cast %arg25 : i32 to index
      %c0_67 = arith.constant 0 : index
      %c0_68 = arith.constant 0 : index
      %140 = vector.load %arg5[%139, %c0_67, %c0_68] : memref<2x1x64xf32, #tpu.memory_space<vmem>>, vector<1x1x64xf32>
      %141 = vector.shape_cast %140 : vector<1x1x64xf32> to vector<1x64xf32>
      %142 = vector.broadcast %141 : vector<1x64xf32> to vector<32x64xf32>
      %143 = arith.addf %138, %142 : vector<32x64xf32>
      %144 = arith.index_cast %arg25 : i32 to index
      %c0_69 = arith.constant 0 : index
      %c0_70 = arith.constant 0 : index
      %145 = vector.load %arg6[%144, %c0_69, %c0_70] : memref<2x64x64xbf16, #tpu.memory_space<vmem>>, vector<1x64x64xbf16>
      %146 = vector.shape_cast %145 : vector<1x64x64xbf16> to vector<64x64xbf16>
      %cst_71 = arith.constant dense<0.000000e+00> : vector<32x64xf32>
      %147 = tpu.matmul %134, %146, %cst_71 {dimension_numbers = #tpu.dot_dimension_numbers<[1], [0], [0], [1], [0, 0, 1, 1], [], []>} : vector<32x64xbf16>, vector<64x64xbf16>, vector<32x64xf32> -> vector<32x64xf32>
      %148 = arith.index_cast %arg25 : i32 to index
      %c0_72 = arith.constant 0 : index
      %c0_73 = arith.constant 0 : index
      %149 = vector.load %arg7[%148, %c0_72, %c0_73] : memref<2x1x64xf32, #tpu.memory_space<vmem>>, vector<1x1x64xf32>
      %150 = vector.shape_cast %149 : vector<1x1x64xf32> to vector<1x64xf32>
      %151 = vector.broadcast %150 : vector<1x64xf32> to vector<32x64xf32>
      %152 = arith.addf %147, %151 : vector<32x64xf32>
      %153 = arith.index_cast %arg25 : i32 to index
      %c0_74 = arith.constant 0 : index
      %c0_75 = arith.constant 0 : index
      %154 = vector.load %arg8[%153, %c0_74, %c0_75] : memref<2x64x64xbf16, #tpu.memory_space<vmem>>, vector<1x64x64xbf16>
      %155 = vector.shape_cast %154 : vector<1x64x64xbf16> to vector<64x64xbf16>
      %cst_76 = arith.constant dense<0.000000e+00> : vector<32x64xf32>
      %156 = tpu.matmul %134, %155, %cst_76 {dimension_numbers = #tpu.dot_dimension_numbers<[1], [0], [0], [1], [0, 0, 1, 1], [], []>} : vector<32x64xbf16>, vector<64x64xbf16>, vector<32x64xf32> -> vector<32x64xf32>
      %157 = arith.index_cast %arg25 : i32 to index
      %c0_77 = arith.constant 0 : index
      %c0_78 = arith.constant 0 : index
      %158 = vector.load %arg9[%157, %c0_77, %c0_78] : memref<2x1x64xf32, #tpu.memory_space<vmem>>, vector<1x1x64xf32>
      %159 = vector.shape_cast %158 : vector<1x1x64xf32> to vector<1x64xf32>
      %160 = vector.broadcast %159 : vector<1x64xf32> to vector<32x64xf32>
      %161 = arith.addf %156, %160 : vector<32x64xf32>
      %162 = arith.truncf %143 : vector<32x64xf32> to vector<32x64xbf16>
      %163 = vector.shape_cast %143 : vector<32x64xf32> to vector<4x8x64xf32>
      %164 = vector.shape_cast %152 : vector<32x64xf32> to vector<4x8x64xf32>
      %165 = arith.truncf %164 : vector<4x8x64xf32> to vector<4x8x64xbf16>
      %166 = vector.shape_cast %161 : vector<32x64xf32> to vector<4x8x64xf32>
      %167 = arith.truncf %166 : vector<4x8x64xf32> to vector<4x8x64xbf16>
      %cst_79 = arith.constant 0.000000e+00 : f32
      %168 = vector.broadcast %cst_79 : f32 to vector<4x8x64xf32>
      %169 = vector.extract_strided_slice %2 {offsets = [0, 0, 0], sizes = [1, 1, 64], strides = [1, 1, 1]} : vector<2x1x64xf32> to vector<1x1x64xf32>
      %170 = vector.shape_cast %169 : vector<1x1x64xf32> to vector<1x64xf32>
      %171 = vector.shape_cast %170 : vector<1x64xf32> to vector<1x1x64xf32>
      %172 = vector.broadcast %171 : vector<1x1x64xf32> to vector<4x8x64xf32>
      %173 = arith.mulf %163, %172 : vector<4x8x64xf32>
      %174 = arith.truncf %173 : vector<4x8x64xf32> to vector<4x8x64xbf16>
      "tpu.trace_start"() <{level = 10 : i32, message = "bqd,bkd->bqk"}> : () -> ()
      %cst_80 = arith.constant dense<0.000000e+00> : vector<4x8x8xf32>
      %175 = tpu.matmul %174, %165, %cst_80 {dimension_numbers = #tpu.dot_dimension_numbers<[2], [2], [1], [1], [0, 0, 0, 1, 1, 1], [0], [0]>} : vector<4x8x64xbf16>, vector<4x8x64xbf16>, vector<4x8x8xf32> -> vector<4x8x8xf32>
      "tpu.trace_stop"() : () -> ()
      %176 = arith.index_cast %arg25 : i32 to index
      %c0_81 = arith.constant 0 : index
      %c0_82 = arith.constant 0 : index
      %c0_83 = arith.constant 0 : index
      %177 = vector.load %arg10[%176, %c0_81, %c0_82, %c0_83] : memref<2x2x64x8xbf16, #tpu.memory_space<vmem>>, vector<1x1x64x8xbf16>
      %178 = vector.shape_cast %177 : vector<1x1x64x8xbf16> to vector<64x8xbf16>
      %cst_84 = arith.constant dense<0.000000e+00> : vector<32x8xf32>
      %179 = tpu.matmul %162, %178, %cst_84 {dimension_numbers = #tpu.dot_dimension_numbers<[1], [0], [0], [1], [0, 0, 1, 1], [], []>} : vector<32x64xbf16>, vector<64x8xbf16>, vector<32x8xf32> -> vector<32x8xf32>
      %180 = vector.shape_cast %179 : vector<32x8xf32> to vector<4x8x8xf32>
      %181 = vector.extract_strided_slice %180 {offsets = [0, 0, 0], sizes = [4, 8, 1], strides = [1, 1, 1]} : vector<4x8x8xf32> to vector<4x8x1xf32>
      %182 = vector.extract_strided_slice %1 {offsets = [0, 0, 0], sizes = [1, 8, 8], strides = [1, 1, 1]} : vector<8x8x8xf32> to vector<1x8x8xf32>
      %183 = vector.shape_cast %182 : vector<1x8x8xf32> to vector<8x8xf32>
      %184 = vector.shape_cast %183 : vector<8x8xf32> to vector<1x8x8xf32>
      %185 = vector.broadcast %181 : vector<4x8x1xf32> to vector<4x8x8xf32>
      %186 = vector.broadcast %184 : vector<1x8x8xf32> to vector<4x8x8xf32>
      %187 = arith.mulf %185, %186 : vector<4x8x8xf32>
      %188 = vector.extract_strided_slice %180 {offsets = [0, 0, 1], sizes = [4, 8, 1], strides = [1, 1, 1]} : vector<4x8x8xf32> to vector<4x8x1xf32>
      %189 = vector.extract_strided_slice %1 {offsets = [1, 0, 0], sizes = [1, 8, 8], strides = [1, 1, 1]} : vector<8x8x8xf32> to vector<1x8x8xf32>
      %190 = vector.shape_cast %189 : vector<1x8x8xf32> to vector<8x8xf32>
      %191 = vector.shape_cast %190 : vector<8x8xf32> to vector<1x8x8xf32>
      %192 = vector.broadcast %188 : vector<4x8x1xf32> to vector<4x8x8xf32>
      %193 = vector.broadcast %191 : vector<1x8x8xf32> to vector<4x8x8xf32>
      %194 = arith.mulf %192, %193 : vector<4x8x8xf32>
      %195 = arith.addf %187, %194 : vector<4x8x8xf32>
      %196 = vector.extract_strided_slice %180 {offsets = [0, 0, 2], sizes = [4, 8, 1], strides = [1, 1, 1]} : vector<4x8x8xf32> to vector<4x8x1xf32>
      %197 = vector.extract_strided_slice %1 {offsets = [2, 0, 0], sizes = [1, 8, 8], strides = [1, 1, 1]} : vector<8x8x8xf32> to vector<1x8x8xf32>
      %198 = vector.shape_cast %197 : vector<1x8x8xf32> to vector<8x8xf32>
      %199 = vector.shape_cast %198 : vector<8x8xf32> to vector<1x8x8xf32>
      %200 = vector.broadcast %196 : vector<4x8x1xf32> to vector<4x8x8xf32>
      %201 = vector.broadcast %199 : vector<1x8x8xf32> to vector<4x8x8xf32>
      %202 = arith.mulf %200, %201 : vector<4x8x8xf32>
      %203 = arith.addf %195, %202 : vector<4x8x8xf32>
      %204 = vector.extract_strided_slice %180 {offsets = [0, 0, 3], sizes = [4, 8, 1], strides = [1, 1, 1]} : vector<4x8x8xf32> to vector<4x8x1xf32>
      %205 = vector.extract_strided_slice %1 {offsets = [3, 0, 0], sizes = [1, 8, 8], strides = [1, 1, 1]} : vector<8x8x8xf32> to vector<1x8x8xf32>
      %206 = vector.shape_cast %205 : vector<1x8x8xf32> to vector<8x8xf32>
      %207 = vector.shape_cast %206 : vector<8x8xf32> to vector<1x8x8xf32>
      %208 = vector.broadcast %204 : vector<4x8x1xf32> to vector<4x8x8xf32>
      %209 = vector.broadcast %207 : vector<1x8x8xf32> to vector<4x8x8xf32>
      %210 = arith.mulf %208, %209 : vector<4x8x8xf32>
      %211 = arith.addf %203, %210 : vector<4x8x8xf32>
      %212 = vector.extract_strided_slice %180 {offsets = [0, 0, 4], sizes = [4, 8, 1], strides = [1, 1, 1]} : vector<4x8x8xf32> to vector<4x8x1xf32>
      %213 = vector.extract_strided_slice %1 {offsets = [4, 0, 0], sizes = [1, 8, 8], strides = [1, 1, 1]} : vector<8x8x8xf32> to vector<1x8x8xf32>
      %214 = vector.shape_cast %213 : vector<1x8x8xf32> to vector<8x8xf32>
      %215 = vector.shape_cast %214 : vector<8x8xf32> to vector<1x8x8xf32>
      %216 = vector.broadcast %212 : vector<4x8x1xf32> to vector<4x8x8xf32>
      %217 = vector.broadcast %215 : vector<1x8x8xf32> to vector<4x8x8xf32>
      %218 = arith.mulf %216, %217 : vector<4x8x8xf32>
      %219 = arith.addf %211, %218 : vector<4x8x8xf32>
      %220 = vector.extract_strided_slice %180 {offsets = [0, 0, 5], sizes = [4, 8, 1], strides = [1, 1, 1]} : vector<4x8x8xf32> to vector<4x8x1xf32>
      %221 = vector.extract_strided_slice %1 {offsets = [5, 0, 0], sizes = [1, 8, 8], strides = [1, 1, 1]} : vector<8x8x8xf32> to vector<1x8x8xf32>
      %222 = vector.shape_cast %221 : vector<1x8x8xf32> to vector<8x8xf32>
      %223 = vector.shape_cast %222 : vector<8x8xf32> to vector<1x8x8xf32>
      %224 = vector.broadcast %220 : vector<4x8x1xf32> to vector<4x8x8xf32>
      %225 = vector.broadcast %223 : vector<1x8x8xf32> to vector<4x8x8xf32>
      %226 = arith.mulf %224, %225 : vector<4x8x8xf32>
      %227 = arith.addf %219, %226 : vector<4x8x8xf32>
      %228 = vector.extract_strided_slice %180 {offsets = [0, 0, 6], sizes = [4, 8, 1], strides = [1, 1, 1]} : vector<4x8x8xf32> to vector<4x8x1xf32>
      %229 = vector.extract_strided_slice %1 {offsets = [6, 0, 0], sizes = [1, 8, 8], strides = [1, 1, 1]} : vector<8x8x8xf32> to vector<1x8x8xf32>
      %230 = vector.shape_cast %229 : vector<1x8x8xf32> to vector<8x8xf32>
      %231 = vector.shape_cast %230 : vector<8x8xf32> to vector<1x8x8xf32>
      %232 = vector.broadcast %228 : vector<4x8x1xf32> to vector<4x8x8xf32>
      %233 = vector.broadcast %231 : vector<1x8x8xf32> to vector<4x8x8xf32>
      %234 = arith.mulf %232, %233 : vector<4x8x8xf32>
      %235 = arith.addf %227, %234 : vector<4x8x8xf32>
      %236 = vector.extract_strided_slice %180 {offsets = [0, 0, 7], sizes = [4, 8, 1], strides = [1, 1, 1]} : vector<4x8x8xf32> to vector<4x8x1xf32>
      %237 = vector.extract_strided_slice %1 {offsets = [7, 0, 0], sizes = [1, 8, 8], strides = [1, 1, 1]} : vector<8x8x8xf32> to vector<1x8x8xf32>
      %238 = vector.shape_cast %237 : vector<1x8x8xf32> to vector<8x8xf32>
      %239 = vector.shape_cast %238 : vector<8x8xf32> to vector<1x8x8xf32>
      %240 = vector.broadcast %236 : vector<4x8x1xf32> to vector<4x8x8xf32>
      %241 = vector.broadcast %239 : vector<1x8x8xf32> to vector<4x8x8xf32>
      %242 = arith.mulf %240, %241 : vector<4x8x8xf32>
      %243 = arith.addf %235, %242 : vector<4x8x8xf32>
      %244 = arith.addf %175, %243 : vector<4x8x8xf32>
      %245 = vector.shape_cast %0 : vector<8x8xf32> to vector<1x8x8xf32>
      %246 = vector.broadcast %245 : vector<1x8x8xf32> to vector<4x8x8xf32>
      %247 = arith.addf %244, %246 : vector<4x8x8xf32>
      %cst_85 = arith.constant dense<0xFF800000> : vector<4x8xf32>
      %248 = vector.multi_reduction <maximumf>, %247, %cst_85 [2] : vector<4x8x8xf32> to vector<4x8xf32>
      %249 = vector.shape_cast %248 : vector<4x8xf32> to vector<4x8x1xf32>
      %250 = vector.broadcast %249 : vector<4x8x1xf32> to vector<4x8x8xf32>
      %251 = arith.subf %247, %250 : vector<4x8x8xf32>
      %252 = math.exp %251 : vector<4x8x8xf32>
      %cst_86 = arith.constant dense<0.000000e+00> : vector<4x8xf32>
      %253 = vector.multi_reduction <add>, %252, %cst_86 [2] : vector<4x8x8xf32> to vector<4x8xf32>
      %254 = vector.shape_cast %253 : vector<4x8xf32> to vector<4x8x1xf32>
      %255 = tpu.reciprocal %254 {approx = true} : vector<4x8x1xf32> -> vector<4x8x1xf32>
      %256 = vector.broadcast %255 : vector<4x8x1xf32> to vector<4x8x8xf32>
      %257 = arith.mulf %252, %256 : vector<4x8x8xf32>
      %258 = arith.truncf %257 : vector<4x8x8xf32> to vector<4x8x8xbf16>
      "tpu.trace_start"() <{level = 10 : i32, message = "bqk,bkd->bqd"}> : () -> ()
      %cst_87 = arith.constant dense<0.000000e+00> : vector<4x8x64xf32>
      %259 = tpu.matmul %258, %167, %cst_87 {dimension_numbers = #tpu.dot_dimension_numbers<[2], [1], [1], [2], [0, 0, 0, 1, 1, 2], [0], [0]>} : vector<4x8x8xbf16>, vector<4x8x64xbf16>, vector<4x8x64xf32> -> vector<4x8x64xf32>
      "tpu.trace_stop"() : () -> ()
      %260 = vector.shape_cast %170 : vector<1x64xf32> to vector<1x1x64xf32>
      %261 = vector.broadcast %260 : vector<1x1x64xf32> to vector<4x8x64xf32>
      %262 = arith.mulf %259, %261 : vector<4x8x64xf32>
      %263 = arith.addf %168, %262 : vector<4x8x64xf32>
      %264 = vector.extract_strided_slice %2 {offsets = [1, 0, 0], sizes = [1, 1, 64], strides = [1, 1, 1]} : vector<2x1x64xf32> to vector<1x1x64xf32>
      %265 = vector.shape_cast %264 : vector<1x1x64xf32> to vector<1x64xf32>
      %266 = vector.shape_cast %265 : vector<1x64xf32> to vector<1x1x64xf32>
      %267 = vector.broadcast %266 : vector<1x1x64xf32> to vector<4x8x64xf32>
      %268 = arith.mulf %163, %267 : vector<4x8x64xf32>
      %269 = arith.truncf %268 : vector<4x8x64xf32> to vector<4x8x64xbf16>
      "tpu.trace_start"() <{level = 10 : i32, message = "bqd,bkd->bqk"}> : () -> ()
      %cst_88 = arith.constant dense<0.000000e+00> : vector<4x8x8xf32>
      %270 = tpu.matmul %269, %165, %cst_88 {dimension_numbers = #tpu.dot_dimension_numbers<[2], [2], [1], [1], [0, 0, 0, 1, 1, 1], [0], [0]>} : vector<4x8x64xbf16>, vector<4x8x64xbf16>, vector<4x8x8xf32> -> vector<4x8x8xf32>
      "tpu.trace_stop"() : () -> ()
      %271 = arith.index_cast %arg25 : i32 to index
      %c1_89 = arith.constant 1 : index
      %c0_90 = arith.constant 0 : index
      %c0_91 = arith.constant 0 : index
      %272 = vector.load %arg10[%271, %c1_89, %c0_90, %c0_91] : memref<2x2x64x8xbf16, #tpu.memory_space<vmem>>, vector<1x1x64x8xbf16>
      %273 = vector.shape_cast %272 : vector<1x1x64x8xbf16> to vector<64x8xbf16>
      %cst_92 = arith.constant dense<0.000000e+00> : vector<32x8xf32>
      %274 = tpu.matmul %162, %273, %cst_92 {dimension_numbers = #tpu.dot_dimension_numbers<[1], [0], [0], [1], [0, 0, 1, 1], [], []>} : vector<32x64xbf16>, vector<64x8xbf16>, vector<32x8xf32> -> vector<32x8xf32>
      %275 = vector.shape_cast %274 : vector<32x8xf32> to vector<4x8x8xf32>
      %276 = vector.extract_strided_slice %275 {offsets = [0, 0, 0], sizes = [4, 8, 1], strides = [1, 1, 1]} : vector<4x8x8xf32> to vector<4x8x1xf32>
      %277 = vector.extract_strided_slice %1 {offsets = [0, 0, 0], sizes = [1, 8, 8], strides = [1, 1, 1]} : vector<8x8x8xf32> to vector<1x8x8xf32>
      %278 = vector.shape_cast %277 : vector<1x8x8xf32> to vector<8x8xf32>
      %279 = vector.shape_cast %278 : vector<8x8xf32> to vector<1x8x8xf32>
      %280 = vector.broadcast %276 : vector<4x8x1xf32> to vector<4x8x8xf32>
      %281 = vector.broadcast %279 : vector<1x8x8xf32> to vector<4x8x8xf32>
      %282 = arith.mulf %280, %281 : vector<4x8x8xf32>
      %283 = vector.extract_strided_slice %275 {offsets = [0, 0, 1], sizes = [4, 8, 1], strides = [1, 1, 1]} : vector<4x8x8xf32> to vector<4x8x1xf32>
      %284 = vector.extract_strided_slice %1 {offsets = [1, 0, 0], sizes = [1, 8, 8], strides = [1, 1, 1]} : vector<8x8x8xf32> to vector<1x8x8xf32>
      %285 = vector.shape_cast %284 : vector<1x8x8xf32> to vector<8x8xf32>
      %286 = vector.shape_cast %285 : vector<8x8xf32> to vector<1x8x8xf32>
      %287 = vector.broadcast %283 : vector<4x8x1xf32> to vector<4x8x8xf32>
      %288 = vector.broadcast %286 : vector<1x8x8xf32> to vector<4x8x8xf32>
      %289 = arith.mulf %287, %288 : vector<4x8x8xf32>
      %290 = arith.addf %282, %289 : vector<4x8x8xf32>
      %291 = vector.extract_strided_slice %275 {offsets = [0, 0, 2], sizes = [4, 8, 1], strides = [1, 1, 1]} : vector<4x8x8xf32> to vector<4x8x1xf32>
      %292 = vector.extract_strided_slice %1 {offsets = [2, 0, 0], sizes = [1, 8, 8], strides = [1, 1, 1]} : vector<8x8x8xf32> to vector<1x8x8xf32>
      %293 = vector.shape_cast %292 : vector<1x8x8xf32> to vector<8x8xf32>
      %294 = vector.shape_cast %293 : vector<8x8xf32> to vector<1x8x8xf32>
      %295 = vector.broadcast %291 : vector<4x8x1xf32> to vector<4x8x8xf32>
      %296 = vector.broadcast %294 : vector<1x8x8xf32> to vector<4x8x8xf32>
      %297 = arith.mulf %295, %296 : vector<4x8x8xf32>
      %298 = arith.addf %290, %297 : vector<4x8x8xf32>
      %299 = vector.extract_strided_slice %275 {offsets = [0, 0, 3], sizes = [4, 8, 1], strides = [1, 1, 1]} : vector<4x8x8xf32> to vector<4x8x1xf32>
      %300 = vector.extract_strided_slice %1 {offsets = [3, 0, 0], sizes = [1, 8, 8], strides = [1, 1, 1]} : vector<8x8x8xf32> to vector<1x8x8xf32>
      %301 = vector.shape_cast %300 : vector<1x8x8xf32> to vector<8x8xf32>
      %302 = vector.shape_cast %301 : vector<8x8xf32> to vector<1x8x8xf32>
      %303 = vector.broadcast %299 : vector<4x8x1xf32> to vector<4x8x8xf32>
      %304 = vector.broadcast %302 : vector<1x8x8xf32> to vector<4x8x8xf32>
      %305 = arith.mulf %303, %304 : vector<4x8x8xf32>
      %306 = arith.addf %298, %305 : vector<4x8x8xf32>
      %307 = vector.extract_strided_slice %275 {offsets = [0, 0, 4], sizes = [4, 8, 1], strides = [1, 1, 1]} : vector<4x8x8xf32> to vector<4x8x1xf32>
      %308 = vector.extract_strided_slice %1 {offsets = [4, 0, 0], sizes = [1, 8, 8], strides = [1, 1, 1]} : vector<8x8x8xf32> to vector<1x8x8xf32>
      %309 = vector.shape_cast %308 : vector<1x8x8xf32> to vector<8x8xf32>
      %310 = vector.shape_cast %309 : vector<8x8xf32> to vector<1x8x8xf32>
      %311 = vector.broadcast %307 : vector<4x8x1xf32> to vector<4x8x8xf32>
      %312 = vector.broadcast %310 : vector<1x8x8xf32> to vector<4x8x8xf32>
      %313 = arith.mulf %311, %312 : vector<4x8x8xf32>
      %314 = arith.addf %306, %313 : vector<4x8x8xf32>
      %315 = vector.extract_strided_slice %275 {offsets = [0, 0, 5], sizes = [4, 8, 1], strides = [1, 1, 1]} : vector<4x8x8xf32> to vector<4x8x1xf32>
      %316 = vector.extract_strided_slice %1 {offsets = [5, 0, 0], sizes = [1, 8, 8], strides = [1, 1, 1]} : vector<8x8x8xf32> to vector<1x8x8xf32>
      %317 = vector.shape_cast %316 : vector<1x8x8xf32> to vector<8x8xf32>
      %318 = vector.shape_cast %317 : vector<8x8xf32> to vector<1x8x8xf32>
      %319 = vector.broadcast %315 : vector<4x8x1xf32> to vector<4x8x8xf32>
      %320 = vector.broadcast %318 : vector<1x8x8xf32> to vector<4x8x8xf32>
      %321 = arith.mulf %319, %320 : vector<4x8x8xf32>
      %322 = arith.addf %314, %321 : vector<4x8x8xf32>
      %323 = vector.extract_strided_slice %275 {offsets = [0, 0, 6], sizes = [4, 8, 1], strides = [1, 1, 1]} : vector<4x8x8xf32> to vector<4x8x1xf32>
      %324 = vector.extract_strided_slice %1 {offsets = [6, 0, 0], sizes = [1, 8, 8], strides = [1, 1, 1]} : vector<8x8x8xf32> to vector<1x8x8xf32>
      %325 = vector.shape_cast %324 : vector<1x8x8xf32> to vector<8x8xf32>
      %326 = vector.shape_cast %325 : vector<8x8xf32> to vector<1x8x8xf32>
      %327 = vector.broadcast %323 : vector<4x8x1xf32> to vector<4x8x8xf32>
      %328 = vector.broadcast %326 : vector<1x8x8xf32> to vector<4x8x8xf32>
      %329 = arith.mulf %327, %328 : vector<4x8x8xf32>
      %330 = arith.addf %322, %329 : vector<4x8x8xf32>
      %331 = vector.extract_strided_slice %275 {offsets = [0, 0, 7], sizes = [4, 8, 1], strides = [1, 1, 1]} : vector<4x8x8xf32> to vector<4x8x1xf32>
      %332 = vector.extract_strided_slice %1 {offsets = [7, 0, 0], sizes = [1, 8, 8], strides = [1, 1, 1]} : vector<8x8x8xf32> to vector<1x8x8xf32>
      %333 = vector.shape_cast %332 : vector<1x8x8xf32> to vector<8x8xf32>
      %334 = vector.shape_cast %333 : vector<8x8xf32> to vector<1x8x8xf32>
      %335 = vector.broadcast %331 : vector<4x8x1xf32> to vector<4x8x8xf32>
      %336 = vector.broadcast %334 : vector<1x8x8xf32> to vector<4x8x8xf32>
      %337 = arith.mulf %335, %336 : vector<4x8x8xf32>
      %338 = arith.addf %330, %337 : vector<4x8x8xf32>
      %339 = arith.addf %270, %338 : vector<4x8x8xf32>
      %340 = vector.shape_cast %0 : vector<8x8xf32> to vector<1x8x8xf32>
      %341 = vector.broadcast %340 : vector<1x8x8xf32> to vector<4x8x8xf32>
      %342 = arith.addf %339, %341 : vector<4x8x8xf32>
      %cst_93 = arith.constant dense<0xFF800000> : vector<4x8xf32>
      %343 = vector.multi_reduction <maximumf>, %342, %cst_93 [2] : vector<4x8x8xf32> to vector<4x8xf32>
      %344 = vector.shape_cast %343 : vector<4x8xf32> to vector<4x8x1xf32>
      %345 = vector.broadcast %344 : vector<4x8x1xf32> to vector<4x8x8xf32>
      %346 = arith.subf %342, %345 : vector<4x8x8xf32>
      %347 = math.exp %346 : vector<4x8x8xf32>
      %cst_94 = arith.constant dense<0.000000e+00> : vector<4x8xf32>
      %348 = vector.multi_reduction <add>, %347, %cst_94 [2] : vector<4x8x8xf32> to vector<4x8xf32>
      %349 = vector.shape_cast %348 : vector<4x8xf32> to vector<4x8x1xf32>
      %350 = tpu.reciprocal %349 {approx = true} : vector<4x8x1xf32> -> vector<4x8x1xf32>
      %351 = vector.broadcast %350 : vector<4x8x1xf32> to vector<4x8x8xf32>
      %352 = arith.mulf %347, %351 : vector<4x8x8xf32>
      %353 = arith.truncf %352 : vector<4x8x8xf32> to vector<4x8x8xbf16>
      "tpu.trace_start"() <{level = 10 : i32, message = "bqk,bkd->bqd"}> : () -> ()
      %cst_95 = arith.constant dense<0.000000e+00> : vector<4x8x64xf32>
      %354 = tpu.matmul %353, %167, %cst_95 {dimension_numbers = #tpu.dot_dimension_numbers<[2], [1], [1], [2], [0, 0, 0, 1, 1, 2], [0], [0]>} : vector<4x8x8xbf16>, vector<4x8x64xbf16>, vector<4x8x64xf32> -> vector<4x8x64xf32>
      "tpu.trace_stop"() : () -> ()
      %355 = vector.shape_cast %265 : vector<1x64xf32> to vector<1x1x64xf32>
      %356 = vector.broadcast %355 : vector<1x1x64xf32> to vector<4x8x64xf32>
      %357 = arith.mulf %354, %356 : vector<4x8x64xf32>
      %358 = arith.addf %263, %357 : vector<4x8x64xf32>
      %359 = vector.shape_cast %358 : vector<4x8x64xf32> to vector<32x64xf32>
      %360 = arith.addf %359, %arg26 : vector<32x64xf32>
      %361 = arith.index_cast %arg25 : i32 to index
      %c0_96 = arith.constant 0 : index
      %c0_97 = arith.constant 0 : index
      %362 = vector.load %arg11[%361, %c0_96, %c0_97] : memref<2x1x64xf32, #tpu.memory_space<vmem>>, vector<1x1x64xf32>
      %363 = vector.shape_cast %362 : vector<1x1x64xf32> to vector<1x64xf32>
      %364 = arith.index_cast %arg25 : i32 to index
      %c0_98 = arith.constant 0 : index
      %c0_99 = arith.constant 0 : index
      %365 = vector.load %arg12[%364, %c0_98, %c0_99] : memref<2x1x64xf32, #tpu.memory_space<vmem>>, vector<1x1x64xf32>
      %366 = vector.shape_cast %365 : vector<1x1x64xf32> to vector<1x64xf32>
      %cst_100 = arith.constant dense<0.000000e+00> : vector<32xf32>
      %367 = vector.multi_reduction <add>, %360, %cst_100 [1] : vector<32x64xf32> to vector<32xf32>
      %368 = vector.shape_cast %367 : vector<32xf32> to vector<32x1xf32>
      %cst_101 = arith.constant 6.400000e+01 : f32
      %369 = vector.broadcast %cst_101 : f32 to vector<32x1xf32>
      %370 = arith.divf %368, %369 : vector<32x1xf32>
      %371 = vector.broadcast %370 : vector<32x1xf32> to vector<32x64xf32>
      %372 = arith.subf %360, %371 : vector<32x64xf32>
      %373 = arith.mulf %372, %372 : vector<32x64xf32>
      %cst_102 = arith.constant dense<0.000000e+00> : vector<32xf32>
      %374 = vector.multi_reduction <add>, %373, %cst_102 [1] : vector<32x64xf32> to vector<32xf32>
      %375 = vector.shape_cast %374 : vector<32xf32> to vector<32x1xf32>
      %cst_103 = arith.constant 6.400000e+01 : f32
      %376 = vector.broadcast %cst_103 : f32 to vector<32x1xf32>
      %377 = arith.divf %375, %376 : vector<32x1xf32>
      %378 = vector.broadcast %370 : vector<32x1xf32> to vector<32x64xf32>
      %379 = arith.subf %360, %378 : vector<32x64xf32>
      %cst_104 = arith.constant 9.99999974E-6 : f32
      %380 = vector.broadcast %cst_104 : f32 to vector<32x1xf32>
      %381 = arith.addf %377, %380 : vector<32x1xf32>
      %382 = math.rsqrt %381 : vector<32x1xf32>
      %383 = vector.broadcast %382 : vector<32x1xf32> to vector<32x64xf32>
      %384 = arith.mulf %379, %383 : vector<32x64xf32>
      %385 = vector.broadcast %363 : vector<1x64xf32> to vector<32x64xf32>
      %386 = arith.mulf %384, %385 : vector<32x64xf32>
      %387 = vector.broadcast %366 : vector<1x64xf32> to vector<32x64xf32>
      %388 = arith.addf %386, %387 : vector<32x64xf32>
      %389 = arith.truncf %388 : vector<32x64xf32> to vector<32x64xbf16>
      %390 = arith.index_cast %arg25 : i32 to index
      %c0_105 = arith.constant 0 : index
      %c0_106 = arith.constant 0 : index
      %391 = vector.load %arg13[%390, %c0_105, %c0_106] : memref<2x64x32xbf16, #tpu.memory_space<vmem>>, vector<1x64x32xbf16>
      %392 = vector.shape_cast %391 : vector<1x64x32xbf16> to vector<64x32xbf16>
      %cst_107 = arith.constant dense<0.000000e+00> : vector<32x32xf32>
      %393 = tpu.matmul %389, %392, %cst_107 {dimension_numbers = #tpu.dot_dimension_numbers<[1], [0], [0], [1], [0, 0, 1, 1], [], []>} : vector<32x64xbf16>, vector<64x32xbf16>, vector<32x32xf32> -> vector<32x32xf32>
      %394 = arith.index_cast %arg25 : i32 to index
      %c0_108 = arith.constant 0 : index
      %c0_109 = arith.constant 0 : index
      %395 = vector.load %arg14[%394, %c0_108, %c0_109] : memref<2x1x32xf32, #tpu.memory_space<vmem>>, vector<1x1x32xf32>
      %396 = vector.shape_cast %395 : vector<1x1x32xf32> to vector<1x32xf32>
      %397 = vector.broadcast %396 : vector<1x32xf32> to vector<32x32xf32>
      %398 = arith.addf %393, %397 : vector<32x32xf32>
      %cst_110 = arith.constant 0.000000e+00 : f32
      %399 = vector.broadcast %cst_110 : f32 to vector<32x32xf32>
      %400 = arith.maximumf %398, %399 : vector<32x32xf32>
      %401 = arith.truncf %400 : vector<32x32xf32> to vector<32x32xbf16>
      %402 = arith.index_cast %arg25 : i32 to index
      %c0_111 = arith.constant 0 : index
      %c0_112 = arith.constant 0 : index
      %403 = vector.load %arg15[%402, %c0_111, %c0_112] : memref<2x32x64xbf16, #tpu.memory_space<vmem>>, vector<1x32x64xbf16>
      %404 = vector.shape_cast %403 : vector<1x32x64xbf16> to vector<32x64xbf16>
      %cst_113 = arith.constant dense<0.000000e+00> : vector<32x64xf32>
      %405 = tpu.matmul %401, %404, %cst_113 {dimension_numbers = #tpu.dot_dimension_numbers<[1], [0], [0], [1], [0, 0, 1, 1], [], []>} : vector<32x32xbf16>, vector<32x64xbf16>, vector<32x64xf32> -> vector<32x64xf32>
      %406 = arith.index_cast %arg25 : i32 to index
      %c0_114 = arith.constant 0 : index
      %c0_115 = arith.constant 0 : index
      %407 = vector.load %arg16[%406, %c0_114, %c0_115] : memref<2x1x64xf32, #tpu.memory_space<vmem>>, vector<1x1x64xf32>
      %408 = vector.shape_cast %407 : vector<1x1x64xf32> to vector<1x64xf32>
      %409 = vector.broadcast %408 : vector<1x64xf32> to vector<32x64xf32>
      %410 = arith.addf %405, %409 : vector<32x64xf32>
      %411 = arith.addf %410, %388 : vector<32x64xf32>
      %412 = arith.index_cast %arg25 : i32 to index
      %c0_116 = arith.constant 0 : index
      %c0_117 = arith.constant 0 : index
      %413 = vector.load %arg17[%412, %c0_116, %c0_117] : memref<2x1x64xf32, #tpu.memory_space<vmem>>, vector<1x1x64xf32>
      %414 = vector.shape_cast %413 : vector<1x1x64xf32> to vector<1x64xf32>
      %415 = arith.index_cast %arg25 : i32 to index
      %c0_118 = arith.constant 0 : index
      %c0_119 = arith.constant 0 : index
      %416 = vector.load %arg18[%415, %c0_118, %c0_119] : memref<2x1x64xf32, #tpu.memory_space<vmem>>, vector<1x1x64xf32>
      %417 = vector.shape_cast %416 : vector<1x1x64xf32> to vector<1x64xf32>
      %cst_120 = arith.constant dense<0.000000e+00> : vector<32xf32>
      %418 = vector.multi_reduction <add>, %411, %cst_120 [1] : vector<32x64xf32> to vector<32xf32>
      %419 = vector.shape_cast %418 : vector<32xf32> to vector<32x1xf32>
      %cst_121 = arith.constant 6.400000e+01 : f32
      %420 = vector.broadcast %cst_121 : f32 to vector<32x1xf32>
      %421 = arith.divf %419, %420 : vector<32x1xf32>
      %422 = vector.broadcast %421 : vector<32x1xf32> to vector<32x64xf32>
      %423 = arith.subf %411, %422 : vector<32x64xf32>
      %424 = arith.mulf %423, %423 : vector<32x64xf32>
      %cst_122 = arith.constant dense<0.000000e+00> : vector<32xf32>
      %425 = vector.multi_reduction <add>, %424, %cst_122 [1] : vector<32x64xf32> to vector<32xf32>
      %426 = vector.shape_cast %425 : vector<32xf32> to vector<32x1xf32>
      %cst_123 = arith.constant 6.400000e+01 : f32
      %427 = vector.broadcast %cst_123 : f32 to vector<32x1xf32>
      %428 = arith.divf %426, %427 : vector<32x1xf32>
      %429 = vector.broadcast %421 : vector<32x1xf32> to vector<32x64xf32>
      %430 = arith.subf %411, %429 : vector<32x64xf32>
      %cst_124 = arith.constant 9.99999974E-6 : f32
      %431 = vector.broadcast %cst_124 : f32 to vector<32x1xf32>
      %432 = arith.addf %428, %431 : vector<32x1xf32>
      %433 = math.rsqrt %432 : vector<32x1xf32>
      %434 = vector.broadcast %433 : vector<32x1xf32> to vector<32x64xf32>
      %435 = arith.mulf %430, %434 : vector<32x64xf32>
      %436 = vector.broadcast %414 : vector<1x64xf32> to vector<32x64xf32>
      %437 = arith.mulf %435, %436 : vector<32x64xf32>
      %438 = vector.broadcast %417 : vector<1x64xf32> to vector<32x64xf32>
      %439 = arith.addf %437, %438 : vector<32x64xf32>
      scf.yield %439 : vector<32x64xf32>
    }
    %c2_i32_14 = arith.constant 2 : i32
    %12 = arith.truncf %11 : vector<32x64xf32> to vector<32x64xbf16>
    %13 = tpu.iota {dimensions = array<i32: 0>} : vector<4x32xi32>
    %14 = tpu.iota {dimensions = array<i32: 1>} : vector<4x32xi32>
    %cst_15 = arith.constant 0.000000e+00 : f32
    %15 = vector.broadcast %cst_15 : f32 to vector<4x128xf32>
    %c8_i32 = arith.constant 8 : i32
    %16 = vector.broadcast %c8_i32 : i32 to vector<4x32xi32>
    %17 = arith.muli %13, %16 : vector<4x32xi32>
    %c0_i32_16 = arith.constant 0 : i32
    %18 = vector.broadcast %c0_i32_16 : i32 to vector<4x32xi32>
    %19 = arith.addi %17, %18 : vector<4x32xi32>
    %20 = arith.cmpi eq, %14, %19 : vector<4x32xi32>
    %21 = arith.extui %20 : vector<4x32xi1> to vector<4x32xi32>
    %22 = arith.sitofp %21 : vector<4x32xi32> to vector<4x32xf32>
    %23 = arith.truncf %22 : vector<4x32xf32> to vector<4x32xbf16>
    %cst_17 = arith.constant dense<0.000000e+00> : vector<4x64xf32>
    %24 = tpu.matmul %23, %12, %cst_17 {dimension_numbers = #tpu.dot_dimension_numbers<[1], [0], [0], [1], [0, 0, 1, 1], [], []>} : vector<4x32xbf16>, vector<32x64xbf16>, vector<4x64xf32> -> vector<4x64xf32>
    %25 = arith.truncf %24 : vector<4x64xf32> to vector<4x64xbf16>
    %c0_18 = arith.constant 0 : index
    %c0_19 = arith.constant 0 : index
    %c0_20 = arith.constant 0 : index
    %26 = vector.load %arg19[%c0_18, %c0_19, %c0_20] : memref<8x64x128xbf16, #tpu.memory_space<vmem>>, vector<1x64x128xbf16>
    %27 = vector.shape_cast %26 : vector<1x64x128xbf16> to vector<64x128xbf16>
    %cst_21 = arith.constant dense<0.000000e+00> : vector<4x128xf32>
    %28 = tpu.matmul %25, %27, %cst_21 {dimension_numbers = #tpu.dot_dimension_numbers<[1], [0], [0], [1], [0, 0, 1, 1], [], []>} : vector<4x64xbf16>, vector<64x128xbf16>, vector<4x128xf32> -> vector<4x128xf32>
    %29 = arith.addf %15, %28 : vector<4x128xf32>
    %c8_i32_22 = arith.constant 8 : i32
    %30 = vector.broadcast %c8_i32_22 : i32 to vector<4x32xi32>
    %31 = arith.muli %13, %30 : vector<4x32xi32>
    %c1_i32_23 = arith.constant 1 : i32
    %32 = vector.broadcast %c1_i32_23 : i32 to vector<4x32xi32>
    %33 = arith.addi %31, %32 : vector<4x32xi32>
    %34 = arith.cmpi eq, %14, %33 : vector<4x32xi32>
    %35 = arith.extui %34 : vector<4x32xi1> to vector<4x32xi32>
    %36 = arith.sitofp %35 : vector<4x32xi32> to vector<4x32xf32>
    %37 = arith.truncf %36 : vector<4x32xf32> to vector<4x32xbf16>
    %cst_24 = arith.constant dense<0.000000e+00> : vector<4x64xf32>
    %38 = tpu.matmul %37, %12, %cst_24 {dimension_numbers = #tpu.dot_dimension_numbers<[1], [0], [0], [1], [0, 0, 1, 1], [], []>} : vector<4x32xbf16>, vector<32x64xbf16>, vector<4x64xf32> -> vector<4x64xf32>
    %39 = arith.truncf %38 : vector<4x64xf32> to vector<4x64xbf16>
    %c1 = arith.constant 1 : index
    %c0_25 = arith.constant 0 : index
    %c0_26 = arith.constant 0 : index
    %40 = vector.load %arg19[%c1, %c0_25, %c0_26] : memref<8x64x128xbf16, #tpu.memory_space<vmem>>, vector<1x64x128xbf16>
    %41 = vector.shape_cast %40 : vector<1x64x128xbf16> to vector<64x128xbf16>
    %cst_27 = arith.constant dense<0.000000e+00> : vector<4x128xf32>
    %42 = tpu.matmul %39, %41, %cst_27 {dimension_numbers = #tpu.dot_dimension_numbers<[1], [0], [0], [1], [0, 0, 1, 1], [], []>} : vector<4x64xbf16>, vector<64x128xbf16>, vector<4x128xf32> -> vector<4x128xf32>
    %43 = arith.addf %29, %42 : vector<4x128xf32>
    %c8_i32_28 = arith.constant 8 : i32
    %44 = vector.broadcast %c8_i32_28 : i32 to vector<4x32xi32>
    %45 = arith.muli %13, %44 : vector<4x32xi32>
    %c2_i32_29 = arith.constant 2 : i32
    %46 = vector.broadcast %c2_i32_29 : i32 to vector<4x32xi32>
    %47 = arith.addi %45, %46 : vector<4x32xi32>
    %48 = arith.cmpi eq, %14, %47 : vector<4x32xi32>
    %49 = arith.extui %48 : vector<4x32xi1> to vector<4x32xi32>
    %50 = arith.sitofp %49 : vector<4x32xi32> to vector<4x32xf32>
    %51 = arith.truncf %50 : vector<4x32xf32> to vector<4x32xbf16>
    %cst_30 = arith.constant dense<0.000000e+00> : vector<4x64xf32>
    %52 = tpu.matmul %51, %12, %cst_30 {dimension_numbers = #tpu.dot_dimension_numbers<[1], [0], [0], [1], [0, 0, 1, 1], [], []>} : vector<4x32xbf16>, vector<32x64xbf16>, vector<4x64xf32> -> vector<4x64xf32>
    %53 = arith.truncf %52 : vector<4x64xf32> to vector<4x64xbf16>
    %c2 = arith.constant 2 : index
    %c0_31 = arith.constant 0 : index
    %c0_32 = arith.constant 0 : index
    %54 = vector.load %arg19[%c2, %c0_31, %c0_32] : memref<8x64x128xbf16, #tpu.memory_space<vmem>>, vector<1x64x128xbf16>
    %55 = vector.shape_cast %54 : vector<1x64x128xbf16> to vector<64x128xbf16>
    %cst_33 = arith.constant dense<0.000000e+00> : vector<4x128xf32>
    %56 = tpu.matmul %53, %55, %cst_33 {dimension_numbers = #tpu.dot_dimension_numbers<[1], [0], [0], [1], [0, 0, 1, 1], [], []>} : vector<4x64xbf16>, vector<64x128xbf16>, vector<4x128xf32> -> vector<4x128xf32>
    %57 = arith.addf %43, %56 : vector<4x128xf32>
    %c8_i32_34 = arith.constant 8 : i32
    %58 = vector.broadcast %c8_i32_34 : i32 to vector<4x32xi32>
    %59 = arith.muli %13, %58 : vector<4x32xi32>
    %c3_i32 = arith.constant 3 : i32
    %60 = vector.broadcast %c3_i32 : i32 to vector<4x32xi32>
    %61 = arith.addi %59, %60 : vector<4x32xi32>
    %62 = arith.cmpi eq, %14, %61 : vector<4x32xi32>
    %63 = arith.extui %62 : vector<4x32xi1> to vector<4x32xi32>
    %64 = arith.sitofp %63 : vector<4x32xi32> to vector<4x32xf32>
    %65 = arith.truncf %64 : vector<4x32xf32> to vector<4x32xbf16>
    %cst_35 = arith.constant dense<0.000000e+00> : vector<4x64xf32>
    %66 = tpu.matmul %65, %12, %cst_35 {dimension_numbers = #tpu.dot_dimension_numbers<[1], [0], [0], [1], [0, 0, 1, 1], [], []>} : vector<4x32xbf16>, vector<32x64xbf16>, vector<4x64xf32> -> vector<4x64xf32>
    %67 = arith.truncf %66 : vector<4x64xf32> to vector<4x64xbf16>
    %c3 = arith.constant 3 : index
    %c0_36 = arith.constant 0 : index
    %c0_37 = arith.constant 0 : index
    %68 = vector.load %arg19[%c3, %c0_36, %c0_37] : memref<8x64x128xbf16, #tpu.memory_space<vmem>>, vector<1x64x128xbf16>
    %69 = vector.shape_cast %68 : vector<1x64x128xbf16> to vector<64x128xbf16>
    %cst_38 = arith.constant dense<0.000000e+00> : vector<4x128xf32>
    %70 = tpu.matmul %67, %69, %cst_38 {dimension_numbers = #tpu.dot_dimension_numbers<[1], [0], [0], [1], [0, 0, 1, 1], [], []>} : vector<4x64xbf16>, vector<64x128xbf16>, vector<4x128xf32> -> vector<4x128xf32>
    %71 = arith.addf %57, %70 : vector<4x128xf32>
    %c8_i32_39 = arith.constant 8 : i32
    %72 = vector.broadcast %c8_i32_39 : i32 to vector<4x32xi32>
    %73 = arith.muli %13, %72 : vector<4x32xi32>
    %c4_i32 = arith.constant 4 : i32
    %74 = vector.broadcast %c4_i32 : i32 to vector<4x32xi32>
    %75 = arith.addi %73, %74 : vector<4x32xi32>
    %76 = arith.cmpi eq, %14, %75 : vector<4x32xi32>
    %77 = arith.extui %76 : vector<4x32xi1> to vector<4x32xi32>
    %78 = arith.sitofp %77 : vector<4x32xi32> to vector<4x32xf32>
    %79 = arith.truncf %78 : vector<4x32xf32> to vector<4x32xbf16>
    %cst_40 = arith.constant dense<0.000000e+00> : vector<4x64xf32>
    %80 = tpu.matmul %79, %12, %cst_40 {dimension_numbers = #tpu.dot_dimension_numbers<[1], [0], [0], [1], [0, 0, 1, 1], [], []>} : vector<4x32xbf16>, vector<32x64xbf16>, vector<4x64xf32> -> vector<4x64xf32>
    %81 = arith.truncf %80 : vector<4x64xf32> to vector<4x64xbf16>
    %c4 = arith.constant 4 : index
    %c0_41 = arith.constant 0 : index
    %c0_42 = arith.constant 0 : index
    %82 = vector.load %arg19[%c4, %c0_41, %c0_42] : memref<8x64x128xbf16, #tpu.memory_space<vmem>>, vector<1x64x128xbf16>
    %83 = vector.shape_cast %82 : vector<1x64x128xbf16> to vector<64x128xbf16>
    %cst_43 = arith.constant dense<0.000000e+00> : vector<4x128xf32>
    %84 = tpu.matmul %81, %83, %cst_43 {dimension_numbers = #tpu.dot_dimension_numbers<[1], [0], [0], [1], [0, 0, 1, 1], [], []>} : vector<4x64xbf16>, vector<64x128xbf16>, vector<4x128xf32> -> vector<4x128xf32>
    %85 = arith.addf %71, %84 : vector<4x128xf32>
    %c8_i32_44 = arith.constant 8 : i32
    %86 = vector.broadcast %c8_i32_44 : i32 to vector<4x32xi32>
    %87 = arith.muli %13, %86 : vector<4x32xi32>
    %c5_i32 = arith.constant 5 : i32
    %88 = vector.broadcast %c5_i32 : i32 to vector<4x32xi32>
    %89 = arith.addi %87, %88 : vector<4x32xi32>
    %90 = arith.cmpi eq, %14, %89 : vector<4x32xi32>
    %91 = arith.extui %90 : vector<4x32xi1> to vector<4x32xi32>
    %92 = arith.sitofp %91 : vector<4x32xi32> to vector<4x32xf32>
    %93 = arith.truncf %92 : vector<4x32xf32> to vector<4x32xbf16>
    %cst_45 = arith.constant dense<0.000000e+00> : vector<4x64xf32>
    %94 = tpu.matmul %93, %12, %cst_45 {dimension_numbers = #tpu.dot_dimension_numbers<[1], [0], [0], [1], [0, 0, 1, 1], [], []>} : vector<4x32xbf16>, vector<32x64xbf16>, vector<4x64xf32> -> vector<4x64xf32>
    %95 = arith.truncf %94 : vector<4x64xf32> to vector<4x64xbf16>
    %c5 = arith.constant 5 : index
    %c0_46 = arith.constant 0 : index
    %c0_47 = arith.constant 0 : index
    %96 = vector.load %arg19[%c5, %c0_46, %c0_47] : memref<8x64x128xbf16, #tpu.memory_space<vmem>>, vector<1x64x128xbf16>
    %97 = vector.shape_cast %96 : vector<1x64x128xbf16> to vector<64x128xbf16>
    %cst_48 = arith.constant dense<0.000000e+00> : vector<4x128xf32>
    %98 = tpu.matmul %95, %97, %cst_48 {dimension_numbers = #tpu.dot_dimension_numbers<[1], [0], [0], [1], [0, 0, 1, 1], [], []>} : vector<4x64xbf16>, vector<64x128xbf16>, vector<4x128xf32> -> vector<4x128xf32>
    %99 = arith.addf %85, %98 : vector<4x128xf32>
    %c8_i32_49 = arith.constant 8 : i32
    %100 = vector.broadcast %c8_i32_49 : i32 to vector<4x32xi32>
    %101 = arith.muli %13, %100 : vector<4x32xi32>
    %c6_i32 = arith.constant 6 : i32
    %102 = vector.broadcast %c6_i32 : i32 to vector<4x32xi32>
    %103 = arith.addi %101, %102 : vector<4x32xi32>
    %104 = arith.cmpi eq, %14, %103 : vector<4x32xi32>
    %105 = arith.extui %104 : vector<4x32xi1> to vector<4x32xi32>
    %106 = arith.sitofp %105 : vector<4x32xi32> to vector<4x32xf32>
    %107 = arith.truncf %106 : vector<4x32xf32> to vector<4x32xbf16>
    %cst_50 = arith.constant dense<0.000000e+00> : vector<4x64xf32>
    %108 = tpu.matmul %107, %12, %cst_50 {dimension_numbers = #tpu.dot_dimension_numbers<[1], [0], [0], [1], [0, 0, 1, 1], [], []>} : vector<4x32xbf16>, vector<32x64xbf16>, vector<4x64xf32> -> vector<4x64xf32>
    %109 = arith.truncf %108 : vector<4x64xf32> to vector<4x64xbf16>
    %c6 = arith.constant 6 : index
    %c0_51 = arith.constant 0 : index
    %c0_52 = arith.constant 0 : index
    %110 = vector.load %arg19[%c6, %c0_51, %c0_52] : memref<8x64x128xbf16, #tpu.memory_space<vmem>>, vector<1x64x128xbf16>
    %111 = vector.shape_cast %110 : vector<1x64x128xbf16> to vector<64x128xbf16>
    %cst_53 = arith.constant dense<0.000000e+00> : vector<4x128xf32>
    %112 = tpu.matmul %109, %111, %cst_53 {dimension_numbers = #tpu.dot_dimension_numbers<[1], [0], [0], [1], [0, 0, 1, 1], [], []>} : vector<4x64xbf16>, vector<64x128xbf16>, vector<4x128xf32> -> vector<4x128xf32>
    %113 = arith.addf %99, %112 : vector<4x128xf32>
    %c8_i32_54 = arith.constant 8 : i32
    %114 = vector.broadcast %c8_i32_54 : i32 to vector<4x32xi32>
    %115 = arith.muli %13, %114 : vector<4x32xi32>
    %c7_i32 = arith.constant 7 : i32
    %116 = vector.broadcast %c7_i32 : i32 to vector<4x32xi32>
    %117 = arith.addi %115, %116 : vector<4x32xi32>
    %118 = arith.cmpi eq, %14, %117 : vector<4x32xi32>
    %119 = arith.extui %118 : vector<4x32xi1> to vector<4x32xi32>
    %120 = arith.sitofp %119 : vector<4x32xi32> to vector<4x32xf32>
    %121 = arith.truncf %120 : vector<4x32xf32> to vector<4x32xbf16>
    %cst_55 = arith.constant dense<0.000000e+00> : vector<4x64xf32>
    %122 = tpu.matmul %121, %12, %cst_55 {dimension_numbers = #tpu.dot_dimension_numbers<[1], [0], [0], [1], [0, 0, 1, 1], [], []>} : vector<4x32xbf16>, vector<32x64xbf16>, vector<4x64xf32> -> vector<4x64xf32>
    %123 = arith.truncf %122 : vector<4x64xf32> to vector<4x64xbf16>
    %c7 = arith.constant 7 : index
    %c0_56 = arith.constant 0 : index
    %c0_57 = arith.constant 0 : index
    %124 = vector.load %arg19[%c7, %c0_56, %c0_57] : memref<8x64x128xbf16, #tpu.memory_space<vmem>>, vector<1x64x128xbf16>
    %125 = vector.shape_cast %124 : vector<1x64x128xbf16> to vector<64x128xbf16>
    %cst_58 = arith.constant dense<0.000000e+00> : vector<4x128xf32>
    %126 = tpu.matmul %123, %125, %cst_58 {dimension_numbers = #tpu.dot_dimension_numbers<[1], [0], [0], [1], [0, 0, 1, 1], [], []>} : vector<4x64xbf16>, vector<64x128xbf16>, vector<4x128xf32> -> vector<4x128xf32>
    %127 = arith.addf %113, %126 : vector<4x128xf32>
    %c0_59 = arith.constant 0 : index
    %c0_60 = arith.constant 0 : index
    %128 = vector.load %arg20[%c0_59, %c0_60] : memref<1x128xf32, #tpu.memory_space<vmem>>, vector<1x128xf32>
    %129 = vector.broadcast %128 : vector<1x128xf32> to vector<4x128xf32>
    %130 = arith.addf %127, %129 : vector<4x128xf32>
    %c0_61 = arith.constant 0 : index
    %c0_62 = arith.constant 0 : index
    %c0_63 = arith.constant 0 : index
    %131 = vector.load %arg24[%c0_61, %c0_62, %c0_63] : memref<1x4x128xf32, #tpu.memory_space<vmem>>, vector<1x4x128xf32>
    %132 = vector.shape_cast %131 : vector<1x4x128xf32> to vector<4x128xf32>
    %133 = vector.shape_cast %130 : vector<4x128xf32> to vector<1x4x128xf32>
    tpu.vector_store %arg24[%c0_61, %c0_62, %c0_63], %133 {strides = array<i32>} : memref<1x4x128xf32, #tpu.memory_space<vmem>>, vector<1x4x128xf32>,
    return
  }
  func.func @transform_0(%arg0: i32) -> (i32, i32, i32) {
    %c0_i32 = arith.constant 0 : i32
    %c0_i32_0 = arith.constant 0 : i32
    %c0_i32_1 = arith.constant 0 : i32
    return %arg0, %c0_i32, %c0_i32_0 : i32, i32, i32
  }
  func.func @transform_1(%arg0: i32) -> (i32, i32) {
    %c0_i32 = arith.constant 0 : i32
    %c0_i32_0 = arith.constant 0 : i32
    %c0_i32_1 = arith.constant 0 : i32
    return %c0_i32, %c0_i32_0 : i32, i32
  }
  func.func @transform_2(%arg0: i32) -> (i32, i32) {
    %c0_i32 = arith.constant 0 : i32
    %c0_i32_0 = arith.constant 0 : i32
    %c0_i32_1 = arith.constant 0 : i32
    return %c0_i32, %c0_i32_0 : i32, i32
  }
  func.func @transform_3(%arg0: i32) -> (i32, i32, i32) {
    %c0_i32 = arith.constant 0 : i32
    %c0_i32_0 = arith.constant 0 : i32
    %c0_i32_1 = arith.constant 0 : i32
    %c0_i32_2 = arith.constant 0 : i32
    return %c0_i32, %c0_i32_0, %c0_i32_1 : i32, i32, i32
  }
  func.func @transform_4(%arg0: i32) -> (i32, i32, i32) {
    %c0_i32 = arith.constant 0 : i32
    %c0_i32_0 = arith.constant 0 : i32
    %c0_i32_1 = arith.constant 0 : i32
    %c0_i32_2 = arith.constant 0 : i32
    return %c0_i32, %c0_i32_0, %c0_i32_1 : i32, i32, i32
  }
  func.func @transform_5(%arg0: i32) -> (i32, i32, i32) {
    %c0_i32 = arith.constant 0 : i32
    %c0_i32_0 = arith.constant 0 : i32
    %c0_i32_1 = arith.constant 0 : i32
    %c0_i32_2 = arith.constant 0 : i32
    return %c0_i32, %c0_i32_0, %c0_i32_1 : i32, i32, i32
  }
  func.func @transform_6(%arg0: i32) -> (i32, i32, i32) {
    %c0_i32 = arith.constant 0 : i32
    %c0_i32_0 = arith.constant 0 : i32
    %c0_i32_1 = arith.constant 0 : i32
    %c0_i32_2 = arith.constant 0 : i32
    return %c0_i32, %c0_i32_0, %c0_i32_1 : i32, i32, i32
  }
  func.func @transform_7(%arg0: i32) -> (i32, i32, i32) {
    %c0_i32 = arith.constant 0 : i32
    %c0_i32_0 = arith.constant 0 : i32
    %c0_i32_1 = arith.constant 0 : i32
    %c0_i32_2 = arith.constant 0 : i32
    return %c0_i32, %c0_i32_0, %c0_i32_1 : i32, i32, i32
  }
  func.func @transform_8(%arg0: i32) -> (i32, i32, i32) {
    %c0_i32 = arith.constant 0 : i32
    %c0_i32_0 = arith.constant 0 : i32
    %c0_i32_1 = arith.constant 0 : i32
    %c0_i32_2 = arith.constant 0 : i32
    return %c0_i32, %c0_i32_0, %c0_i32_1 : i32, i32, i32
  }
  func.func @transform_9(%arg0: i32) -> (i32, i32, i32, i32) {
    %c0_i32 = arith.constant 0 : i32
    %c0_i32_0 = arith.constant 0 : i32
    %c0_i32_1 = arith.constant 0 : i32
    %c0_i32_2 = arith.constant 0 : i32
    %c0_i32_3 = arith.constant 0 : i32
    return %c0_i32, %c0_i32_0, %c0_i32_1, %c0_i32_2 : i32, i32, i32, i32
  }
  func.func @transform_10(%arg0: i32) -> (i32, i32, i32) {
    %c0_i32 = arith.constant 0 : i32
    %c0_i32_0 = arith.constant 0 : i32
    %c0_i32_1 = arith.constant 0 : i32
    %c0_i32_2 = arith.constant 0 : i32
    return %c0_i32, %c0_i32_0, %c0_i32_1 : i32, i32, i32
  }
  func.func @transform_11(%arg0: i32) -> (i32, i32, i32) {
    %c0_i32 = arith.constant 0 : i32
    %c0_i32_0 = arith.constant 0 : i32
    %c0_i32_1 = arith.constant 0 : i32
    %c0_i32_2 = arith.constant 0 : i32
    return %c0_i32, %c0_i32_0, %c0_i32_1 : i32, i32, i32
  }
  func.func @transform_12(%arg0: i32) -> (i32, i32, i32) {
    %c0_i32 = arith.constant 0 : i32
    %c0_i32_0 = arith.constant 0 : i32
    %c0_i32_1 = arith.constant 0 : i32
    %c0_i32_2 = arith.constant 0 : i32
    return %c0_i32, %c0_i32_0, %c0_i32_1 : i32, i32, i32
  }
  func.func @transform_13(%arg0: i32) -> (i32, i32, i32) {
    %c0_i32 = arith.constant 0 : i32
    %c0_i32_0 = arith.constant 0 : i32
    %c0_i32_1 = arith.constant 0 : i32
    %c0_i32_2 = arith.constant 0 : i32
    return %c0_i32, %c0_i32_0, %c0_i32_1 : i32, i32, i32
  }
  func.func @transform_14(%arg0: i32) -> (i32, i32, i32) {
    %c0_i32 = arith.constant 0 : i32
    %c0_i32_0 = arith.constant 0 : i32
    %c0_i32_1 = arith.constant 0 : i32
    %c0_i32_2 = arith.constant 0 : i32
    return %c0_i32, %c0_i32_0, %c0_i32_1 : i32, i32, i32
  }
  func.func @transform_15(%arg0: i32) -> (i32, i32, i32) {
    %c0_i32 = arith.constant 0 : i32
    %c0_i32_0 = arith.constant 0 : i32
    %c0_i32_1 = arith.constant 0 : i32
    %c0_i32_2 = arith.constant 0 : i32
    return %c0_i32, %c0_i32_0, %c0_i32_1 : i32, i32, i32
  }
  func.func @transform_16(%arg0: i32) -> (i32, i32, i32) {
    %c0_i32 = arith.constant 0 : i32
    %c0_i32_0 = arith.constant 0 : i32
    %c0_i32_1 = arith.constant 0 : i32
    %c0_i32_2 = arith.constant 0 : i32
    return %c0_i32, %c0_i32_0, %c0_i32_1 : i32, i32, i32
  }
  func.func @transform_17(%arg0: i32) -> (i32, i32, i32) {
    %c0_i32 = arith.constant 0 : i32
    %c0_i32_0 = arith.constant 0 : i32
    %c0_i32_1 = arith.constant 0 : i32
    %c0_i32_2 = arith.constant 0 : i32
    return %c0_i32, %c0_i32_0, %c0_i32_1 : i32, i32, i32
  }
  func.func @transform_18(%arg0: i32) -> (i32, i32, i32) {
    %c0_i32 = arith.constant 0 : i32
    %c0_i32_0 = arith.constant 0 : i32
    %c0_i32_1 = arith.constant 0 : i32
    %c0_i32_2 = arith.constant 0 : i32
    return %c0_i32, %c0_i32_0, %c0_i32_1 : i32, i32, i32
  }
  func.func @transform_19(%arg0: i32) -> (i32, i32) {
    %c0_i32 = arith.constant 0 : i32
    %c0_i32_0 = arith.constant 0 : i32
    %c0_i32_1 = arith.constant 0 : i32
    return %c0_i32, %c0_i32_0 : i32, i32
  }
  func.func @transform_20(%arg0: i32) -> (i32, i32, i32) {
    %c0_i32 = arith.constant 0 : i32
    %c0_i32_0 = arith.constant 0 : i32
    %c0_i32_1 = arith.constant 0 : i32
    %c0_i32_2 = arith.constant 0 : i32
    return %c0_i32, %c0_i32_0, %c0_i32_1 : i32, i32, i32
  }
  func.func @transform_21(%arg0: i32) -> (i32, i32, i32) {
    %c0_i32 = arith.constant 0 : i32
    %c0_i32_0 = arith.constant 0 : i32
    %c0_i32_1 = arith.constant 0 : i32
    %c0_i32_2 = arith.constant 0 : i32
    return %c0_i32, %c0_i32_0, %c0_i32_1 : i32, i32, i32
  }
  func.func @transform_22(%arg0: i32) -> (i32, i32) {
    %c0_i32 = arith.constant 0 : i32
    %c0_i32_0 = arith.constant 0 : i32
    %c0_i32_1 = arith.constant 0 : i32
    return %c0_i32, %c0_i32_0 : i32, i32
  }
  func.func @transform_23(%arg0: i32) -> (i32, i32, i32) {
    %c0_i32 = arith.constant 0 : i32
    %c0_i32_0 = arith.constant 0 : i32
    %c0_i32_1 = arith.constant 0 : i32
    return %arg0, %c0_i32, %c0_i32_0 : i32, i32, i32
  }
}

</mosaic_0001>

<llo_original>
// kernel: transformer_forward.1
$region0: #{transformer_forward.1}
  #allocation0 [shape = 'u32[]', space=smem, size = 0x4, offset = 0x4, fixed_abs, tag = 'smem constant byte address 0x4 - core index']
  #allocation1 [shape = 'u32[72,128]{1,0:T(1,128)}', space=vmem, size = 0x9000, scoped, tag = 'internal scratch']
  %s0 = inlined_call_operand.vmem [shape: bf16[2,32,128], index: 0, kind: input, shape index: {}]
  %s1 = inlined_call_operand.vmem [shape: bf16[128,64], index: 1, kind: input, shape index: {}]
  %s2 = inlined_call_operand.vmem [shape: f32[1,64], index: 2, kind: input, shape index: {}]
  %s3 = inlined_call_operand.vmem [shape: bf16[2,64,64], index: 3, kind: input, shape index: {}]
  %s4 = inlined_call_operand.vmem [shape: f32[2,1,64], index: 4, kind: input, shape index: {}]
  %s5 = inlined_call_operand.vmem [shape: bf16[2,64,64], index: 5, kind: input, shape index: {}]
  %s6 = inlined_call_operand.vmem [shape: f32[2,1,64], index: 6, kind: input, shape index: {}]
  %s7 = inlined_call_operand.vmem [shape: bf16[2,64,64], index: 7, kind: input, shape index: {}]
  %s8 = inlined_call_operand.vmem [shape: f32[2,1,64], index: 8, kind: input, shape index: {}]
  %s9 = inlined_call_operand.vmem [shape: bf16[2,2,64,8], index: 9, kind: input, shape index: {}]
  %s10 = inlined_call_operand.vmem [shape: f32[2,1,64], index: 10, kind: input, shape index: {}]
  %s11 = inlined_call_operand.vmem [shape: f32[2,1,64], index: 11, kind: input, shape index: {}]
  %s12 = inlined_call_operand.vmem [shape: bf16[2,64,32], index: 12, kind: input, shape index: {}]
  %s13 = inlined_call_operand.vmem [shape: f32[2,1,32], index: 13, kind: input, shape index: {}]
  %s14 = inlined_call_operand.vmem [shape: bf16[2,32,64], index: 14, kind: input, shape index: {}]
  %s15 = inlined_call_operand.vmem [shape: f32[2,1,64], index: 15, kind: input, shape index: {}]
  %s16 = inlined_call_operand.vmem [shape: f32[2,1,64], index: 16, kind: input, shape index: {}]
  %s17 = inlined_call_operand.vmem [shape: f32[2,1,64], index: 17, kind: input, shape index: {}]
  %s18 = inlined_call_operand.hbm [shape: bf16[8,64,128], index: 18, kind: input, shape index: {}]
  %s19 = inlined_call_operand.vmem [shape: f32[1,128], index: 19, kind: input, shape index: {}]
  %s20 = inlined_call_operand.vmem [shape: f32[2,1,64], index: 20, kind: input, shape index: {}]
  %s21 = inlined_call_operand.vmem [shape: f32[8,8,8], index: 21, kind: input, shape index: {}]
  %s22 = inlined_call_operand.vmem [shape: f32[8,8], index: 22, kind: input, shape index: {}]
  %s23 = inlined_call_operand.vmem [shape: f32[2,4,128], index: 23, kind: output, shape index: {}]
  %s24 = sld [smem:[#allocation0]]
  $region136: #{transformer_forward.1} parent=0
    _
  %s26 = ssub.s32 1, %s24
  %s27 = scalar_select 0, %s26, %s24
  $region1: #{transformer_forward.1} parent=0
    #allocation2 [shape = 'u8[131072]{0}', space=vmem, size = 0x20000, scoped, tag = 'input window, operand 18, single buffered']
    #allocation3 [shape = 's32[2]{0}', space=sflag, size = 0x8, scoped, tag = 'scoped memory for transformer_forward.1']
    %28 = vsyncpa [#allocation3], 0
    loop: start=0, step=1, limit=4
    $region2: #{transformer_forward.1} parent=1 // loop_pre_header
      _
    $region3: #{transformer_forward.1} parent=1 // loop_header
      %s30 = sphi 0, %s34
      %p31 = scmp.ge.s32.totalorder %s30, 4
      %s40 = sphi 0, %s42
      %s43 = sphi 0, %s40
      %s44 = sphi 0, %s43
      %s60 = sphi 0, %s44
      %s64 = sphi 0, %s64
      %s66 = sphi 0, %s64
      %s67 = sphi 0, %s66
      %s81 = sphi 0, %s67
      %s85 = sphi 0, %s85
      %s87 = sphi 0, %s85
      %s88 = sphi 0, %s87
      %s102 = sphi 0, %s88
      %s106 = sphi 0, %s106
      %s108 = sphi 0, %s106
      %s109 = sphi 0, %s108
      %s123 = sphi 0, %s109
      %s127 = sphi 0, %s127
      %s129 = sphi 0, %s127
      %s130 = sphi 0, %s129
      %s144 = sphi 0, %s130
      %s148 = sphi 0, %s148
      %s150 = sphi 0, %s148
      %s151 = sphi 0, %s150
      %s165 = sphi 0, %s151
      %s169 = sphi 0, %s169
      %s171 = sphi 0, %s169
      %s172 = sphi 0, %s171
      %s186 = sphi 0, %s172
      %s190 = sphi 0, %s190
      %s192 = sphi 0, %s190
      %s193 = sphi 0, %s192
      %s207 = sphi 0, %s193
      %s211 = sphi 0, %s211
      %s213 = sphi 0, %s211
      %s214 = sphi 0, %s213
      %s228 = sphi 0, %s214
      %s232 = sphi 0, %s232
      %s234 = sphi 0, %s232
      %s235 = sphi 0, %s234
      %s249 = sphi 0, %s235
      %s253 = sphi 0, %s253
      %s255 = sphi 0, %s253
      %s256 = sphi 0, %s255
      %s270 = sphi 0, %s256
      %s274 = sphi 0, %s274
      %s276 = sphi 0, %s274
      %s277 = sphi 0, %s276
      %s291 = sphi 0, %s277
      %s295 = sphi 0, %s295
      %s297 = sphi 0, %s295
      %s298 = sphi 0, %s297
      %s312 = sphi 0, %s298
      %s316 = sphi 0, %s316
      %s318 = sphi 0, %s316
      %s319 = sphi 0, %s318
      %s333 = sphi 0, %s319
      %s337 = sphi 0, %s337
      %s339 = sphi 0, %s337
      %s340 = sphi 0, %s339
      %s354 = sphi 0, %s340
      %s358 = sphi 0, %s358
      %s360 = sphi 0, %s358
      %s361 = sphi 0, %s360
      %s375 = sphi 0, %s361
      %s379 = sphi 0, %s379
      %s381 = sphi 0, %s379
      %s382 = sphi 0, %s381
      %s396 = sphi 0, %s382
      %s400 = sphi 0, %s400
      %s402 = sphi 0, %s400
      %s403 = sphi 0, %s402
      %s417 = sphi 0, %s403
      %s421 = sphi 0, %s421
      %s423 = sphi 0, %s421
      %s424 = sphi 0, %s423
      %s438 = sphi 0, %s424
      %s442 = sphi 0, %s442
      %s444 = sphi 0, %s442
      %s445 = sphi 0, %s444
      %s459 = sphi 0, %s445
      %s463 = sphi 0, %s463
      %s465 = sphi 0, %s463
      %s466 = sphi 0, %s465
      %s480 = sphi 0, %s466
      %s484 = sphi 0, %s484
      %s486 = sphi 0, %s484
      %s487 = sphi 0, %s486
      %s501 = sphi 0, %s487
      %s505 = sphi 0, %s505
      %s507 = sphi 0, %s505
      %s508 = sphi 0, %s507
      %s522 = sphi 0, %s508
      %s528 = sphi 0, %s530
      %s531 = sphi 0, %s528
      %s532 = sphi 0, %s531
      %s548 = sphi 0, %s532
    $region4: #{transformer_forward.1} parent=1 // loop_header_branch
      %33 = sbr.rel (%p31) target = $region8
    $region5: #{transformer_forward.1} parent=1 // loop_body
      %s35 = ssub.s32 %s30, 1
      %s36 = ssub.s32 %s30, 2
      %s37 = sadd.s32 %s30, 1
      %s38 = ssub.s32 %s30, %s37
      %p39 = scmp.eq.s32.totalorder %s38, 0
      %s41 = sadd.s32 %s40, 1
      %s42 = scalar_select %p39, %s40, %s41
      %p45 = pneg %p39
      %p46 = scmp.eq.s32.totalorder %s30, 1
      %p47 = por %p45, %p46
      %p48 = scmp.ne.s32.totalorder %s40, %s43
      %p49 = scmp.eq.s32.totalorder %s30, 0
      %p50 = por %p48, %p49
      %p51 = scmp.ne.s32.totalorder %s40, %s43
      %p52 = scmp.eq.s32.totalorder %s35, 1
      %p53 = por %p51, %p52
      %p54 = scmp.ne.s32.totalorder %s43, %s44
      %p55 = scmp.eq.s32.totalorder %s35, 0
      %p56 = por %p54, %p55
      %p57 = scmp.ne.s32.totalorder %s43, %s44
      %p58 = scmp.eq.s32.totalorder %s36, 1
      %p59 = por %p57, %p58
      %p61 = scmp.ne.s32.totalorder %s44, %s60
      %p62 = scmp.eq.s32.totalorder %s36, 0
      %p63 = por %p61, %p62
      %s65 = sadd.s32 %s64, 1
      %p68 = scmp.eq.s32.totalorder %s30, 1
      %p69 = scmp.ne.s32.totalorder %s64, %s66
      %p70 = scmp.eq.s32.totalorder %s30, 0
      %p71 = por %p69, %p70
      %p72 = scmp.ne.s32.totalorder %s64, %s66
      %p73 = scmp.eq.s32.totalorder %s35, 1
      %p74 = por %p72, %p73
      %p75 = scmp.ne.s32.totalorder %s66, %s67
      %p76 = scmp.eq.s32.totalorder %s35, 0
      %p77 = por %p75, %p76
      %p78 = scmp.ne.s32.totalorder %s66, %s67
      %p79 = scmp.eq.s32.totalorder %s36, 1
      %p80 = por %p78, %p79
      %p82 = scmp.ne.s32.totalorder %s67, %s81
      %p83 = scmp.eq.s32.totalorder %s36, 0
      %p84 = por %p82, %p83
      %s86 = sadd.s32 %s85, 1
      %p89 = scmp.eq.s32.totalorder %s30, 1
      %p90 = scmp.ne.s32.totalorder %s85, %s87
      %p91 = scmp.eq.s32.totalorder %s30, 0
      %p92 = por %p90, %p91
      %p93 = scmp.ne.s32.totalorder %s85, %s87
      %p94 = scmp.eq.s32.totalorder %s35, 1
      %p95 = por %p93, %p94
      %p96 = scmp.ne.s32.totalorder %s87, %s88
      %p97 = scmp.eq.s32.totalorder %s35, 0
      %p98 = por %p96, %p97
      %p99 = scmp.ne.s32.totalorder %s87, %s88
      %p100 = scmp.eq.s32.totalorder %s36, 1
      %p101 = por %p99, %p100
      %p103 = scmp.ne.s32.totalorder %s88, %s102
      %p104 = scmp.eq.s32.totalorder %s36, 0
      %p105 = por %p103, %p104
      %s107 = sadd.s32 %s106, 1
      %p110 = scmp.eq.s32.totalorder %s30, 1
      %p111 = scmp.ne.s32.totalorder %s106, %s108
      %p112 = scmp.eq.s32.totalorder %s30, 0
      %p113 = por %p111, %p112
      %p114 = scmp.ne.s32.totalorder %s106, %s108
      %p115 = scmp.eq.s32.totalorder %s35, 1
      %p116 = por %p114, %p115
      %p117 = scmp.ne.s32.totalorder %s108, %s109
      %p118 = scmp.eq.s32.totalorder %s35, 0
      %p119 = por %p117, %p118
      %p120 = scmp.ne.s32.totalorder %s108, %s109
      %p121 = scmp.eq.s32.totalorder %s36, 1
      %p122 = por %p120, %p121
      %p124 = scmp.ne.s32.totalorder %s109, %s123
      %p125 = scmp.eq.s32.totalorder %s36, 0
      %p126 = por %p124, %p125
      %s128 = sadd.s32 %s127, 1
      %p131 = scmp.eq.s32.totalorder %s30, 1
      %p132 = scmp.ne.s32.totalorder %s127, %s129
      %p133 = scmp.eq.s32.totalorder %s30, 0
      %p134 = por %p132, %p133
      %p135 = scmp.ne.s32.totalorder %s127, %s129
      %p136 = scmp.eq.s32.totalorder %s35, 1
      %p137 = por %p135, %p136
      %p138 = scmp.ne.s32.totalorder %s129, %s130
      %p139 = scmp.eq.s32.totalorder %s35, 0
      %p140 = por %p138, %p139
      %p141 = scmp.ne.s32.totalorder %s129, %s130
      %p142 = scmp.eq.s32.totalorder %s36, 1
      %p143 = por %p141, %p142
      %p145 = scmp.ne.s32.totalorder %s130, %s144
      %p146 = scmp.eq.s32.totalorder %s36, 0
      %p147 = por %p145, %p146
      %s149 = sadd.s32 %s148, 1
      %p152 = scmp.eq.s32.totalorder %s30, 1
      %p153 = scmp.ne.s32.totalorder %s148, %s150
      %p154 = scmp.eq.s32.totalorder %s30, 0
      %p155 = por %p153, %p154
      %p156 = scmp.ne.s32.totalorder %s148, %s150
      %p157 = scmp.eq.s32.totalorder %s35, 1
      %p158 = por %p156, %p157
      %p159 = scmp.ne.s32.totalorder %s150, %s151
      %p160 = scmp.eq.s32.totalorder %s35, 0
      %p161 = por %p159, %p160
      %p162 = scmp.ne.s32.totalorder %s150, %s151
      %p163 = scmp.eq.s32.totalorder %s36, 1
      %p164 = por %p162, %p163
      %p166 = scmp.ne.s32.totalorder %s151, %s165
      %p167 = scmp.eq.s32.totalorder %s36, 0
      %p168 = por %p166, %p167
      %s170 = sadd.s32 %s169, 1
      %p173 = scmp.eq.s32.totalorder %s30, 1
      %p174 = scmp.ne.s32.totalorder %s169, %s171
      %p175 = scmp.eq.s32.totalorder %s30, 0
      %p176 = por %p174, %p175
      %p177 = scmp.ne.s32.totalorder %s169, %s171
      %p178 = scmp.eq.s32.totalorder %s35, 1
      %p179 = por %p177, %p178
      %p180 = scmp.ne.s32.totalorder %s171, %s172
      %p181 = scmp.eq.s32.totalorder %s35, 0
      %p182 = por %p180, %p181
      %p183 = scmp.ne.s32.totalorder %s171, %s172
      %p184 = scmp.eq.s32.totalorder %s36, 1
      %p185 = por %p183, %p184
      %p187 = scmp.ne.s32.totalorder %s172, %s186
      %p188 = scmp.eq.s32.totalorder %s36, 0
      %p189 = por %p187, %p188
      %s191 = sadd.s32 %s190, 1
      %p194 = scmp.eq.s32.totalorder %s30, 1
      %p195 = scmp.ne.s32.totalorder %s190, %s192
      %p196 = scmp.eq.s32.totalorder %s30, 0
      %p197 = por %p195, %p196
      %p198 = scmp.ne.s32.totalorder %s190, %s192
      %p199 = scmp.eq.s32.totalorder %s35, 1
      %p200 = por %p198, %p199
      %p201 = scmp.ne.s32.totalorder %s192, %s193
      %p202 = scmp.eq.s32.totalorder %s35, 0
      %p203 = por %p201, %p202
      %p204 = scmp.ne.s32.totalorder %s192, %s193
      %p205 = scmp.eq.s32.totalorder %s36, 1
      %p206 = por %p204, %p205
      %p208 = scmp.ne.s32.totalorder %s193, %s207
      %p209 = scmp.eq.s32.totalorder %s36, 0
      %p210 = por %p208, %p209
      %s212 = sadd.s32 %s211, 1
      %p215 = scmp.eq.s32.totalorder %s30, 1
      %p216 = scmp.ne.s32.totalorder %s211, %s213
      %p217 = scmp.eq.s32.totalorder %s30, 0
      %p218 = por %p216, %p217
      %p219 = scmp.ne.s32.totalorder %s211, %s213
      %p220 = scmp.eq.s32.totalorder %s35, 1
      %p221 = por %p219, %p220
      %p222 = scmp.ne.s32.totalorder %s213, %s214
      %p223 = scmp.eq.s32.totalorder %s35, 0
      %p224 = por %p222, %p223
      %p225 = scmp.ne.s32.totalorder %s213, %s214
      %p226 = scmp.eq.s32.totalorder %s36, 1
      %p227 = por %p225, %p226
      %p229 = scmp.ne.s32.totalorder %s214, %s228
      %p230 = scmp.eq.s32.totalorder %s36, 0
      %p231 = por %p229, %p230
      %s233 = sadd.s32 %s232, 1
      %p236 = scmp.eq.s32.totalorder %s30, 1
      %p237 = scmp.ne.s32.totalorder %s232, %s234
      %p238 = scmp.eq.s32.totalorder %s30, 0
      %p239 = por %p237, %p238
      %p240 = scmp.ne.s32.totalorder %s232, %s234
      %p241 = scmp.eq.s32.totalorder %s35, 1
      %p242 = por %p240, %p241
      %p243 = scmp.ne.s32.totalorder %s234, %s235
      %p244 = scmp.eq.s32.totalorder %s35, 0
      %p245 = por %p243, %p244
      %p246 = scmp.ne.s32.totalorder %s234, %s235
      %p247 = scmp.eq.s32.totalorder %s36, 1
      %p248 = por %p246, %p247
      %p250 = scmp.ne.s32.totalorder %s235, %s249
      %p251 = scmp.eq.s32.totalorder %s36, 0
      %p252 = por %p250, %p251
      %s254 = sadd.s32 %s253, 1
      %p257 = scmp.eq.s32.totalorder %s30, 1
      %p258 = scmp.ne.s32.totalorder %s253, %s255
      %p259 = scmp.eq.s32.totalorder %s30, 0
      %p260 = por %p258, %p259
      %p261 = scmp.ne.s32.totalorder %s253, %s255
      %p262 = scmp.eq.s32.totalorder %s35, 1
      %p263 = por %p261, %p262
      %p264 = scmp.ne.s32.totalorder %s255, %s256
      %p265 = scmp.eq.s32.totalorder %s35, 0
      %p266 = por %p264, %p265
      %p267 = scmp.ne.s32.totalorder %s255, %s256
      %p268 = scmp.eq.s32.totalorder %s36, 1
      %p269 = por %p267, %p268
      %p271 = scmp.ne.s32.totalorder %s256, %s270
      %p272 = scmp.eq.s32.totalorder %s36, 0
      %p273 = por %p271, %p272
      %s275 = sadd.s32 %s274, 1
      %p278 = scmp.eq.s32.totalorder %s30, 1
      %p279 = scmp.ne.s32.totalorder %s274, %s276
      %p280 = scmp.eq.s32.totalorder %s30, 0
      %p281 = por %p279, %p280
      %p282 = scmp.ne.s32.totalorder %s274, %s276
      %p283 = scmp.eq.s32.totalorder %s35, 1
      %p284 = por %p282, %p283
      %p285 = scmp.ne.s32.totalorder %s276, %s277
      %p286 = scmp.eq.s32.totalorder %s35, 0
      %p287 = por %p285, %p286
      %p288 = scmp.ne.s32.totalorder %s276, %s277
      %p289 = scmp.eq.s32.totalorder %s36, 1
      %p290 = por %p288, %p289
      %p292 = scmp.ne.s32.totalorder %s277, %s291
      %p293 = scmp.eq.s32.totalorder %s36, 0
      %p294 = por %p292, %p293
      %s296 = sadd.s32 %s295, 1
      %p299 = scmp.eq.s32.totalorder %s30, 1
      %p300 = scmp.ne.s32.totalorder %s295, %s297
      %p301 = scmp.eq.s32.totalorder %s30, 0
      %p302 = por %p300, %p301
      %p303 = scmp.ne.s32.totalorder %s295, %s297
      %p304 = scmp.eq.s32.totalorder %s35, 1
      %p305 = por %p303, %p304
      %p306 = scmp.ne.s32.totalorder %s297, %s298
      %p307 = scmp.eq.s32.totalorder %s35, 0
      %p308 = por %p306, %p307
      %p309 = scmp.ne.s32.totalorder %s297, %s298
      %p310 = scmp.eq.s32.totalorder %s36, 1
      %p311 = por %p309, %p310
      %p313 = scmp.ne.s32.totalorder %s298, %s312
      %p314 = scmp.eq.s32.totalorder %s36, 0
      %p315 = por %p313, %p314
      %s317 = sadd.s32 %s316, 1
      %p320 = scmp.eq.s32.totalorder %s30, 1
      %p321 = scmp.ne.s32.totalorder %s316, %s318
      %p322 = scmp.eq.s32.totalorder %s30, 0
      %p323 = por %p321, %p322
      %p324 = scmp.ne.s32.totalorder %s316, %s318
      %p325 = scmp.eq.s32.totalorder %s35, 1
      %p326 = por %p324, %p325
      %p327 = scmp.ne.s32.totalorder %s318, %s319
      %p328 = scmp.eq.s32.totalorder %s35, 0
      %p329 = por %p327, %p328
      %p330 = scmp.ne.s32.totalorder %s318, %s319
      %p331 = scmp.eq.s32.totalorder %s36, 1
      %p332 = por %p330, %p331
      %p334 = scmp.ne.s32.totalorder %s319, %s333
      %p335 = scmp.eq.s32.totalorder %s36, 0
      %p336 = por %p334, %p335
      %s338 = sadd.s32 %s337, 1
      %p341 = scmp.eq.s32.totalorder %s30, 1
      %p342 = scmp.ne.s32.totalorder %s337, %s339
      %p343 = scmp.eq.s32.totalorder %s30, 0
      %p344 = por %p342, %p343
      %p345 = scmp.ne.s32.totalorder %s337, %s339
      %p346 = scmp.eq.s32.totalorder %s35, 1
      %p347 = por %p345, %p346
      %p348 = scmp.ne.s32.totalorder %s339, %s340
      %p349 = scmp.eq.s32.totalorder %s35, 0
      %p350 = por %p348, %p349
      %p351 = scmp.ne.s32.totalorder %s339, %s340
      %p352 = scmp.eq.s32.totalorder %s36, 1
      %p353 = por %p351, %p352
      %p355 = scmp.ne.s32.totalorder %s340, %s354
      %p356 = scmp.eq.s32.totalorder %s36, 0
      %p357 = por %p355, %p356
      %s359 = sadd.s32 %s358, 1
      %p362 = scmp.eq.s32.totalorder %s30, 1
      %p363 = scmp.ne.s32.totalorder %s358, %s360
      %p364 = scmp.eq.s32.totalorder %s30, 0
      %p365 = por %p363, %p364
      %p366 = scmp.ne.s32.totalorder %s358, %s360
      %p367 = scmp.eq.s32.totalorder %s35, 1
      %p368 = por %p366, %p367
      %p369 = scmp.ne.s32.totalorder %s360, %s361
      %p370 = scmp.eq.s32.totalorder %s35, 0
      %p371 = por %p369, %p370
      %p372 = scmp.ne.s32.totalorder %s360, %s361
      %p373 = scmp.eq.s32.totalorder %s36, 1
      %p374 = por %p372, %p373
      %p376 = scmp.ne.s32.totalorder %s361, %s375
      %p377 = scmp.eq.s32.totalorder %s36, 0
      %p378 = por %p376, %p377
      %s380 = sadd.s32 %s379, 1
      %p383 = scmp.eq.s32.totalorder %s30, 1
      %p384 = scmp.ne.s32.totalorder %s379, %s381
      %p385 = scmp.eq.s32.totalorder %s30, 0
      %p386 = por %p384, %p385
      %p387 = scmp.ne.s32.totalorder %s379, %s381
      %p388 = scmp.eq.s32.totalorder %s35, 1
      %p389 = por %p387, %p388
      %p390 = scmp.ne.s32.totalorder %s381, %s382
      %p391 = scmp.eq.s32.totalorder %s35, 0
      %p392 = por %p390, %p391
      %p393 = scmp.ne.s32.totalorder %s381, %s382
      %p394 = scmp.eq.s32.totalorder %s36, 1
      %p395 = por %p393, %p394
      %p397 = scmp.ne.s32.totalorder %s382, %s396
      %p398 = scmp.eq.s32.totalorder %s36, 0
      %p399 = por %p397, %p398
      %s401 = sadd.s32 %s400, 1
      %p404 = scmp.eq.s32.totalorder %s30, 1
      %p405 = scmp.ne.s32.totalorder %s400, %s402
      %p406 = scmp.eq.s32.totalorder %s30, 0
      %p407 = por %p405, %p406
      %p408 = scmp.ne.s32.totalorder %s400, %s402
      %p409 = scmp.eq.s32.totalorder %s35, 1
      %p410 = por %p408, %p409
      %p411 = scmp.ne.s32.totalorder %s402, %s403
      %p412 = scmp.eq.s32.totalorder %s35, 0
      %p413 = por %p411, %p412
      %p414 = scmp.ne.s32.totalorder %s402, %s403
      %p415 = scmp.eq.s32.totalorder %s36, 1
      %p416 = por %p414, %p415
      %p418 = scmp.ne.s32.totalorder %s403, %s417
      %p419 = scmp.eq.s32.totalorder %s36, 0
      %p420 = por %p418, %p419
      %s422 = sadd.s32 %s421, 1
      %p425 = scmp.eq.s32.totalorder %s30, 1
      %p426 = scmp.ne.s32.totalorder %s421, %s423
      %p427 = scmp.eq.s32.totalorder %s30, 0
      %p428 = por %p426, %p427
      %p429 = scmp.ne.s32.totalorder %s421, %s423
      %p430 = scmp.eq.s32.totalorder %s35, 1
      %p431 = por %p429, %p430
      %p432 = scmp.ne.s32.totalorder %s423, %s424
      %p433 = scmp.eq.s32.totalorder %s35, 0
      %p434 = por %p432, %p433
      %p435 = scmp.ne.s32.totalorder %s423, %s424
      %p436 = scmp.eq.s32.totalorder %s36, 1
      %p437 = por %p435, %p436
      %p439 = scmp.ne.s32.totalorder %s424, %s438
      %p440 = scmp.eq.s32.totalorder %s36, 0
      %p441 = por %p439, %p440
      %s443 = sadd.s32 %s442, 1
      %p446 = scmp.eq.s32.totalorder %s30, 1
      %p447 = scmp.ne.s32.totalorder %s442, %s444
      %p448 = scmp.eq.s32.totalorder %s30, 0
      %p449 = por %p447, %p448
      %p450 = scmp.ne.s32.totalorder %s442, %s444
      %p451 = scmp.eq.s32.totalorder %s35, 1
      %p452 = por %p450, %p451
      %p453 = scmp.ne.s32.totalorder %s444, %s445
      %p454 = scmp.eq.s32.totalorder %s35, 0
      %p455 = por %p453, %p454
      %p456 = scmp.ne.s32.totalorder %s444, %s445
      %p457 = scmp.eq.s32.totalorder %s36, 1
      %p458 = por %p456, %p457
      %p460 = scmp.ne.s32.totalorder %s445, %s459
      %p461 = scmp.eq.s32.totalorder %s36, 0
      %p462 = por %p460, %p461
      %s464 = sadd.s32 %s463, 1
      %p467 = scmp.eq.s32.totalorder %s30, 1
      %p468 = scmp.ne.s32.totalorder %s463, %s465
      %p469 = scmp.eq.s32.totalorder %s30, 0
      %p470 = por %p468, %p469
      %p471 = scmp.ne.s32.totalorder %s463, %s465
      %p472 = scmp.eq.s32.totalorder %s35, 1
      %p473 = por %p471, %p472
      %p474 = scmp.ne.s32.totalorder %s465, %s466
      %p475 = scmp.eq.s32.totalorder %s35, 0
      %p476 = por %p474, %p475
      %p477 = scmp.ne.s32.totalorder %s465, %s466
      %p478 = scmp.eq.s32.totalorder %s36, 1
      %p479 = por %p477, %p478
      %p481 = scmp.ne.s32.totalorder %s466, %s480
      %p482 = scmp.eq.s32.totalorder %s36, 0
      %p483 = por %p481, %p482
      %s485 = sadd.s32 %s484, 1
      %p488 = scmp.eq.s32.totalorder %s30, 1
      %p489 = scmp.ne.s32.totalorder %s484, %s486
      %p490 = scmp.eq.s32.totalorder %s30, 0
      %p491 = por %p489, %p490
      %p492 = scmp.ne.s32.totalorder %s484, %s486
      %p493 = scmp.eq.s32.totalorder %s35, 1
      %p494 = por %p492, %p493
      %p495 = scmp.ne.s32.totalorder %s486, %s487
      %p496 = scmp.eq.s32.totalorder %s35, 0
      %p497 = por %p495, %p496
      %p498 = scmp.ne.s32.totalorder %s486, %s487
      %p499 = scmp.eq.s32.totalorder %s36, 1
      %p500 = por %p498, %p499
      %p502 = scmp.ne.s32.totalorder %s487, %s501
      %p503 = scmp.eq.s32.totalorder %s36, 0
      %p504 = por %p502, %p503
      %s506 = sadd.s32 %s505, 1
      %p509 = scmp.eq.s32.totalorder %s30, 1
      %p510 = scmp.ne.s32.totalorder %s505, %s507
      %p511 = scmp.eq.s32.totalorder %s30, 0
      %p512 = por %p510, %p511
      %p513 = scmp.ne.s32.totalorder %s505, %s507
      %p514 = scmp.eq.s32.totalorder %s35, 1
      %p515 = por %p513, %p514
      %p516 = scmp.ne.s32.totalorder %s507, %s508
      %p517 = scmp.eq.s32.totalorder %s35, 0
      %p518 = por %p516, %p517
      %p519 = scmp.ne.s32.totalorder %s507, %s508
      %p520 = scmp.eq.s32.totalorder %s36, 1
      %p521 = por %p519, %p520
      %p523 = scmp.ne.s32.totalorder %s508, %s522
      %p524 = scmp.eq.s32.totalorder %s36, 0
      %p525 = por %p523, %p524
      %s526 = ssub.s32 %s30, %s37
      %p527 = scmp.eq.s32.totalorder %s526, 0
      %s529 = sadd.s32 %s528, 1
      %s530 = scalar_select %p527, %s528, %s529
      %p533 = pneg %p527
      %p534 = scmp.eq.s32.totalorder %s30, 1
      %p535 = por %p533, %p534
      %p536 = scmp.ne.s32.totalorder %s528, %s531
      %p537 = scmp.eq.s32.totalorder %s30, 0
      %p538 = por %p536, %p537
      %p539 = scmp.ne.s32.totalorder %s528, %s531
      %p540 = scmp.eq.s32.totalorder %s35, 1
      %p541 = por %p539, %p540
      %p542 = scmp.ne.s32.totalorder %s531, %s532
      %p543 = scmp.eq.s32.totalorder %s35, 0
      %p544 = por %p542, %p543
      %p545 = scmp.ne.s32.totalorder %s531, %s532
      %p546 = scmp.eq.s32.totalorder %s36, 1
      %p547 = por %p545, %p546
      %p549 = scmp.ne.s32.totalorder %s532, %s548
      %p550 = scmp.eq.s32.totalorder %s36, 0
      %p551 = por %p549, %p550
      %p552 = scmp.le.s32.totalorder 1, %s30
      %p553 = scmp.lt.s32.totalorder %s30, 3
      %p554 = pnand %p552, %p553
      %p555 = pneg %p554
      // Predicated region
      $region9: #{transformer_forward.1} parent=5 // pred_check
        _
      $region10: #{transformer_forward.1} parent=5 // pred_check_branch
        %557 = sbr.rel (%p554) target = $region12
      $region11: #{transformer_forward.1} parent=5 // pred_region
        %s558 = ssub.s32 %s30, 1
        // Predicated region
        $region13: #{transformer_forward.1} parent=11 // pred_check
          %p559 = pneg %p77
        $region14: #{transformer_forward.1} parent=11 // pred_check_branch
          %561 = sbr.rel (%p559) target = $region16
        $region15: #{transformer_forward.1} parent=11 // pred_region
          _
        $region16: #{transformer_forward.1} parent=11 // pred_fallthru
          _
        // Predicated region
        $region17: #{transformer_forward.1} parent=11 // pred_check
          %p562 = pneg %p98
        $region18: #{transformer_forward.1} parent=11 // pred_check_branch
          %564 = sbr.rel (%p562) target = $region20
        $region19: #{transformer_forward.1} parent=11 // pred_region
          _
        $region20: #{transformer_forward.1} parent=11 // pred_fallthru
          _
        // Predicated region
        $region21: #{transformer_forward.1} parent=11 // pred_check
          %p565 = pneg %p119
        $region22: #{transformer_forward.1} parent=11 // pred_check_branch
          %567 = sbr.rel (%p565) target = $region24
        $region23: #{transformer_forward.1} parent=11 // pred_region
          _
        $region24: #{transformer_forward.1} parent=11 // pred_fallthru
          _
        // Predicated region
        $region25: #{transformer_forward.1} parent=11 // pred_check
          %p568 = pneg %p140
        $region26: #{transformer_forward.1} parent=11 // pred_check_branch
          %570 = sbr.rel (%p568) target = $region28
        $region27: #{transformer_forward.1} parent=11 // pred_region
          _
        $region28: #{transformer_forward.1} parent=11 // pred_fallthru
          _
        // Predicated region
        $region29: #{transformer_forward.1} parent=11 // pred_check
          %p571 = pneg %p161
        $region30: #{transformer_forward.1} parent=11 // pred_check_branch
          %573 = sbr.rel (%p571) target = $region32
        $region31: #{transformer_forward.1} parent=11 // pred_region
          _
        $region32: #{transformer_forward.1} parent=11 // pred_fallthru
          _
        // Predicated region
        $region33: #{transformer_forward.1} parent=11 // pred_check
          %p574 = pneg %p182
        $region34: #{transformer_forward.1} parent=11 // pred_check_branch
          %576 = sbr.rel (%p574) target = $region36
        $region35: #{transformer_forward.1} parent=11 // pred_region
          _
        $region36: #{transformer_forward.1} parent=11 // pred_fallthru
          _
        // Predicated region
        $region37: #{transformer_forward.1} parent=11 // pred_check
          %p577 = pneg %p203
        $region38: #{transformer_forward.1} parent=11 // pred_check_branch
          %579 = sbr.rel (%p577) target = $region40
        $region39: #{transformer_forward.1} parent=11 // pred_region
          _
        $region40: #{transformer_forward.1} parent=11 // pred_fallthru
          _
        // Predicated region
        $region41: #{transformer_forward.1} parent=11 // pred_check
          %p580 = pneg %p224
        $region42: #{transformer_forward.1} parent=11 // pred_check_branch
          %582 = sbr.rel (%p580) target = $region44
        $region43: #{transformer_forward.1} parent=11 // pred_region
          _
        $region44: #{transformer_forward.1} parent=11 // pred_fallthru
          _
        // Predicated region
        $region45: #{transformer_forward.1} parent=11 // pred_check
          %p583 = pneg %p245
        $region46: #{transformer_forward.1} parent=11 // pred_check_branch
          %585 = sbr.rel (%p583) target = $region48
        $region47: #{transformer_forward.1} parent=11 // pred_region
          _
        $region48: #{transformer_forward.1} parent=11 // pred_fallthru
          _
        // Predicated region
        $region49: #{transformer_forward.1} parent=11 // pred_check
          %p586 = pneg %p266
        $region50: #{transformer_forward.1} parent=11 // pred_check_branch
          %588 = sbr.rel (%p586) target = $region52
        $region51: #{transformer_forward.1} parent=11 // pred_region
          _
        $region52: #{transformer_forward.1} parent=11 // pred_fallthru
          _
        // Predicated region
        $region53: #{transformer_forward.1} parent=11 // pred_check
          %p589 = pneg %p287
        $region54: #{transformer_forward.1} parent=11 // pred_check_branch
          %591 = sbr.rel (%p589) target = $region56
        $region55: #{transformer_forward.1} parent=11 // pred_region
          _
        $region56: #{transformer_forward.1} parent=11 // pred_fallthru
          _
        // Predicated region
        $region57: #{transformer_forward.1} parent=11 // pred_check
          %p592 = pneg %p308
        $region58: #{transformer_forward.1} parent=11 // pred_check_branch
          %594 = sbr.rel (%p592) target = $region60
        $region59: #{transformer_forward.1} parent=11 // pred_region
          _
        $region60: #{transformer_forward.1} parent=11 // pred_fallthru
          _
        // Predicated region
        $region61: #{transformer_forward.1} parent=11 // pred_check
          %p595 = pneg %p329
        $region62: #{transformer_forward.1} parent=11 // pred_check_branch
          %597 = sbr.rel (%p595) target = $region64
        $region63: #{transformer_forward.1} parent=11 // pred_region
          _
        $region64: #{transformer_forward.1} parent=11 // pred_fallthru
          _
        // Predicated region
        $region65: #{transformer_forward.1} parent=11 // pred_check
          %p598 = pneg %p350
        $region66: #{transformer_forward.1} parent=11 // pred_check_branch
          %600 = sbr.rel (%p598) target = $region68
        $region67: #{transformer_forward.1} parent=11 // pred_region
          _
        $region68: #{transformer_forward.1} parent=11 // pred_fallthru
          _
        // Predicated region
        $region69: #{transformer_forward.1} parent=11 // pred_check
          %p601 = pneg %p371
        $region70: #{transformer_forward.1} parent=11 // pred_check_branch
          %603 = sbr.rel (%p601) target = $region72
        $region71: #{transformer_forward.1} parent=11 // pred_region
          _
        $region72: #{transformer_forward.1} parent=11 // pred_fallthru
          _
        // Predicated region
        $region73: #{transformer_forward.1} parent=11 // pred_check
          %p604 = pneg %p392
        $region74: #{transformer_forward.1} parent=11 // pred_check_branch
          %606 = sbr.rel (%p604) target = $region76
        $region75: #{transformer_forward.1} parent=11 // pred_region
          _
        $region76: #{transformer_forward.1} parent=11 // pred_fallthru
          _
        // Predicated region
        $region77: #{transformer_forward.1} parent=11 // pred_check
          %p607 = pneg %p413
        $region78: #{transformer_forward.1} parent=11 // pred_check_branch
          %609 = sbr.rel (%p607) target = $region80
        $region79: #{transformer_forward.1} parent=11 // pred_region
          _
        $region80: #{transformer_forward.1} parent=11 // pred_fallthru
          _
        // Predicated region
        $region81: #{transformer_forward.1} parent=11 // pred_check
          %p610 = pneg %p434
        $region82: #{transformer_forward.1} parent=11 // pred_check_branch
          %612 = sbr.rel (%p610) target = $region84
        $region83: #{transformer_forward.1} parent=11 // pred_region
          %614 = vsyncadd [#allocation3], 0
          %s615 = sshll.u32 %s18, 4
          %s616 = int_to_ptr.hbm [resolvable:$true] %s615
          %s617 = sshll.u32 [#allocation2], 4
          %s618 = int_to_ptr.vmem [resolvable:$true] %s617
          %623 = dma.hbm_to_vmem [thread:$0]  %s616, 4096, %s618, [#allocation3], 64, 64, 4
        $region84: #{transformer_forward.1} parent=11 // pred_fallthru
          _
        // Predicated region
        $region85: #{transformer_forward.1} parent=11 // pred_check
          %p624 = pneg %p455
        $region86: #{transformer_forward.1} parent=11 // pred_check_branch
          %626 = sbr.rel (%p624) target = $region88
        $region87: #{transformer_forward.1} parent=11 // pred_region
          _
        $region88: #{transformer_forward.1} parent=11 // pred_fallthru
          _
        // Predicated region
        $region89: #{transformer_forward.1} parent=11 // pred_check
          %p627 = pneg %p476
        $region90: #{transformer_forward.1} parent=11 // pred_check_branch
          %629 = sbr.rel (%p627) target = $region92
        $region91: #{transformer_forward.1} parent=11 // pred_region
          _
        $region92: #{transformer_forward.1} parent=11 // pred_fallthru
          _
        // Predicated region
        $region93: #{transformer_forward.1} parent=11 // pred_check
          %p630 = pneg %p497
        $region94: #{transformer_forward.1} parent=11 // pred_check_branch
          %632 = sbr.rel (%p630) target = $region96
        $region95: #{transformer_forward.1} parent=11 // pred_region
          _
        $region96: #{transformer_forward.1} parent=11 // pred_fallthru
          _
        // Predicated region
        $region97: #{transformer_forward.1} parent=11 // pred_check
          %p633 = pneg %p518
        $region98: #{transformer_forward.1} parent=11 // pred_check_branch
          %635 = sbr.rel (%p633) target = $region100
        $region99: #{transformer_forward.1} parent=11 // pred_region
          _
        $region100: #{transformer_forward.1} parent=11 // pred_fallthru
          _
      $region12: #{transformer_forward.1} parent=5 // pred_fallthru
        _
      %p636 = scmp.lt.s32.totalorder %s30, 2
      // Predicated region
      $region101: #{transformer_forward.1} parent=5 // pred_check
        %p637 = pneg %p636
      $region102: #{transformer_forward.1} parent=5 // pred_check_branch
        %639 = sbr.rel (%p637) target = $region104
      $region103: #{transformer_forward.1} parent=5 // pred_region
        // Predicated region
        $region105: #{transformer_forward.1} parent=103 // pred_check
          %p640 = pneg %p50
        $region106: #{transformer_forward.1} parent=103 // pred_check_branch
          %642 = sbr.rel (%p640) target = $region108
        $region107: #{transformer_forward.1} parent=103 // pred_region
          %p643 = scmp.lt.s32.totalorder %s30, 1
          %s644 = scalar_select %p643, %s30, 1
          %s645 = smul.addr %s644, 4
          %s646 = smul.addr %s645, 4
          %s647 = scalar_lea.vmem %s0, %s646
        $region108: #{transformer_forward.1} parent=103 // pred_fallthru
          _
      $region104: #{transformer_forward.1} parent=5 // pred_fallthru
        _
      %p648 = scmp.le.s32.totalorder 1, %s30
      %p649 = scmp.lt.s32.totalorder %s30, 3
      %p650 = pnand %p648, %p649
      %p651 = pneg %p650
      // Predicated region
      $region109: #{transformer_forward.1} parent=5 // pred_check
        _
      $region110: #{transformer_forward.1} parent=5 // pred_check_branch
        %653 = sbr.rel (%p650) target = $region112
      $region111: #{transformer_forward.1} parent=5 // pred_region
        %s654 = ssub.s32 %s30, 1
        // Predicated region
        $region113: #{transformer_forward.1} parent=111 // pred_check
          %p655 = pneg %p434
        $region114: #{transformer_forward.1} parent=111 // pred_check_branch
          %657 = sbr.rel (%p655) target = $region116
        $region115: #{transformer_forward.1} parent=111 // pred_region
          %659 = dma.done [#allocation3], 4096
        $region116: #{transformer_forward.1} parent=111 // pred_fallthru
          _
        %p660 = scmp.lt.s32.totalorder %s35, 1
        %s661 = scalar_select %p660, %s35, 1
        %s662 = smul.addr %s661, 4
        %s663 = smul.addr %s662, 4
        %s664 = scalar_lea.vmem %s0, %s663
        %p665 = pneg %p56
        %p666 = pneg %p53
        %p667 = pneg %p77
        %p668 = pneg %p74
        %p669 = pneg %p98
        %p670 = pneg %p95
        %p671 = pneg %p119
        %p672 = pneg %p116
        %p673 = pneg %p140
        %p674 = pneg %p137
        %p675 = pneg %p161
        %p676 = pneg %p158
        %p677 = pneg %p182
        %p678 = pneg %p179
        %p679 = pneg %p203
        %p680 = pneg %p200
        %p681 = pneg %p224
        %p682 = pneg %p221
        %p683 = pneg %p245
        %p684 = pneg %p242
        %p685 = pneg %p266
        %p686 = pneg %p263
        %p687 = pneg %p287
        %p688 = pneg %p284
        %p689 = pneg %p308
        %p690 = pneg %p305
        %p691 = pneg %p329
        %p692 = pneg %p326
        %p693 = pneg %p350
        %p694 = pneg %p347
        %p695 = pneg %p371
        %p696 = pneg %p368
        %p697 = pneg %p392
        %p698 = pneg %p389
        %p699 = pneg %p413
        %p700 = pneg %p410
        %p701 = pneg %p434
        %p702 = pneg %p431
        %p703 = pneg %p455
        %p704 = pneg %p452
        %p705 = pneg %p476
        %p706 = pneg %p473
        %p707 = pneg %p497
        %p708 = pneg %p494
        %p709 = pneg %p518
        %p710 = pneg %p515
        %p711 = pneg %p544
        %p712 = pneg %p541
        %p713 = scmp.lt.s32.totalorder %s35, 1
        %s714 = scalar_select %p713, %s35, 1
        %s715 = smul.addr %s714, 4
        %s716 = scalar_lea.vmem %s23, %s715
        %p717 = scmp.lt.s32.totalorder %s35, 1
        %s718 = scalar_select %p717, %s35, 1
        %s719 = smul.addr %s718, 4
        %s720 = smul.addr %s719, 4
        %s721 = scalar_lea.vmem %s0, %s720
        %p722 = scmp.lt.s32.totalorder %s35, 1
        %s723 = scalar_select %p722, %s35, 1
        %s724 = smul.addr %s723, 4
        %s725 = scalar_lea.vmem %s23, %s724
        %v727 = vld [vmem:[%s22] sm:$0xff]
        %v728 = vld [vmem:[%s21] sm:$0xff]
        %v729 = vld [vmem:[%s21 + $0x8] sm:$0xff]
        %v730 = vld [vmem:[%s21 + $0x10] sm:$0xff]
        %v731 = vld [vmem:[%s21 + $0x18] sm:$0xff]
        %v732 = vld [vmem:[%s21 + $0x20] sm:$0xff]
        %v733 = vld [vmem:[%s21 + $0x28] sm:$0xff]
        %v734 = vld [vmem:[%s21 + $0x30] sm:$0xff]
        %v735 = vld [vmem:[%s21 + $0x38] sm:$0xff]
        %v736 = vld [vmem:[%s20] sm:$0x1]
        %v737 = vld [vmem:[%s20 + $0x1] sm:$0x1]
        %v738 = vld [vmem:[%s721] sm:$0xf]
        %v739 = vld [vmem:[%s721 + $0x4] sm:$0xf]
        %v740 = vld [vmem:[%s721 + $0x8] sm:$0xf]
        %v741 = vld [vmem:[%s721 + $0xc] sm:$0xf]
        %v742 = vld [vmem:[%s1] sm:$0xf]
        %v743 = vld [vmem:[%s1 + $0x4] sm:$0xf]
        %v744 = vld [vmem:[%s1 + $0x8] sm:$0xf]
        %v745 = vld [vmem:[%s1 + $0xc] sm:$0xf]
        %v746 = vld [vmem:[%s1 + $0x10] sm:$0xf]
        %v747 = vld [vmem:[%s1 + $0x14] sm:$0xf]
        %v748 = vld [vmem:[%s1 + $0x18] sm:$0xf]
        %v749 = vld [vmem:[%s1 + $0x1c] sm:$0xf]
        %v750 = vld [vmem:[%s1 + $0x20] sm:$0xf]
        %v751 = vld [vmem:[%s1 + $0x24] sm:$0xf]
        %v752 = vld [vmem:[%s1 + $0x28] sm:$0xf]
        %v753 = vld [vmem:[%s1 + $0x2c] sm:$0xf]
        %v754 = vld [vmem:[%s1 + $0x30] sm:$0xf]
        %v755 = vld [vmem:[%s1 + $0x34] sm:$0xf]
        %v756 = vld [vmem:[%s1 + $0x38] sm:$0xf]
        %v757 = vld [vmem:[%s1 + $0x3c] sm:$0xf]
        %v758 = vld [vmem:[%s2] sm:$0x1]
        %v760 = vperm.slane %v758, 0
        %v766 = vunpack.c.l.b16 %v738
        %v767 = vunpack.c.l.b16 %v739
        %v768 = vunpack.c.l.b16 %v740
        %v769 = vunpack.c.l.b16 %v741
        %v770 = vpack.c.b16 %v767, %v766
        %v771 = vpack.c.b16 %v769, %v768
        %v790 = vunpack.c.l.b16 %v742
        %v791 = vunpack.c.l.b16 %v743
        %v792 = vunpack.c.l.b16 %v744
        %v793 = vunpack.c.l.b16 %v745
        %v794 = vunpack.c.l.b16 %v746
        %v795 = vunpack.c.l.b16 %v747
        %v796 = vunpack.c.l.b16 %v748
        %v797 = vunpack.c.l.b16 %v749
        %v798 = vunpack.c.l.b16 %v750
        %v799 = vunpack.c.l.b16 %v751
        %v800 = vunpack.c.l.b16 %v752
        %v801 = vunpack.c.l.b16 %v753
        %v802 = vunpack.c.l.b16 %v754
        %v803 = vunpack.c.l.b16 %v755
        %v804 = vunpack.c.l.b16 %v756
        %v805 = vunpack.c.l.b16 %v757
        %v806 = vpack.c.b16 %v791, %v790
        %v807 = vpack.c.b16 %v793, %v792
        %v808 = vpack.c.b16 %v795, %v794
        %v809 = vpack.c.b16 %v797, %v796
        %v810 = vpack.c.b16 %v799, %v798
        %v811 = vpack.c.b16 %v801, %v800
        %v812 = vpack.c.b16 %v803, %v802
        %v813 = vpack.c.b16 %v805, %v804
        %822 = vmatpush.bf16.msra.mxu0 %v813
        %823 = vmatpush.bf16.msra.mxu0 %v812
        %824 = vmatpush.bf16.msra.mxu0 %v811
        %825 = vmatpush.bf16.msra.mxu0 %v810
        %826 = vmatpush.bf16.msra.mxu0 %v809
        %827 = vmatpush.bf16.msra.mxu0 %v808
        %828 = vmatpush.bf16.msra.mxu0 %v807
        %829 = vmatpush.bf16.msra.mxu0 %v806
        %830 = vmatmul.bf16.gmra.mxu0 %v770
        %v831 = vpop.f32.mrf.mxu0
        %v832 = vadd.f32 %v760, %v831
        %v833 = vpop.f32.mrf.mxu0
        %v834 = vadd.f32 %v760, %v833
        %835 = vmatmul.bf16.gmra.mxu0 %v771
        %v836 = vpop.f32.mrf.mxu0
        %v837 = vadd.f32 %v760, %v836
        %v838 = vpop.f32.mrf.mxu0
        %v839 = vadd.f32 %v760, %v838
        %840 = vdwg.mxu0
        loop: start=0, step=1, limit=2
        $region117: #{transformer_forward.1} parent=111 // loop_pre_header
          _
        $region118: #{transformer_forward.1} parent=111 // loop_header
          %s842 = sphi 0, %s846
          %p843 = scmp.ge.s32.totalorder %s842, 2
          %v847 = vphi %v832, %v2312
          %v848 = vphi %v834, %v2313
          %v849 = vphi %v837, %v2314
          %v850 = vphi %v839, %v2315
        $region119: #{transformer_forward.1} parent=111 // loop_header_branch
          %845 = sbr.rel (%p843) target = $region123
        $region120: #{transformer_forward.1} parent=111 // loop_body
          %v851 = vpack.c.bf16 %v848, %v847
          %v852 = vpack.c.bf16 %v850, %v849
          %s853 = smul.u32 %s842, 8
          %s854 = smul.addr %s853, 4
          %s855 = scalar_lea.vmem %s3, %s854
          %v856 = vld [vmem:[%s855] sm:$0xf]
          %v857 = vld [vmem:[%s855 + $0x4] sm:$0xf]
          %v858 = vld [vmem:[%s855 + $0x8] sm:$0xf]
          %v859 = vld [vmem:[%s855 + $0xc] sm:$0xf]
          %v860 = vld [vmem:[%s855 + $0x10] sm:$0xf]
          %v861 = vld [vmem:[%s855 + $0x14] sm:$0xf]
          %v862 = vld [vmem:[%s855 + $0x18] sm:$0xf]
          %v863 = vld [vmem:[%s855 + $0x1c] sm:$0xf]
          %s864 = scalar_lea.vmem %s4, %s842
          %v865 = vld [vmem:[%s864] sm:$0x1]
          %v867 = vperm.slane %v865, 0
          %v877 = vunpack.c.l.b16 %v856
          %v878 = vunpack.c.l.b16 %v857
          %v879 = vunpack.c.l.b16 %v858
          %v880 = vunpack.c.l.b16 %v859
          %v881 = vunpack.c.l.b16 %v860
          %v882 = vunpack.c.l.b16 %v861
          %v883 = vunpack.c.l.b16 %v862
          %v884 = vunpack.c.l.b16 %v863
          %v885 = vpack.c.b16 %v878, %v877
          %v886 = vpack.c.b16 %v880, %v879
          %v887 = vpack.c.b16 %v882, %v881
          %v888 = vpack.c.b16 %v884, %v883
          %vm893 = vcmask 523264
          %v895 = vsel %vm893, %v851, 0
          %v898 = vsel %vm893, %v852, 0
          %900 = vmatpush.bf16.msra.mxu0 0
          %901 = vmatpush.bf16.msra.mxu0 0
          %902 = vmatpush.bf16.msra.mxu0 0
          %903 = vmatpush.bf16.msra.mxu0 0
          %904 = vmatpush.bf16.msra.mxu0 %v888
          %905 = vmatpush.bf16.msra.mxu0 %v887
          %906 = vmatpush.bf16.msra.mxu0 %v886
          %907 = vmatpush.bf16.msra.mxu0 %v885
          %908 = vmatmul.bf16.gmra.mxu0 %v895
          %v909 = vpop.f32.mrf.mxu0
          %v910 = vadd.f32 %v867, %v909
          %v911 = vpop.f32.mrf.mxu0
          %v912 = vadd.f32 %v867, %v911
          %913 = vmatmul.bf16.gmra.mxu0 %v898
          %v914 = vpop.f32.mrf.mxu0
          %v915 = vadd.f32 %v867, %v914
          %v916 = vpop.f32.mrf.mxu0
          %v917 = vadd.f32 %v867, %v916
          %918 = vdwg.mxu0
          %s919 = smul.addr %s853, 4
          %s920 = scalar_lea.vmem %s5, %s919
          %v921 = vld [vmem:[%s920] sm:$0xf]
          %v922 = vld [vmem:[%s920 + $0x4] sm:$0xf]
          %v923 = vld [vmem:[%s920 + $0x8] sm:$0xf]
          %v924 = vld [vmem:[%s920 + $0xc] sm:$0xf]
          %v925 = vld [vmem:[%s920 + $0x10] sm:$0xf]
          %v926 = vld [vmem:[%s920 + $0x14] sm:$0xf]
          %v927 = vld [vmem:[%s920 + $0x18] sm:$0xf]
          %v928 = vld [vmem:[%s920 + $0x1c] sm:$0xf]
          %s929 = scalar_lea.vmem %s6, %s842
          %v930 = vld [vmem:[%s929] sm:$0x1]
          %v932 = vperm.slane %v930, 0
          %v942 = vunpack.c.l.b16 %v921
          %v943 = vunpack.c.l.b16 %v922
          %v944 = vunpack.c.l.b16 %v923
          %v945 = vunpack.c.l.b16 %v924
          %v946 = vunpack.c.l.b16 %v925
          %v947 = vunpack.c.l.b16 %v926
          %v948 = vunpack.c.l.b16 %v927
          %v949 = vunpack.c.l.b16 %v928
          %v950 = vpack.c.b16 %v943, %v942
          %v951 = vpack.c.b16 %v945, %v944
          %v952 = vpack.c.b16 %v947, %v946
          %v953 = vpack.c.b16 %v949, %v948
          %958 = vmatpush.bf16.msra.mxu0 0
          %959 = vmatpush.bf16.msra.mxu0 0
          %960 = vmatpush.bf16.msra.mxu0 0
          %961 = vmatpush.bf16.msra.mxu0 0
          %962 = vmatpush.bf16.msra.mxu0 %v953
          %963 = vmatpush.bf16.msra.mxu0 %v952
          %964 = vmatpush.bf16.msra.mxu0 %v951
          %965 = vmatpush.bf16.msra.mxu0 %v950
          %966 = vmatmul.bf16.gmra.mxu0 %v895
          %v967 = vpop.f32.mrf.mxu0
          %v968 = vadd.f32 %v932, %v967
          %v969 = vpop.f32.mrf.mxu0
          %v970 = vadd.f32 %v932, %v969
          %971 = vmatmul.bf16.gmra.mxu0 %v898
          %v972 = vpop.f32.mrf.mxu0
          %v973 = vadd.f32 %v932, %v972
          %v974 = vpop.f32.mrf.mxu0
          %v975 = vadd.f32 %v932, %v974
          %976 = vdwg.mxu0
          %s977 = smul.addr %s853, 4
          %s978 = scalar_lea.vmem %s7, %s977
          %v979 = vld [vmem:[%s978] sm:$0xf]
          %v980 = vld [vmem:[%s978 + $0x4] sm:$0xf]
          %v981 = vld [vmem:[%s978 + $0x8] sm:$0xf]
          %v982 = vld [vmem:[%s978 + $0xc] sm:$0xf]
          %v983 = vld [vmem:[%s978 + $0x10] sm:$0xf]
          %v984 = vld [vmem:[%s978 + $0x14] sm:$0xf]
          %v985 = vld [vmem:[%s978 + $0x18] sm:$0xf]
          %v986 = vld [vmem:[%s978 + $0x1c] sm:$0xf]
          %s987 = scalar_lea.vmem %s8, %s842
          %v988 = vld [vmem:[%s987] sm:$0x1]
          %v990 = vperm.slane %v988, 0
          %v1000 = vunpack.c.l.b16 %v979
          %v1001 = vunpack.c.l.b16 %v980
          %v1002 = vunpack.c.l.b16 %v981
          %v1003 = vunpack.c.l.b16 %v982
          %v1004 = vunpack.c.l.b16 %v983
          %v1005 = vunpack.c.l.b16 %v984
          %v1006 = vunpack.c.l.b16 %v985
          %v1007 = vunpack.c.l.b16 %v986
          %v1008 = vpack.c.b16 %v1001, %v1000
          %v1009 = vpack.c.b16 %v1003, %v1002
          %v1010 = vpack.c.b16 %v1005, %v1004
          %v1011 = vpack.c.b16 %v1007, %v1006
          %1016 = vmatpush.bf16.msra.mxu0 0
          %1017 = vmatpush.bf16.msra.mxu0 0
          %1018 = vmatpush.bf16.msra.mxu0 0
          %1019 = vmatpush.bf16.msra.mxu0 0
          %1020 = vmatpush.bf16.msra.mxu0 %v1011
          %1021 = vmatpush.bf16.msra.mxu0 %v1010
          %1022 = vmatpush.bf16.msra.mxu0 %v1009
          %1023 = vmatpush.bf16.msra.mxu0 %v1008
          %1024 = vmatmul.bf16.gmra.mxu0 %v895
          %v1025 = vpop.f32.mrf.mxu0
          %v1026 = vadd.f32 %v990, %v1025
          %v1027 = vpop.f32.mrf.mxu0
          %v1028 = vadd.f32 %v990, %v1027
          %1029 = vmatmul.bf16.gmra.mxu0 %v898
          %v1030 = vpop.f32.mrf.mxu0
          %v1031 = vadd.f32 %v990, %v1030
          %v1032 = vpop.f32.mrf.mxu0
          %v1033 = vadd.f32 %v990, %v1032
          %1034 = vdwg.mxu0
          %v1035 = vpack.c.bf16 %v912, %v910
          %v1036 = vpack.c.bf16 %v917, %v915
          %v1037 = vpack.c.bf16 %v968, %v968
          %v1038 = vpack.c.bf16 %v970, %v970
          %v1039 = vpack.c.bf16 %v973, %v973
          %v1040 = vpack.c.bf16 %v975, %v975
          %v1041 = vpack.c.bf16 %v1026, %v1026
          %v1042 = vpack.c.bf16 %v1028, %v1028
          %v1043 = vpack.c.bf16 %v1031, %v1031
          %v1044 = vpack.c.bf16 %v1033, %v1033
          %v1046 = vperm.slane %v736, 0
          %v1048 = vmul.f32 %v910, %v1046
          %v1049 = vmul.f32 %v912, %v1046
          %v1050 = vmul.f32 %v915, %v1046
          %v1051 = vmul.f32 %v917, %v1046
          %v1052 = vpack.c.bf16 %v1048, %v1048
          %v1053 = vpack.c.bf16 %v1049, %v1049
          %v1054 = vpack.c.bf16 %v1050, %v1050
          %v1055 = vpack.c.bf16 %v1051, %v1051
          %s1056 = smul.u32 %s842, 16
          %s1057 = smul.addr %s1056, 4
          %s1058 = scalar_lea.vmem %s9, %s1057
          %v1059 = vld [vmem:[%s1058] sm:$0xf]
          %v1060 = vld [vmem:[%s1058 + $0x4] sm:$0xf]
          %v1061 = vld [vmem:[%s1058 + $0x8] sm:$0xf]
          %v1062 = vld [vmem:[%s1058 + $0xc] sm:$0xf]
          %v1063 = vld [vmem:[%s1058 + $0x10] sm:$0xf]
          %v1064 = vld [vmem:[%s1058 + $0x14] sm:$0xf]
          %v1065 = vld [vmem:[%s1058 + $0x18] sm:$0xf]
          %v1066 = vld [vmem:[%s1058 + $0x1c] sm:$0xf]
          %v1075 = vunpack.c.l.b16 %v1059
          %v1076 = vunpack.c.l.b16 %v1060
          %v1077 = vunpack.c.l.b16 %v1061
          %v1078 = vunpack.c.l.b16 %v1062
          %v1079 = vunpack.c.l.b16 %v1063
          %v1080 = vunpack.c.l.b16 %v1064
          %v1081 = vunpack.c.l.b16 %v1065
          %v1082 = vunpack.c.l.b16 %v1066
          %v1083 = vpack.c.b16 %v1076, %v1075
          %v1084 = vpack.c.b16 %v1078, %v1077
          %v1085 = vpack.c.b16 %v1080, %v1079
          %v1086 = vpack.c.b16 %v1082, %v1081
          %v1092 = vsel %vm893, %v1035, 0
          %v1095 = vsel %vm893, %v1036, 0
          %1097 = vmatpush.bf16.msra.mxu0 0
          %1098 = vmatpush.bf16.msra.mxu0 0
          %1099 = vmatpush.bf16.msra.mxu0 0
          %1100 = vmatpush.bf16.msra.mxu0 0
          %1101 = vmatpush.bf16.msra.mxu0 %v1086
          %1102 = vmatpush.bf16.msra.mxu0 %v1085
          %1103 = vmatpush.bf16.msra.mxu0 %v1084
          %1104 = vmatpush.bf16.msra.mxu0 %v1083
          %1105 = vmatmul.bf16.gmra.mxu0 %v1092
          %v1106 = vpop.f32.mrf.mxu0
          %v1107 = vadd.f32 0.0, %v1106
          %v1108 = vpop.f32.mrf.mxu0
          %v1109 = vadd.f32 0.0, %v1108
          %1110 = vmatmul.bf16.gmra.mxu0 %v1095
          %v1111 = vpop.f32.mrf.mxu0
          %v1112 = vadd.f32 0.0, %v1111
          %v1113 = vpop.f32.mrf.mxu0
          %v1114 = vadd.f32 0.0, %v1113
          %1115 = vdwg.mxu0
          %1117 = vset.pattern.permute.xlu0 0
          %1118 = vperm.xlu0 %1117, %v1107
          %v1119 = vpop.permute.xlu0 %1118
          %1122 = vset.pattern.permute.xlu0 0
          %1123 = vperm.xlu0 %1122, %v1109
          %v1124 = vpop.permute.xlu0 %1123
          %1127 = vset.pattern.permute.xlu0 0
          %1128 = vperm.xlu0 %1127, %v1112
          %v1129 = vpop.permute.xlu0 %1128
          %1132 = vset.pattern.permute.xlu0 0
          %1133 = vperm.xlu0 %1132, %v1114
          %v1134 = vpop.permute.xlu0 %1133
          %v1136 = vmul.f32 %v1119, %v728
          %v1137 = vmul.f32 %v1124, %v728
          %v1138 = vmul.f32 %v1129, %v728
          %v1139 = vmul.f32 %v1134, %v728
          %1140 = vset.pattern.permute.xlu0 1
          %1141 = vperm.xlu0 %1140, %v1107
          %v1142 = vpop.permute.xlu0 %1141
          %1144 = vset.pattern.permute.xlu0 1
          %1145 = vperm.xlu0 %1144, %v1109
          %v1146 = vpop.permute.xlu0 %1145
          %1148 = vset.pattern.permute.xlu0 1
          %1149 = vperm.xlu0 %1148, %v1112
          %v1150 = vpop.permute.xlu0 %1149
          %1152 = vset.pattern.permute.xlu0 1
          %1153 = vperm.xlu0 %1152, %v1114
          %v1154 = vpop.permute.xlu0 %1153
          %v1156 = vmul.f32 %v1142, %v729
          %v1157 = vmul.f32 %v1146, %v729
          %v1158 = vmul.f32 %v1150, %v729
          %v1159 = vmul.f32 %v1154, %v729
          %v1160 = vadd.f32 %v1136, %v1156
          %v1161 = vadd.f32 %v1137, %v1157
          %v1162 = vadd.f32 %v1138, %v1158
          %v1163 = vadd.f32 %v1139, %v1159
          %1164 = vset.pattern.permute.xlu0 2
          %1165 = vperm.xlu0 %1164, %v1107
          %v1166 = vpop.permute.xlu0 %1165
          %1168 = vset.pattern.permute.xlu0 2
          %1169 = vperm.xlu0 %1168, %v1109
          %v1170 = vpop.permute.xlu0 %1169
          %1172 = vset.pattern.permute.xlu0 2
          %1173 = vperm.xlu0 %1172, %v1112
          %v1174 = vpop.permute.xlu0 %1173
          %1176 = vset.pattern.permute.xlu0 2
          %1177 = vperm.xlu0 %1176, %v1114
          %v1178 = vpop.permute.xlu0 %1177
          %v1180 = vmul.f32 %v1166, %v730
          %v1181 = vmul.f32 %v1170, %v730
          %v1182 = vmul.f32 %v1174, %v730
          %v1183 = vmul.f32 %v1178, %v730
          %v1184 = vadd.f32 %v1160, %v1180
          %v1185 = vadd.f32 %v1161, %v1181
          %v1186 = vadd.f32 %v1162, %v1182
          %v1187 = vadd.f32 %v1163, %v1183
          %1188 = vset.pattern.permute.xlu0 3
          %1189 = vperm.xlu0 %1188, %v1107
          %v1190 = vpop.permute.xlu0 %1189
          %1192 = vset.pattern.permute.xlu0 3
          %1193 = vperm.xlu0 %1192, %v1109
          %v1194 = vpop.permute.xlu0 %1193
          %1196 = vset.pattern.permute.xlu0 3
          %1197 = vperm.xlu0 %1196, %v1112
          %v1198 = vpop.permute.xlu0 %1197
          %1200 = vset.pattern.permute.xlu0 3
          %1201 = vperm.xlu0 %1200, %v1114
          %v1202 = vpop.permute.xlu0 %1201
          %v1204 = vmul.f32 %v1190, %v731
          %v1205 = vmul.f32 %v1194, %v731
          %v1206 = vmul.f32 %v1198, %v731
          %v1207 = vmul.f32 %v1202, %v731
          %v1208 = vadd.f32 %v1184, %v1204
          %v1209 = vadd.f32 %v1185, %v1205
          %v1210 = vadd.f32 %v1186, %v1206
          %v1211 = vadd.f32 %v1187, %v1207
          %1212 = vset.pattern.permute.xlu0 4
          %1213 = vperm.xlu0 %1212, %v1107
          %v1214 = vpop.permute.xlu0 %1213
          %1216 = vset.pattern.permute.xlu0 4
          %1217 = vperm.xlu0 %1216, %v1109
          %v1218 = vpop.permute.xlu0 %1217
          %1220 = vset.pattern.permute.xlu0 4
          %1221 = vperm.xlu0 %1220, %v1112
          %v1222 = vpop.permute.xlu0 %1221
          %1224 = vset.pattern.permute.xlu0 4
          %1225 = vperm.xlu0 %1224, %v1114
          %v1226 = vpop.permute.xlu0 %1225
          %v1228 = vmul.f32 %v1214, %v732
          %v1229 = vmul.f32 %v1218, %v732
          %v1230 = vmul.f32 %v1222, %v732
          %v1231 = vmul.f32 %v1226, %v732
          %v1232 = vadd.f32 %v1208, %v1228
          %v1233 = vadd.f32 %v1209, %v1229
          %v1234 = vadd.f32 %v1210, %v1230
          %v1235 = vadd.f32 %v1211, %v1231
          %1236 = vset.pattern.permute.xlu0 5
          %1237 = vperm.xlu0 %1236, %v1107
          %v1238 = vpop.permute.xlu0 %1237
          %1240 = vset.pattern.permute.xlu0 5
          %1241 = vperm.xlu0 %1240, %v1109
          %v1242 = vpop.permute.xlu0 %1241
          %1244 = vset.pattern.permute.xlu0 5
          %1245 = vperm.xlu0 %1244, %v1112
          %v1246 = vpop.permute.xlu0 %1245
          %1248 = vset.pattern.permute.xlu0 5
          %1249 = vperm.xlu0 %1248, %v1114
          %v1250 = vpop.permute.xlu0 %1249
          %v1252 = vmul.f32 %v1238, %v733
          %v1253 = vmul.f32 %v1242, %v733
          %v1254 = vmul.f32 %v1246, %v733
          %v1255 = vmul.f32 %v1250, %v733
          %v1256 = vadd.f32 %v1232, %v1252
          %v1257 = vadd.f32 %v1233, %v1253
          %v1258 = vadd.f32 %v1234, %v1254
          %v1259 = vadd.f32 %v1235, %v1255
          %1260 = vset.pattern.permute.xlu0 6
          %1261 = vperm.xlu0 %1260, %v1107
          %v1262 = vpop.permute.xlu0 %1261
          %1264 = vset.pattern.permute.xlu0 6
          %1265 = vperm.xlu0 %1264, %v1109
          %v1266 = vpop.permute.xlu0 %1265
          %1268 = vset.pattern.permute.xlu0 6
          %1269 = vperm.xlu0 %1268, %v1112
          %v1270 = vpop.permute.xlu0 %1269
          %1272 = vset.pattern.permute.xlu0 6
          %1273 = vperm.xlu0 %1272, %v1114
          %v1274 = vpop.permute.xlu0 %1273
          %v1276 = vmul.f32 %v1262, %v734
          %v1277 = vmul.f32 %v1266, %v734
          %v1278 = vmul.f32 %v1270, %v734
          %v1279 = vmul.f32 %v1274, %v734
          %v1280 = vadd.f32 %v1256, %v1276
          %v1281 = vadd.f32 %v1257, %v1277
          %v1282 = vadd.f32 %v1258, %v1278
          %v1283 = vadd.f32 %v1259, %v1279
          %1284 = vset.pattern.permute.xlu0 7
          %1285 = vperm.xlu0 %1284, %v1107
          %v1286 = vpop.permute.xlu0 %1285
          %1288 = vset.pattern.permute.xlu0 7
          %1289 = vperm.xlu0 %1288, %v1109
          %v1290 = vpop.permute.xlu0 %1289
          %1292 = vset.pattern.permute.xlu0 7
          %1293 = vperm.xlu0 %1292, %v1112
          %v1294 = vpop.permute.xlu0 %1293
          %1296 = vset.pattern.permute.xlu0 7
          %1297 = vperm.xlu0 %1296, %v1114
          %v1298 = vpop.permute.xlu0 %1297
          %v1300 = vmul.f32 %v1286, %v735
          %v1301 = vmul.f32 %v1290, %v735
          %v1302 = vmul.f32 %v1294, %v735
          %v1303 = vmul.f32 %v1298, %v735
          %v1304 = vadd.f32 %v1280, %v1300
          %v1305 = vadd.f32 %v1281, %v1301
          %v1306 = vadd.f32 %v1282, %v1302
          %v1307 = vadd.f32 %v1283, %v1303
          %v1309 = vsel %vm893, %v1052, 0
          %v1312 = vsel %vm893, %v1037, 0
          %1314 = vmatpush.bf16.xpose.msra.mxu0 0
          %1315 = vmatpush.bf16.xpose.msra.mxu0 0
          %1316 = vmatpush.bf16.xpose.msra.mxu0 0
          %1317 = vmatpush.bf16.xpose.msra.mxu0 0
          %1318 = vmatpush.bf16.xpose.msra.mxu0 0
          %1319 = vmatpush.bf16.xpose.msra.mxu0 0
          %1320 = vmatpush.bf16.xpose.msra.mxu0 0
          %1321 = vmatpush.bf16.xpose.msra.mxu0 %v1312
          %1322 = vmatmul.bf16.gmra.mxu0 %v1309
          %v1323 = vpop.f32.mrf.mxu0
          %v1324 = vadd.f32 %v1304, %v1323
          %v1325 = vpop.f32.mrf.mxu0
          %1326 = vdwg.mxu0
          %v1328 = vsel %vm893, %v1053, 0
          %v1331 = vsel %vm893, %v1038, 0
          %1333 = vmatpush.bf16.xpose.msra.mxu0 0
          %1334 = vmatpush.bf16.xpose.msra.mxu0 0
          %1335 = vmatpush.bf16.xpose.msra.mxu0 0
          %1336 = vmatpush.bf16.xpose.msra.mxu0 0
          %1337 = vmatpush.bf16.xpose.msra.mxu0 0
          %1338 = vmatpush.bf16.xpose.msra.mxu0 0
          %1339 = vmatpush.bf16.xpose.msra.mxu0 0
          %1340 = vmatpush.bf16.xpose.msra.mxu0 %v1331
          %1341 = vmatmul.bf16.gmra.mxu0 %v1328
          %v1342 = vpop.f32.mrf.mxu0
          %v1343 = vadd.f32 %v1305, %v1342
          %v1344 = vpop.f32.mrf.mxu0
          %1345 = vdwg.mxu0
          %v1347 = vsel %vm893, %v1054, 0
          %v1350 = vsel %vm893, %v1039, 0
          %1352 = vmatpush.bf16.xpose.msra.mxu0 0
          %1353 = vmatpush.bf16.xpose.msra.mxu0 0
          %1354 = vmatpush.bf16.xpose.msra.mxu0 0
          %1355 = vmatpush.bf16.xpose.msra.mxu0 0
          %1356 = vmatpush.bf16.xpose.msra.mxu0 0
          %1357 = vmatpush.bf16.xpose.msra.mxu0 0
          %1358 = vmatpush.bf16.xpose.msra.mxu0 0
          %1359 = vmatpush.bf16.xpose.msra.mxu0 %v1350
          %1360 = vmatmul.bf16.gmra.mxu0 %v1347
          %v1361 = vpop.f32.mrf.mxu0
          %v1362 = vadd.f32 %v1306, %v1361
          %v1363 = vpop.f32.mrf.mxu0
          %1364 = vdwg.mxu0
          %v1366 = vsel %vm893, %v1055, 0
          %v1369 = vsel %vm893, %v1040, 0
          %1371 = vmatpush.bf16.xpose.msra.mxu0 0
          %1372 = vmatpush.bf16.xpose.msra.mxu0 0
          %1373 = vmatpush.bf16.xpose.msra.mxu0 0
          %1374 = vmatpush.bf16.xpose.msra.mxu0 0
          %1375 = vmatpush.bf16.xpose.msra.mxu0 0
          %1376 = vmatpush.bf16.xpose.msra.mxu0 0
          %1377 = vmatpush.bf16.xpose.msra.mxu0 0
          %1378 = vmatpush.bf16.xpose.msra.mxu0 %v1369
          %1379 = vmatmul.bf16.gmra.mxu0 %v1366
          %v1380 = vpop.f32.mrf.mxu0
          %v1381 = vadd.f32 %v1307, %v1380
          %v1382 = vpop.f32.mrf.mxu0
          %1383 = vdwg.mxu0
          %v1384 = vadd.f32 %v1324, %v727
          %v1385 = vadd.f32 %v1343, %v727
          %v1386 = vadd.f32 %v1362, %v727
          %v1387 = vadd.f32 %v1381, %v727
          %vm1388 = vcmask 64512
          %v1389 = vsel %vm1388, %v1384, -inf
          %1390 = vmax.xlane.f32.xlu0 %v1389
          %v1391 = vpop.xlane.xlu0 %1390
          %v1392 = vsel %vm1388, %v1385, -inf
          %1393 = vmax.xlane.f32.xlu0 %v1392
          %v1394 = vpop.xlane.xlu0 %1393
          %v1395 = vsel %vm1388, %v1386, -inf
          %1396 = vmax.xlane.f32.xlu0 %v1395
          %v1397 = vpop.xlane.xlu0 %1396
          %v1398 = vsel %vm1388, %v1387, -inf
          %1399 = vmax.xlane.f32.xlu0 %v1398
          %v1400 = vpop.xlane.xlu0 %1399
          %v1401 = vsub.f32 %v1384, %v1391
          %v1402 = vsub.f32 %v1385, %v1394
          %v1403 = vsub.f32 %v1386, %v1397
          %v1404 = vsub.f32 %v1387, %v1400
          %v1405 = vmul.f32 %v1401, 1.442695
          %v1406 = vpow.pop %v1405
          %v1407 = vmul.f32 %v1402, 1.442695
          %v1408 = vpow.pop %v1407
          %v1409 = vmul.f32 %v1403, 1.442695
          %v1410 = vpow.pop %v1409
          %v1411 = vmul.f32 %v1404, 1.442695
          %v1412 = vpow.pop %v1411
          %v1413 = vsel %vm1388, %v1406, 0.0
          %1414 = vadd.xlane.f32.xlu0 %v1413
          %v1415 = vpop.xlane.xlu0 %1414
          %v1416 = vsel %vm1388, %v1408, 0.0
          %1417 = vadd.xlane.f32.xlu0 %v1416
          %v1418 = vpop.xlane.xlu0 %1417
          %v1419 = vsel %vm1388, %v1410, 0.0
          %1420 = vadd.xlane.f32.xlu0 %v1419
          %v1421 = vpop.xlane.xlu0 %1420
          %v1422 = vsel %vm1388, %v1412, 0.0
          %1423 = vadd.xlane.f32.xlu0 %v1422
          %v1424 = vpop.xlane.xlu0 %1423
          %v1425 = vrcp.pop %v1415
          %v1426 = vrcp.pop %v1418
          %v1427 = vrcp.pop %v1421
          %v1428 = vrcp.pop %v1424
          %v1429 = vmul.f32 %v1406, %v1425
          %v1430 = vmul.f32 %v1408, %v1426
          %v1431 = vmul.f32 %v1410, %v1427
          %v1432 = vmul.f32 %v1412, %v1428
          %v1433 = vpack.c.bf16 %v1429, %v1429
          %v1434 = vpack.c.bf16 %v1430, %v1430
          %v1435 = vpack.c.bf16 %v1431, %v1431
          %v1436 = vpack.c.bf16 %v1432, %v1432
          %v1438 = vsel %vm1388, %v1433, 0
          %vm1440 = vcmask 1043456
          %v1442 = vsel %vm1440, %v1041, 0
          %1444 = vmatpush.bf16.msra.mxu0 0
          %1445 = vmatpush.bf16.msra.mxu0 0
          %1446 = vmatpush.bf16.msra.mxu0 0
          %1447 = vmatpush.bf16.msra.mxu0 0
          %1448 = vmatpush.bf16.msra.mxu0 0
          %1449 = vmatpush.bf16.msra.mxu0 0
          %1450 = vmatpush.bf16.msra.mxu0 0
          %1451 = vmatpush.bf16.msra.mxu0 %v1442
          %1452 = vmatmul.bf16.gmra.mxu0 %v1438
          %v1453 = vpop.f32.mrf.mxu0
          %v1454 = vadd.f32 0.0, %v1453
          %v1455 = vpop.f32.mrf.mxu0
          %1456 = vdwg.mxu0
          %v1458 = vsel %vm1388, %v1434, 0
          %v1461 = vsel %vm1440, %v1042, 0
          %1463 = vmatpush.bf16.msra.mxu0 0
          %1464 = vmatpush.bf16.msra.mxu0 0
          %1465 = vmatpush.bf16.msra.mxu0 0
          %1466 = vmatpush.bf16.msra.mxu0 0
          %1467 = vmatpush.bf16.msra.mxu0 0
          %1468 = vmatpush.bf16.msra.mxu0 0
          %1469 = vmatpush.bf16.msra.mxu0 0
          %1470 = vmatpush.bf16.msra.mxu0 %v1461
          %1471 = vmatmul.bf16.gmra.mxu0 %v1458
          %v1472 = vpop.f32.mrf.mxu0
          %v1473 = vadd.f32 0.0, %v1472
          %v1474 = vpop.f32.mrf.mxu0
          %1475 = vdwg.mxu0
          %v1477 = vsel %vm1388, %v1435, 0
          %v1480 = vsel %vm1440, %v1043, 0
          %1482 = vmatpush.bf16.msra.mxu0 0
          %1483 = vmatpush.bf16.msra.mxu0 0
          %1484 = vmatpush.bf16.msra.mxu0 0
          %1485 = vmatpush.bf16.msra.mxu0 0
          %1486 = vmatpush.bf16.msra.mxu0 0
          %1487 = vmatpush.bf16.msra.mxu0 0
          %1488 = vmatpush.bf16.msra.mxu0 0
          %1489 = vmatpush.bf16.msra.mxu0 %v1480
          %1490 = vmatmul.bf16.gmra.mxu0 %v1477
          %v1491 = vpop.f32.mrf.mxu0
          %v1492 = vadd.f32 0.0, %v1491
          %v1493 = vpop.f32.mrf.mxu0
          %1494 = vdwg.mxu0
          %v1496 = vsel %vm1388, %v1436, 0
          %v1499 = vsel %vm1440, %v1044, 0
          %1501 = vmatpush.bf16.msra.mxu0 0
          %1502 = vmatpush.bf16.msra.mxu0 0
          %1503 = vmatpush.bf16.msra.mxu0 0
          %1504 = vmatpush.bf16.msra.mxu0 0
          %1505 = vmatpush.bf16.msra.mxu0 0
          %1506 = vmatpush.bf16.msra.mxu0 0
          %1507 = vmatpush.bf16.msra.mxu0 0
          %1508 = vmatpush.bf16.msra.mxu0 %v1499
          %1509 = vmatmul.bf16.gmra.mxu0 %v1496
          %v1510 = vpop.f32.mrf.mxu0
          %v1511 = vadd.f32 0.0, %v1510
          %v1512 = vpop.f32.mrf.mxu0
          %1513 = vdwg.mxu0
          %v1514 = vmul.f32 %v1454, %v1046
          %v1515 = vmul.f32 %v1473, %v1046
          %v1516 = vmul.f32 %v1492, %v1046
          %v1517 = vmul.f32 %v1511, %v1046
          %v1518 = vadd.f32 %v1514, 0.0
          %v1519 = vadd.f32 %v1515, 0.0
          %v1520 = vadd.f32 %v1516, 0.0
          %v1521 = vadd.f32 %v1517, 0.0
          %v1523 = vperm.slane %v737, 0
          %v1525 = vmul.f32 %v910, %v1523
          %v1526 = vmul.f32 %v912, %v1523
          %v1527 = vmul.f32 %v915, %v1523
          %v1528 = vmul.f32 %v917, %v1523
          %v1529 = vpack.c.bf16 %v1525, %v1525
          %v1530 = vpack.c.bf16 %v1526, %v1526
          %v1531 = vpack.c.bf16 %v1527, %v1527
          %v1532 = vpack.c.bf16 %v1528, %v1528
          %s1533 = sadd.s32 8, %s1056
          %s1534 = smul.addr %s1533, 4
          %s1535 = scalar_lea.vmem %s9, %s1534
          %v1536 = vld [vmem:[%s1535] sm:$0xf]
          %v1537 = vld [vmem:[%s1535 + $0x4] sm:$0xf]
          %v1538 = vld [vmem:[%s1535 + $0x8] sm:$0xf]
          %v1539 = vld [vmem:[%s1535 + $0xc] sm:$0xf]
          %v1540 = vld [vmem:[%s1535 + $0x10] sm:$0xf]
          %v1541 = vld [vmem:[%s1535 + $0x14] sm:$0xf]
          %v1542 = vld [vmem:[%s1535 + $0x18] sm:$0xf]
          %v1543 = vld [vmem:[%s1535 + $0x1c] sm:$0xf]
          %v1552 = vunpack.c.l.b16 %v1536
          %v1553 = vunpack.c.l.b16 %v1537
          %v1554 = vunpack.c.l.b16 %v1538
          %v1555 = vunpack.c.l.b16 %v1539
          %v1556 = vunpack.c.l.b16 %v1540
          %v1557 = vunpack.c.l.b16 %v1541
          %v1558 = vunpack.c.l.b16 %v1542
          %v1559 = vunpack.c.l.b16 %v1543
          %v1560 = vpack.c.b16 %v1553, %v1552
          %v1561 = vpack.c.b16 %v1555, %v1554
          %v1562 = vpack.c.b16 %v1557, %v1556
          %v1563 = vpack.c.b16 %v1559, %v1558
          %1568 = vmatpush.bf16.msra.mxu0 0
          %1569 = vmatpush.bf16.msra.mxu0 0
          %1570 = vmatpush.bf16.msra.mxu0 0
          %1571 = vmatpush.bf16.msra.mxu0 0
          %1572 = vmatpush.bf16.msra.mxu0 %v1563
          %1573 = vmatpush.bf16.msra.mxu0 %v1562
          %1574 = vmatpush.bf16.msra.mxu0 %v1561
          %1575 = vmatpush.bf16.msra.mxu0 %v1560
          %1576 = vmatmul.bf16.gmra.mxu0 %v1092
          %v1577 = vpop.f32.mrf.mxu0
          %v1578 = vadd.f32 0.0, %v1577
          %v1579 = vpop.f32.mrf.mxu0
          %v1580 = vadd.f32 0.0, %v1579
          %1581 = vmatmul.bf16.gmra.mxu0 %v1095
          %v1582 = vpop.f32.mrf.mxu0
          %v1583 = vadd.f32 0.0, %v1582
          %v1584 = vpop.f32.mrf.mxu0
          %v1585 = vadd.f32 0.0, %v1584
          %1586 = vdwg.mxu0
          %1588 = vset.pattern.permute.xlu0 0
          %1589 = vperm.xlu0 %1588, %v1578
          %v1590 = vpop.permute.xlu0 %1589
          %1593 = vset.pattern.permute.xlu0 0
          %1594 = vperm.xlu0 %1593, %v1580
          %v1595 = vpop.permute.xlu0 %1594
          %1598 = vset.pattern.permute.xlu0 0
          %1599 = vperm.xlu0 %1598, %v1583
          %v1600 = vpop.permute.xlu0 %1599
          %1603 = vset.pattern.permute.xlu0 0
          %1604 = vperm.xlu0 %1603, %v1585
          %v1605 = vpop.permute.xlu0 %1604
          %v1607 = vmul.f32 %v1590, %v728
          %v1608 = vmul.f32 %v1595, %v728
          %v1609 = vmul.f32 %v1600, %v728
          %v1610 = vmul.f32 %v1605, %v728
          %1611 = vset.pattern.permute.xlu0 1
          %1612 = vperm.xlu0 %1611, %v1578
          %v1613 = vpop.permute.xlu0 %1612
          %1615 = vset.pattern.permute.xlu0 1
          %1616 = vperm.xlu0 %1615, %v1580
          %v1617 = vpop.permute.xlu0 %1616
          %1619 = vset.pattern.permute.xlu0 1
          %1620 = vperm.xlu0 %1619, %v1583
          %v1621 = vpop.permute.xlu0 %1620
          %1623 = vset.pattern.permute.xlu0 1
          %1624 = vperm.xlu0 %1623, %v1585
          %v1625 = vpop.permute.xlu0 %1624
          %v1627 = vmul.f32 %v1613, %v729
          %v1628 = vmul.f32 %v1617, %v729
          %v1629 = vmul.f32 %v1621, %v729
          %v1630 = vmul.f32 %v1625, %v729
          %v1631 = vadd.f32 %v1607, %v1627
          %v1632 = vadd.f32 %v1608, %v1628
          %v1633 = vadd.f32 %v1609, %v1629
          %v1634 = vadd.f32 %v1610, %v1630
          %1635 = vset.pattern.permute.xlu0 2
          %1636 = vperm.xlu0 %1635, %v1578
          %v1637 = vpop.permute.xlu0 %1636
          %1639 = vset.pattern.permute.xlu0 2
          %1640 = vperm.xlu0 %1639, %v1580
          %v1641 = vpop.permute.xlu0 %1640
          %1643 = vset.pattern.permute.xlu0 2
          %1644 = vperm.xlu0 %1643, %v1583
          %v1645 = vpop.permute.xlu0 %1644
          %1647 = vset.pattern.permute.xlu0 2
          %1648 = vperm.xlu0 %1647, %v1585
          %v1649 = vpop.permute.xlu0 %1648
          %v1651 = vmul.f32 %v1637, %v730
          %v1652 = vmul.f32 %v1641, %v730
          %v1653 = vmul.f32 %v1645, %v730
          %v1654 = vmul.f32 %v1649, %v730
          %v1655 = vadd.f32 %v1631, %v1651
          %v1656 = vadd.f32 %v1632, %v1652
          %v1657 = vadd.f32 %v1633, %v1653
          %v1658 = vadd.f32 %v1634, %v1654
          %1659 = vset.pattern.permute.xlu0 3
          %1660 = vperm.xlu0 %1659, %v1578
          %v1661 = vpop.permute.xlu0 %1660
          %1663 = vset.pattern.permute.xlu0 3
          %1664 = vperm.xlu0 %1663, %v1580
          %v1665 = vpop.permute.xlu0 %1664
          %1667 = vset.pattern.permute.xlu0 3
          %1668 = vperm.xlu0 %1667, %v1583
          %v1669 = vpop.permute.xlu0 %1668
          %1671 = vset.pattern.permute.xlu0 3
          %1672 = vperm.xlu0 %1671, %v1585
          %v1673 = vpop.permute.xlu0 %1672
          %v1675 = vmul.f32 %v1661, %v731
          %v1676 = vmul.f32 %v1665, %v731
          %v1677 = vmul.f32 %v1669, %v731
          %v1678 = vmul.f32 %v1673, %v731
          %v1679 = vadd.f32 %v1655, %v1675
          %v1680 = vadd.f32 %v1656, %v1676
          %v1681 = vadd.f32 %v1657, %v1677
          %v1682 = vadd.f32 %v1658, %v1678
          %1683 = vset.pattern.permute.xlu0 4
          %1684 = vperm.xlu0 %1683, %v1578
          %v1685 = vpop.permute.xlu0 %1684
          %1687 = vset.pattern.permute.xlu0 4
          %1688 = vperm.xlu0 %1687, %v1580
          %v1689 = vpop.permute.xlu0 %1688
          %1691 = vset.pattern.permute.xlu0 4
          %1692 = vperm.xlu0 %1691, %v1583
          %v1693 = vpop.permute.xlu0 %1692
          %1695 = vset.pattern.permute.xlu0 4
          %1696 = vperm.xlu0 %1695, %v1585
          %v1697 = vpop.permute.xlu0 %1696
          %v1699 = vmul.f32 %v1685, %v732
          %v1700 = vmul.f32 %v1689, %v732
          %v1701 = vmul.f32 %v1693, %v732
          %v1702 = vmul.f32 %v1697, %v732
          %v1703 = vadd.f32 %v1679, %v1699
          %v1704 = vadd.f32 %v1680, %v1700
          %v1705 = vadd.f32 %v1681, %v1701
          %v1706 = vadd.f32 %v1682, %v1702
          %1707 = vset.pattern.permute.xlu0 5
          %1708 = vperm.xlu0 %1707, %v1578
          %v1709 = vpop.permute.xlu0 %1708
          %1711 = vset.pattern.permute.xlu0 5
          %1712 = vperm.xlu0 %1711, %v1580
          %v1713 = vpop.permute.xlu0 %1712
          %1715 = vset.pattern.permute.xlu0 5
          %1716 = vperm.xlu0 %1715, %v1583
          %v1717 = vpop.permute.xlu0 %1716
          %1719 = vset.pattern.permute.xlu0 5
          %1720 = vperm.xlu0 %1719, %v1585
          %v1721 = vpop.permute.xlu0 %1720
          %v1723 = vmul.f32 %v1709, %v733
          %v1724 = vmul.f32 %v1713, %v733
          %v1725 = vmul.f32 %v1717, %v733
          %v1726 = vmul.f32 %v1721, %v733
          %v1727 = vadd.f32 %v1703, %v1723
          %v1728 = vadd.f32 %v1704, %v1724
          %v1729 = vadd.f32 %v1705, %v1725
          %v1730 = vadd.f32 %v1706, %v1726
          %1731 = vset.pattern.permute.xlu0 6
          %1732 = vperm.xlu0 %1731, %v1578
          %v1733 = vpop.permute.xlu0 %1732
          %1735 = vset.pattern.permute.xlu0 6
          %1736 = vperm.xlu0 %1735, %v1580
          %v1737 = vpop.permute.xlu0 %1736
          %1739 = vset.pattern.permute.xlu0 6
          %1740 = vperm.xlu0 %1739, %v1583
          %v1741 = vpop.permute.xlu0 %1740
          %1743 = vset.pattern.permute.xlu0 6
          %1744 = vperm.xlu0 %1743, %v1585
          %v1745 = vpop.permute.xlu0 %1744
          %v1747 = vmul.f32 %v1733, %v734
          %v1748 = vmul.f32 %v1737, %v734
          %v1749 = vmul.f32 %v1741, %v734
          %v1750 = vmul.f32 %v1745, %v734
          %v1751 = vadd.f32 %v1727, %v1747
          %v1752 = vadd.f32 %v1728, %v1748
          %v1753 = vadd.f32 %v1729, %v1749
          %v1754 = vadd.f32 %v1730, %v1750
          %1755 = vset.pattern.permute.xlu0 7
          %1756 = vperm.xlu0 %1755, %v1578
          %v1757 = vpop.permute.xlu0 %1756
          %1759 = vset.pattern.permute.xlu0 7
          %1760 = vperm.xlu0 %1759, %v1580
          %v1761 = vpop.permute.xlu0 %1760
          %1763 = vset.pattern.permute.xlu0 7
          %1764 = vperm.xlu0 %1763, %v1583
          %v1765 = vpop.permute.xlu0 %1764
          %1767 = vset.pattern.permute.xlu0 7
          %1768 = vperm.xlu0 %1767, %v1585
          %v1769 = vpop.permute.xlu0 %1768
          %v1771 = vmul.f32 %v1757, %v735
          %v1772 = vmul.f32 %v1761, %v735
          %v1773 = vmul.f32 %v1765, %v735
          %v1774 = vmul.f32 %v1769, %v735
          %v1775 = vadd.f32 %v1751, %v1771
          %v1776 = vadd.f32 %v1752, %v1772
          %v1777 = vadd.f32 %v1753, %v1773
          %v1778 = vadd.f32 %v1754, %v1774
          %v1780 = vsel %vm893, %v1529, 0
          %1782 = vmatpush.bf16.xpose.msra.mxu0 0
          %1783 = vmatpush.bf16.xpose.msra.mxu0 0
          %1784 = vmatpush.bf16.xpose.msra.mxu0 0
          %1785 = vmatpush.bf16.xpose.msra.mxu0 0
          %1786 = vmatpush.bf16.xpose.msra.mxu0 0
          %1787 = vmatpush.bf16.xpose.msra.mxu0 0
          %1788 = vmatpush.bf16.xpose.msra.mxu0 0
          %1789 = vmatpush.bf16.xpose.msra.mxu0 %v1312
          %1790 = vmatmul.bf16.gmra.mxu0 %v1780
          %v1791 = vpop.f32.mrf.mxu0
          %v1792 = vadd.f32 %v1775, %v1791
          %v1793 = vpop.f32.mrf.mxu0
          %1794 = vdwg.mxu0
          %v1796 = vsel %vm893, %v1530, 0
          %1798 = vmatpush.bf16.xpose.msra.mxu0 0
          %1799 = vmatpush.bf16.xpose.msra.mxu0 0
          %1800 = vmatpush.bf16.xpose.msra.mxu0 0
          %1801 = vmatpush.bf16.xpose.msra.mxu0 0
          %1802 = vmatpush.bf16.xpose.msra.mxu0 0
          %1803 = vmatpush.bf16.xpose.msra.mxu0 0
          %1804 = vmatpush.bf16.xpose.msra.mxu0 0
          %1805 = vmatpush.bf16.xpose.msra.mxu0 %v1331
          %1806 = vmatmul.bf16.gmra.mxu0 %v1796
          %v1807 = vpop.f32.mrf.mxu0
          %v1808 = vadd.f32 %v1776, %v1807
          %v1809 = vpop.f32.mrf.mxu0
          %1810 = vdwg.mxu0
          %v1812 = vsel %vm893, %v1531, 0
          %1814 = vmatpush.bf16.xpose.msra.mxu0 0
          %1815 = vmatpush.bf16.xpose.msra.mxu0 0
          %1816 = vmatpush.bf16.xpose.msra.mxu0 0
          %1817 = vmatpush.bf16.xpose.msra.mxu0 0
          %1818 = vmatpush.bf16.xpose.msra.mxu0 0
          %1819 = vmatpush.bf16.xpose.msra.mxu0 0
          %1820 = vmatpush.bf16.xpose.msra.mxu0 0
          %1821 = vmatpush.bf16.xpose.msra.mxu0 %v1350
          %1822 = vmatmul.bf16.gmra.mxu0 %v1812
          %v1823 = vpop.f32.mrf.mxu0
          %v1824 = vadd.f32 %v1777, %v1823
          %v1825 = vpop.f32.mrf.mxu0
          %1826 = vdwg.mxu0
          %v1828 = vsel %vm893, %v1532, 0
          %1830 = vmatpush.bf16.xpose.msra.mxu0 0
          %1831 = vmatpush.bf16.xpose.msra.mxu0 0
          %1832 = vmatpush.bf16.xpose.msra.mxu0 0
          %1833 = vmatpush.bf16.xpose.msra.mxu0 0
          %1834 = vmatpush.bf16.xpose.msra.mxu0 0
          %1835 = vmatpush.bf16.xpose.msra.mxu0 0
          %1836 = vmatpush.bf16.xpose.msra.mxu0 0
          %1837 = vmatpush.bf16.xpose.msra.mxu0 %v1369
          %1838 = vmatmul.bf16.gmra.mxu0 %v1828
          %v1839 = vpop.f32.mrf.mxu0
          %v1840 = vadd.f32 %v1778, %v1839
          %v1841 = vpop.f32.mrf.mxu0
          %1842 = vdwg.mxu0
          %v1843 = vadd.f32 %v1792, %v727
          %v1844 = vadd.f32 %v1808, %v727
          %v1845 = vadd.f32 %v1824, %v727
          %v1846 = vadd.f32 %v1840, %v727
          %v1847 = vsel %vm1388, %v1843, -inf
          %1848 = vmax.xlane.f32.xlu0 %v1847
          %v1849 = vpop.xlane.xlu0 %1848
          %v1850 = vsel %vm1388, %v1844, -inf
          %1851 = vmax.xlane.f32.xlu0 %v1850
          %v1852 = vpop.xlane.xlu0 %1851
          %v1853 = vsel %vm1388, %v1845, -inf
          %1854 = vmax.xlane.f32.xlu0 %v1853
          %v1855 = vpop.xlane.xlu0 %1854
          %v1856 = vsel %vm1388, %v1846, -inf
          %1857 = vmax.xlane.f32.xlu0 %v1856
          %v1858 = vpop.xlane.xlu0 %1857
          %v1859 = vsub.f32 %v1843, %v1849
          %v1860 = vsub.f32 %v1844, %v1852
          %v1861 = vsub.f32 %v1845, %v1855
          %v1862 = vsub.f32 %v1846, %v1858
          %v1863 = vmul.f32 %v1859, 1.442695
          %v1864 = vpow.pop %v1863
          %v1865 = vmul.f32 %v1860, 1.442695
          %v1866 = vpow.pop %v1865
          %v1867 = vmul.f32 %v1861, 1.442695
          %v1868 = vpow.pop %v1867
          %v1869 = vmul.f32 %v1862, 1.442695
          %v1870 = vpow.pop %v1869
          %v1871 = vsel %vm1388, %v1864, 0.0
          %1872 = vadd.xlane.f32.xlu0 %v1871
          %v1873 = vpop.xlane.xlu0 %1872
          %v1874 = vsel %vm1388, %v1866, 0.0
          %1875 = vadd.xlane.f32.xlu0 %v1874
          %v1876 = vpop.xlane.xlu0 %1875
          %v1877 = vsel %vm1388, %v1868, 0.0
          %1878 = vadd.xlane.f32.xlu0 %v1877
          %v1879 = vpop.xlane.xlu0 %1878
          %v1880 = vsel %vm1388, %v1870, 0.0
          %1881 = vadd.xlane.f32.xlu0 %v1880
          %v1882 = vpop.xlane.xlu0 %1881
          %v1883 = vrcp.pop %v1873
          %v1884 = vrcp.pop %v1876
          %v1885 = vrcp.pop %v1879
          %v1886 = vrcp.pop %v1882
          %v1887 = vmul.f32 %v1864, %v1883
          %v1888 = vmul.f32 %v1866, %v1884
          %v1889 = vmul.f32 %v1868, %v1885
          %v1890 = vmul.f32 %v1870, %v1886
          %v1891 = vpack.c.bf16 %v1887, %v1887
          %v1892 = vpack.c.bf16 %v1888, %v1888
          %v1893 = vpack.c.bf16 %v1889, %v1889
          %v1894 = vpack.c.bf16 %v1890, %v1890
          %v1896 = vsel %vm1388, %v1891, 0
          %1898 = vmatpush.bf16.msra.mxu0 0
          %1899 = vmatpush.bf16.msra.mxu0 0
          %1900 = vmatpush.bf16.msra.mxu0 0
          %1901 = vmatpush.bf16.msra.mxu0 0
          %1902 = vmatpush.bf16.msra.mxu0 0
          %1903 = vmatpush.bf16.msra.mxu0 0
          %1904 = vmatpush.bf16.msra.mxu0 0
          %1905 = vmatpush.bf16.msra.mxu0 %v1442
          %1906 = vmatmul.bf16.gmra.mxu0 %v1896
          %v1907 = vpop.f32.mrf.mxu0
          %v1908 = vadd.f32 0.0, %v1907
          %v1909 = vpop.f32.mrf.mxu0
          %1910 = vdwg.mxu0
          %v1912 = vsel %vm1388, %v1892, 0
          %1914 = vmatpush.bf16.msra.mxu0 0
          %1915 = vmatpush.bf16.msra.mxu0 0
          %1916 = vmatpush.bf16.msra.mxu0 0
          %1917 = vmatpush.bf16.msra.mxu0 0
          %1918 = vmatpush.bf16.msra.mxu0 0
          %1919 = vmatpush.bf16.msra.mxu0 0
          %1920 = vmatpush.bf16.msra.mxu0 0
          %1921 = vmatpush.bf16.msra.mxu0 %v1461
          %1922 = vmatmul.bf16.gmra.mxu0 %v1912
          %v1923 = vpop.f32.mrf.mxu0
          %v1924 = vadd.f32 0.0, %v1923
          %v1925 = vpop.f32.mrf.mxu0
          %1926 = vdwg.mxu0
          %v1928 = vsel %vm1388, %v1893, 0
          %1930 = vmatpush.bf16.msra.mxu0 0
          %1931 = vmatpush.bf16.msra.mxu0 0
          %1932 = vmatpush.bf16.msra.mxu0 0
          %1933 = vmatpush.bf16.msra.mxu0 0
          %1934 = vmatpush.bf16.msra.mxu0 0
          %1935 = vmatpush.bf16.msra.mxu0 0
          %1936 = vmatpush.bf16.msra.mxu0 0
          %1937 = vmatpush.bf16.msra.mxu0 %v1480
          %1938 = vmatmul.bf16.gmra.mxu0 %v1928
          %v1939 = vpop.f32.mrf.mxu0
          %v1940 = vadd.f32 0.0, %v1939
          %v1941 = vpop.f32.mrf.mxu0
          %1942 = vdwg.mxu0
          %v1944 = vsel %vm1388, %v1894, 0
          %1946 = vmatpush.bf16.msra.mxu0 0
          %1947 = vmatpush.bf16.msra.mxu0 0
          %1948 = vmatpush.bf16.msra.mxu0 0
          %1949 = vmatpush.bf16.msra.mxu0 0
          %1950 = vmatpush.bf16.msra.mxu0 0
          %1951 = vmatpush.bf16.msra.mxu0 0
          %1952 = vmatpush.bf16.msra.mxu0 0
          %1953 = vmatpush.bf16.msra.mxu0 %v1499
          %1954 = vmatmul.bf16.gmra.mxu0 %v1944
          %v1955 = vpop.f32.mrf.mxu0
          %v1956 = vadd.f32 0.0, %v1955
          %v1957 = vpop.f32.mrf.mxu0
          %1958 = vdwg.mxu0
          %v1959 = vmul.f32 %v1908, %v1523
          %v1960 = vmul.f32 %v1924, %v1523
          %v1961 = vmul.f32 %v1940, %v1523
          %v1962 = vmul.f32 %v1956, %v1523
          %v1963 = vadd.f32 %v1518, %v1959
          %v1964 = vadd.f32 %v1519, %v1960
          %v1965 = vadd.f32 %v1520, %v1961
          %v1966 = vadd.f32 %v1521, %v1962
          %v1967 = vadd.f32 %v1963, %v847
          %v1968 = vadd.f32 %v1964, %v848
          %v1969 = vadd.f32 %v1965, %v849
          %v1970 = vadd.f32 %v1966, %v850
          %s1971 = scalar_lea.vmem %s10, %s842
          %v1972 = vld [vmem:[%s1971] sm:$0x1]
          %s1973 = scalar_lea.vmem %s11, %s842
          %v1974 = vld [vmem:[%s1973] sm:$0x1]
          %v1975 = vsel %vm893, %v1967, 0.0
          %1976 = vadd.xlane.f32.xlu0 %v1975
          %v1977 = vpop.xlane.xlu0 %1976
          %v1978 = vsel %vm893, %v1968, 0.0
          %1979 = vadd.xlane.f32.xlu0 %v1978
          %v1980 = vpop.xlane.xlu0 %1979
          %v1981 = vsel %vm893, %v1969, 0.0
          %1982 = vadd.xlane.f32.xlu0 %v1981
          %v1983 = vpop.xlane.xlu0 %1982
          %v1984 = vsel %vm893, %v1970, 0.0
          %1985 = vadd.xlane.f32.xlu0 %v1984
          %v1986 = vpop.xlane.xlu0 %1985
          %v1987 = vrcp.pop 64.0
          %v1988 = vmul.f32 64.0, %v1987
          %v1989 = vsub.f32 1.0, %v1988
          %v1990 = vmul.f32 %v1987, %v1989
          %v1991 = vadd.f32 %v1987, %v1990
          %vm1992 = vweird.f32 %v1987
          %v1993 = vsel %vm1992, %v1987, %v1991
          %v1994 = vmul.f32 %v1977, %v1993
          %v1995 = vmul.f32 %v1980, %v1993
          %v1996 = vmul.f32 %v1983, %v1993
          %v1997 = vmul.f32 %v1986, %v1993
          %v1998 = vsub.f32 %v1967, %v1994
          %v1999 = vsub.f32 %v1968, %v1995
          %v2000 = vsub.f32 %v1969, %v1996
          %v2001 = vsub.f32 %v1970, %v1997
          %v2002 = vmul.f32 %v1998, %v1998
          %v2003 = vmul.f32 %v1999, %v1999
          %v2004 = vmul.f32 %v2000, %v2000
          %v2005 = vmul.f32 %v2001, %v2001
          %v2006 = vsel %vm893, %v2002, 0.0
          %2007 = vadd.xlane.f32.xlu0 %v2006
          %v2008 = vpop.xlane.xlu0 %2007
          %v2009 = vsel %vm893, %v2003, 0.0
          %2010 = vadd.xlane.f32.xlu0 %v2009
          %v2011 = vpop.xlane.xlu0 %2010
          %v2012 = vsel %vm893, %v2004, 0.0
          %2013 = vadd.xlane.f32.xlu0 %v2012
          %v2014 = vpop.xlane.xlu0 %2013
          %v2015 = vsel %vm893, %v2005, 0.0
          %2016 = vadd.xlane.f32.xlu0 %v2015
          %v2017 = vpop.xlane.xlu0 %2016
          %v2018 = vmul.f32 %v2008, %v1993
          %v2019 = vmul.f32 %v2011, %v1993
          %v2020 = vmul.f32 %v2014, %v1993
          %v2021 = vmul.f32 %v2017, %v1993
          %v2022 = vadd.f32 %v2018, 1e-05
          %v2023 = vadd.f32 %v2019, 1e-05
          %v2024 = vadd.f32 %v2020, 1e-05
          %v2025 = vadd.f32 %v2021, 1e-05
          %v2026 = vrsqrt.pop %v2022
          %v2027 = vmul.f32 %v2026, %v2022
          %v2028 = vmul.f32 %v2027, %v2026
          %v2029 = vmul.f32 0.5, %v2028
          %v2030 = vsub.f32 1.5, %v2029
          %v2031 = vmul.f32 %v2026, %v2030
          %vm2032 = vweird.f32 %v2022
          %vm2033 = vweird.f32 %v2026
          %vm2034 = vmor %vm2032, %vm2033
          %v2035 = vsel %vm2034, %v2026, %v2031
          %v2036 = vrsqrt.pop %v2023
          %v2037 = vmul.f32 %v2036, %v2023
          %v2038 = vmul.f32 %v2037, %v2036
          %v2039 = vmul.f32 0.5, %v2038
          %v2040 = vsub.f32 1.5, %v2039
          %v2041 = vmul.f32 %v2036, %v2040
          %vm2042 = vweird.f32 %v2023
          %vm2043 = vweird.f32 %v2036
          %vm2044 = vmor %vm2042, %vm2043
          %v2045 = vsel %vm2044, %v2036, %v2041
          %v2046 = vrsqrt.pop %v2024
          %v2047 = vmul.f32 %v2046, %v2024
          %v2048 = vmul.f32 %v2047, %v2046
          %v2049 = vmul.f32 0.5, %v2048
          %v2050 = vsub.f32 1.5, %v2049
          %v2051 = vmul.f32 %v2046, %v2050
          %vm2052 = vweird.f32 %v2024
          %vm2053 = vweird.f32 %v2046
          %vm2054 = vmor %vm2052, %vm2053
          %v2055 = vsel %vm2054, %v2046, %v2051
          %v2056 = vrsqrt.pop %v2025
          %v2057 = vmul.f32 %v2056, %v2025
          %v2058 = vmul.f32 %v2057, %v2056
          %v2059 = vmul.f32 0.5, %v2058
          %v2060 = vsub.f32 1.5, %v2059
          %v2061 = vmul.f32 %v2056, %v2060
          %vm2062 = vweird.f32 %v2025
          %vm2063 = vweird.f32 %v2056
          %vm2064 = vmor %vm2062, %vm2063
          %v2065 = vsel %vm2064, %v2056, %v2061
          %v2066 = vmul.f32 %v1998, %v2035
          %v2067 = vmul.f32 %v1999, %v2045
          %v2068 = vmul.f32 %v2000, %v2055
          %v2069 = vmul.f32 %v2001, %v2065
          %v2071 = vperm.slane %v1972, 0
          %v2073 = vmul.f32 %v2066, %v2071
          %v2074 = vmul.f32 %v2067, %v2071
          %v2075 = vmul.f32 %v2068, %v2071
          %v2076 = vmul.f32 %v2069, %v2071
          %v2078 = vperm.slane %v1974, 0
          %v2080 = vadd.f32 %v2073, %v2078
          %v2081 = vadd.f32 %v2074, %v2078
          %v2082 = vadd.f32 %v2075, %v2078
          %v2083 = vadd.f32 %v2076, %v2078
          %v2084 = vpack.c.bf16 %v2081, %v2080
          %v2085 = vpack.c.bf16 %v2083, %v2082
          %s2086 = smul.addr %s853, 4
          %s2087 = scalar_lea.vmem %s12, %s2086
          %v2088 = vld [vmem:[%s2087] sm:$0xf]
          %v2089 = vld [vmem:[%s2087 + $0x4] sm:$0xf]
          %v2090 = vld [vmem:[%s2087 + $0x8] sm:$0xf]
          %v2091 = vld [vmem:[%s2087 + $0xc] sm:$0xf]
          %v2092 = vld [vmem:[%s2087 + $0x10] sm:$0xf]
          %v2093 = vld [vmem:[%s2087 + $0x14] sm:$0xf]
          %v2094 = vld [vmem:[%s2087 + $0x18] sm:$0xf]
          %v2095 = vld [vmem:[%s2087 + $0x1c] sm:$0xf]
          %s2096 = scalar_lea.vmem %s13, %s842
          %v2097 = vld [vmem:[%s2096] sm:$0x1]
          %v2099 = vperm.slane %v2097, 0
          %v2109 = vunpack.c.l.b16 %v2088
          %v2110 = vunpack.c.l.b16 %v2089
          %v2111 = vunpack.c.l.b16 %v2090
          %v2112 = vunpack.c.l.b16 %v2091
          %v2113 = vunpack.c.l.b16 %v2092
          %v2114 = vunpack.c.l.b16 %v2093
          %v2115 = vunpack.c.l.b16 %v2094
          %v2116 = vunpack.c.l.b16 %v2095
          %v2117 = vpack.c.b16 %v2110, %v2109
          %v2118 = vpack.c.b16 %v2112, %v2111
          %v2119 = vpack.c.b16 %v2114, %v2113
          %v2120 = vpack.c.b16 %v2116, %v2115
          %v2126 = vsel %vm893, %v2084, 0
          %v2129 = vsel %vm893, %v2085, 0
          %2131 = vmatpush.bf16.msra.mxu0 0
          %2132 = vmatpush.bf16.msra.mxu0 0
          %2133 = vmatpush.bf16.msra.mxu0 0
          %2134 = vmatpush.bf16.msra.mxu0 0
          %2135 = vmatpush.bf16.msra.mxu0 %v2120
          %2136 = vmatpush.bf16.msra.mxu0 %v2119
          %2137 = vmatpush.bf16.msra.mxu0 %v2118
          %2138 = vmatpush.bf16.msra.mxu0 %v2117
          %2139 = vmatmul.bf16.gmra.mxu0 %v2126
          %v2140 = vpop.f32.mrf.mxu0
          %v2141 = vadd.f32 %v2099, %v2140
          %v2142 = vpop.f32.mrf.mxu0
          %v2143 = vadd.f32 %v2099, %v2142
          %2144 = vmatmul.bf16.gmra.mxu0 %v2129
          %v2145 = vpop.f32.mrf.mxu0
          %v2146 = vadd.f32 %v2099, %v2145
          %v2147 = vpop.f32.mrf.mxu0
          %v2148 = vadd.f32 %v2099, %v2147
          %2149 = vdwg.mxu0
          %v2150 = vmax.f32 %v2141, 0.0
          %v2151 = vmax.f32 %v2143, 0.0
          %v2152 = vmax.f32 %v2146, 0.0
          %v2153 = vmax.f32 %v2148, 0.0
          %v2154 = vpack.c.bf16 %v2151, %v2150
          %v2155 = vpack.c.bf16 %v2153, %v2152
          %s2156 = smul.u32 %s842, 4
          %s2157 = smul.addr %s2156, 4
          %s2158 = scalar_lea.vmem %s14, %s2157
          %v2159 = vld [vmem:[%s2158] sm:$0xf]
          %v2160 = vld [vmem:[%s2158 + $0x4] sm:$0xf]
          %v2161 = vld [vmem:[%s2158 + $0x8] sm:$0xf]
          %v2162 = vld [vmem:[%s2158 + $0xc] sm:$0xf]
          %s2163 = scalar_lea.vmem %s15, %s842
          %v2164 = vld [vmem:[%s2163] sm:$0x1]
          %v2166 = vperm.slane %v2164, 0
          %v2172 = vunpack.c.l.b16 %v2159
          %v2173 = vunpack.c.l.b16 %v2160
          %v2174 = vunpack.c.l.b16 %v2161
          %v2175 = vunpack.c.l.b16 %v2162
          %v2176 = vpack.c.b16 %v2173, %v2172
          %v2177 = vpack.c.b16 %v2175, %v2174
          %vm2180 = vcmask 261120
          %v2182 = vsel %vm2180, %v2154, 0
          %v2185 = vsel %vm2180, %v2155, 0
          %2187 = vmatpush.bf16.msra.mxu0 0
          %2188 = vmatpush.bf16.msra.mxu0 0
          %2189 = vmatpush.bf16.msra.mxu0 0
          %2190 = vmatpush.bf16.msra.mxu0 0
          %2191 = vmatpush.bf16.msra.mxu0 0
          %2192 = vmatpush.bf16.msra.mxu0 0
          %2193 = vmatpush.bf16.msra.mxu0 %v2177
          %2194 = vmatpush.bf16.msra.mxu0 %v2176
          %2195 = vmatmul.bf16.gmra.mxu0 %v2182
          %v2196 = vpop.f32.mrf.mxu0
          %v2197 = vadd.f32 %v2166, %v2196
          %v2198 = vpop.f32.mrf.mxu0
          %v2199 = vadd.f32 %v2166, %v2198
          %2200 = vmatmul.bf16.gmra.mxu0 %v2185
          %v2201 = vpop.f32.mrf.mxu0
          %v2202 = vadd.f32 %v2166, %v2201
          %v2203 = vpop.f32.mrf.mxu0
          %v2204 = vadd.f32 %v2166, %v2203
          %2205 = vdwg.mxu0
          %v2206 = vadd.f32 %v2197, %v2080
          %v2207 = vadd.f32 %v2199, %v2081
          %v2208 = vadd.f32 %v2202, %v2082
          %v2209 = vadd.f32 %v2204, %v2083
          %s2210 = scalar_lea.vmem %s16, %s842
          %v2211 = vld [vmem:[%s2210] sm:$0x1]
          %s2212 = scalar_lea.vmem %s17, %s842
          %v2213 = vld [vmem:[%s2212] sm:$0x1]
          %v2214 = vsel %vm893, %v2206, 0.0
          %2215 = vadd.xlane.f32.xlu0 %v2214
          %v2216 = vpop.xlane.xlu0 %2215
          %v2217 = vsel %vm893, %v2207, 0.0
          %2218 = vadd.xlane.f32.xlu0 %v2217
          %v2219 = vpop.xlane.xlu0 %2218
          %v2220 = vsel %vm893, %v2208, 0.0
          %2221 = vadd.xlane.f32.xlu0 %v2220
          %v2222 = vpop.xlane.xlu0 %2221
          %v2223 = vsel %vm893, %v2209, 0.0
          %2224 = vadd.xlane.f32.xlu0 %v2223
          %v2225 = vpop.xlane.xlu0 %2224
          %v2226 = vmul.f32 %v2216, %v1993
          %v2227 = vmul.f32 %v2219, %v1993
          %v2228 = vmul.f32 %v2222, %v1993
          %v2229 = vmul.f32 %v2225, %v1993
          %v2230 = vsub.f32 %v2206, %v2226
          %v2231 = vsub.f32 %v2207, %v2227
          %v2232 = vsub.f32 %v2208, %v2228
          %v2233 = vsub.f32 %v2209, %v2229
          %v2234 = vmul.f32 %v2230, %v2230
          %v2235 = vmul.f32 %v2231, %v2231
          %v2236 = vmul.f32 %v2232, %v2232
          %v2237 = vmul.f32 %v2233, %v2233
          %v2238 = vsel %vm893, %v2234, 0.0
          %2239 = vadd.xlane.f32.xlu0 %v2238
          %v2240 = vpop.xlane.xlu0 %2239
          %v2241 = vsel %vm893, %v2235, 0.0
          %2242 = vadd.xlane.f32.xlu0 %v2241
          %v2243 = vpop.xlane.xlu0 %2242
          %v2244 = vsel %vm893, %v2236, 0.0
          %2245 = vadd.xlane.f32.xlu0 %v2244
          %v2246 = vpop.xlane.xlu0 %2245
          %v2247 = vsel %vm893, %v2237, 0.0
          %2248 = vadd.xlane.f32.xlu0 %v2247
          %v2249 = vpop.xlane.xlu0 %2248
          %v2250 = vmul.f32 %v2240, %v1993
          %v2251 = vmul.f32 %v2243, %v1993
          %v2252 = vmul.f32 %v2246, %v1993
          %v2253 = vmul.f32 %v2249, %v1993
          %v2254 = vadd.f32 %v2250, 1e-05
          %v2255 = vadd.f32 %v2251, 1e-05
          %v2256 = vadd.f32 %v2252, 1e-05
          %v2257 = vadd.f32 %v2253, 1e-05
          %v2258 = vrsqrt.pop %v2254
          %v2259 = vmul.f32 %v2258, %v2254
          %v2260 = vmul.f32 %v2259, %v2258
          %v2261 = vmul.f32 0.5, %v2260
          %v2262 = vsub.f32 1.5, %v2261
          %v2263 = vmul.f32 %v2258, %v2262
          %vm2264 = vweird.f32 %v2254
          %vm2265 = vweird.f32 %v2258
          %vm2266 = vmor %vm2264, %vm2265
          %v2267 = vsel %vm2266, %v2258, %v2263
          %v2268 = vrsqrt.pop %v2255
          %v2269 = vmul.f32 %v2268, %v2255
          %v2270 = vmul.f32 %v2269, %v2268
          %v2271 = vmul.f32 0.5, %v2270
          %v2272 = vsub.f32 1.5, %v2271
          %v2273 = vmul.f32 %v2268, %v2272
          %vm2274 = vweird.f32 %v2255
          %vm2275 = vweird.f32 %v2268
          %vm2276 = vmor %vm2274, %vm2275
          %v2277 = vsel %vm2276, %v2268, %v2273
          %v2278 = vrsqrt.pop %v2256
          %v2279 = vmul.f32 %v2278, %v2256
          %v2280 = vmul.f32 %v2279, %v2278
          %v2281 = vmul.f32 0.5, %v2280
          %v2282 = vsub.f32 1.5, %v2281
          %v2283 = vmul.f32 %v2278, %v2282
          %vm2284 = vweird.f32 %v2256
          %vm2285 = vweird.f32 %v2278
          %vm2286 = vmor %vm2284, %vm2285
          %v2287 = vsel %vm2286, %v2278, %v2283
          %v2288 = vrsqrt.pop %v2257
          %v2289 = vmul.f32 %v2288, %v2257
          %v2290 = vmul.f32 %v2289, %v2288
          %v2291 = vmul.f32 0.5, %v2290
          %v2292 = vsub.f32 1.5, %v2291
          %v2293 = vmul.f32 %v2288, %v2292
          %vm2294 = vweird.f32 %v2257
          %vm2295 = vweird.f32 %v2288
          %vm2296 = vmor %vm2294, %vm2295
          %v2297 = vsel %vm2296, %v2288, %v2293
          %v2298 = vmul.f32 %v2230, %v2267
          %v2299 = vmul.f32 %v2231, %v2277
          %v2300 = vmul.f32 %v2232, %v2287
          %v2301 = vmul.f32 %v2233, %v2297
          %v2303 = vperm.slane %v2211, 0
          %v2305 = vmul.f32 %v2298, %v2303
          %v2306 = vmul.f32 %v2299, %v2303
          %v2307 = vmul.f32 %v2300, %v2303
          %v2308 = vmul.f32 %v2301, %v2303
          %v2310 = vperm.slane %v2213, 0
          %v2312 = vadd.f32 %v2305, %v2310
          %v2313 = vadd.f32 %v2306, %v2310
          %v2314 = vadd.f32 %v2307, %v2310
          %v2315 = vadd.f32 %v2308, %v2310
        $region121: #{transformer_forward.1} parent=111 // loop_footer
          %s846 = sadd.s32 1, %s842
        $region122: #{transformer_forward.1} parent=111 // loop_footer_branch
          %841 = sbr.rel target = $region118
        $region123: #{transformer_forward.1} parent=111 // loop_exit
          _
        %v2316 = vpack.c.bf16 %v848, %v847
        %v2317 = vpack.c.bf16 %v850, %v849
        %v2318 = vlaneseq
        %v2319 = vshrl.u32 %v2318, 7
        %v2320 = vlaneseq
        %v2321 = vand.u32 %v2320, 127
        %v2322 = vmul.u32 %v2319, 8
        %vm2323 = vcmp.eq.s32.totalorder %v2321, %v2322
        %v2324 = vsel %vm2323, 1, 0
        %v2325 = vcvt.s32.f32 %v2324
        %v2326 = vpack.c.bf16 %v2325, %v2325
        %vm2327 = vcmask 261120
        %v2329 = vsel %vm2327, %v2326, 0
        %2331 = vmatpush.bf16.msra.mxu0 0
        %2332 = vmatpush.bf16.msra.mxu0 0
        %2333 = vmatpush.bf16.msra.mxu0 0
        %2334 = vmatpush.bf16.msra.mxu0 0
        %2335 = vmatpush.bf16.msra.mxu0 0
        %2336 = vmatpush.bf16.msra.mxu0 0
        %2337 = vmatpush.bf16.msra.mxu0 %v2317
        %2338 = vmatpush.bf16.msra.mxu0 %v2316
        %2339 = vmatmul.bf16.gmra.mxu0 %v2329
        %v2340 = vpop.f32.mrf.mxu0
        %v2341 = vadd.f32 0.0, %v2340
        %v2342 = vpop.f32.mrf.mxu0
        %2343 = vdwg.mxu0
        %v2344 = vpack.c.bf16 %v2341, %v2341
        %v2345 = vld [vmem:[#allocation2] sm:$0xf]
        %v2346 = vld [vmem:[#allocation2 + $0x4] sm:$0xf]
        %v2347 = vld [vmem:[#allocation2 + $0x8] sm:$0xf]
        %v2348 = vld [vmem:[#allocation2 + $0xc] sm:$0xf]
        %v2349 = vld [vmem:[#allocation2 + $0x10] sm:$0xf]
        %v2350 = vld [vmem:[#allocation2 + $0x14] sm:$0xf]
        %v2351 = vld [vmem:[#allocation2 + $0x18] sm:$0xf]
        %v2352 = vld [vmem:[#allocation2 + $0x1c] sm:$0xf]
        %v2353 = vadd.s32 %v2322, 1
        %vm2354 = vcmp.eq.s32.totalorder %v2321, %v2353
        %v2355 = vsel %vm2354, 1, 0
        %v2356 = vcvt.s32.f32 %v2355
        %v2357 = vpack.c.bf16 %v2356, %v2356
        %v2359 = vsel %vm2327, %v2357, 0
        %2361 = vmatpush.bf16.msra.mxu0 0
        %2362 = vmatpush.bf16.msra.mxu0 0
        %2363 = vmatpush.bf16.msra.mxu0 0
        %2364 = vmatpush.bf16.msra.mxu0 0
        %2365 = vmatpush.bf16.msra.mxu0 0
        %2366 = vmatpush.bf16.msra.mxu0 0
        %2367 = vmatpush.bf16.msra.mxu0 %v2317
        %2368 = vmatpush.bf16.msra.mxu0 %v2316
        %2369 = vmatmul.bf16.gmra.mxu0 %v2359
        %v2370 = vpop.f32.mrf.mxu0
        %v2371 = vadd.f32 0.0, %v2370
        %v2372 = vpop.f32.mrf.mxu0
        %2373 = vdwg.mxu0
        %v2374 = vpack.c.bf16 %v2371, %v2371
        %s2375 = scalar_lea.vmem [#allocation2], 32
        %v2376 = vld [vmem:[%s2375] sm:$0xf]
        %v2377 = vld [vmem:[%s2375 + $0x4] sm:$0xf]
        %v2378 = vld [vmem:[%s2375 + $0x8] sm:$0xf]
        %v2379 = vld [vmem:[%s2375 + $0xc] sm:$0xf]
        %v2380 = vld [vmem:[%s2375 + $0x10] sm:$0xf]
        %v2381 = vld [vmem:[%s2375 + $0x14] sm:$0xf]
        %v2382 = vld [vmem:[%s2375 + $0x18] sm:$0xf]
        %v2383 = vld [vmem:[%s2375 + $0x1c] sm:$0xf]
        %v2392 = vunpack.c.l.b16 %v2376
        %v2393 = vunpack.c.l.b16 %v2377
        %v2394 = vunpack.c.l.b16 %v2378
        %v2395 = vunpack.c.l.b16 %v2379
        %v2396 = vunpack.c.l.b16 %v2380
        %v2397 = vunpack.c.l.b16 %v2381
        %v2398 = vunpack.c.l.b16 %v2382
        %v2399 = vunpack.c.l.b16 %v2383
        %v2400 = vpack.c.b16 %v2393, %v2392
        %v2401 = vpack.c.b16 %v2395, %v2394
        %v2402 = vpack.c.b16 %v2397, %v2396
        %v2403 = vpack.c.b16 %v2399, %v2398
        %vm2408 = vcmask 523264
        %v2410 = vsel %vm2408, %v2374, 0
        %2412 = vmatpush.bf16.msra.mxu0 0
        %2413 = vmatpush.bf16.msra.mxu0 0
        %2414 = vmatpush.bf16.msra.mxu0 0
        %2415 = vmatpush.bf16.msra.mxu0 0
        %2416 = vmatpush.bf16.msra.mxu0 %v2403
        %2417 = vmatpush.bf16.msra.mxu0 %v2402
        %2418 = vmatpush.bf16.msra.mxu0 %v2401
        %2419 = vmatpush.bf16.msra.mxu0 %v2400
        %2420 = vmatmul.bf16.gmra.mxu0 %v2410
        %v2421 = vpop.f32.mrf.mxu0
        %v2422 = vadd.f32 0.0, %v2421
        %v2423 = vpop.f32.mrf.mxu0
        %2424 = vdwg.mxu0
        %v2433 = vunpack.c.l.b16 %v2345
        %v2434 = vunpack.c.l.b16 %v2346
        %v2435 = vunpack.c.l.b16 %v2347
        %v2436 = vunpack.c.l.b16 %v2348
        %v2437 = vunpack.c.l.b16 %v2349
        %v2438 = vunpack.c.l.b16 %v2350
        %v2439 = vunpack.c.l.b16 %v2351
        %v2440 = vunpack.c.l.b16 %v2352
        %v2441 = vpack.c.b16 %v2434, %v2433
        %v2442 = vpack.c.b16 %v2436, %v2435
        %v2443 = vpack.c.b16 %v2438, %v2437
        %v2444 = vpack.c.b16 %v2440, %v2439
        %v2450 = vsel %vm2408, %v2344, 0
        %2452 = vmatpush.bf16.msra.mxu0 0
        %2453 = vmatpush.bf16.msra.mxu0 0
        %2454 = vmatpush.bf16.msra.mxu0 0
        %2455 = vmatpush.bf16.msra.mxu0 0
        %2456 = vmatpush.bf16.msra.mxu0 %v2444
        %2457 = vmatpush.bf16.msra.mxu0 %v2443
        %2458 = vmatpush.bf16.msra.mxu0 %v2442
        %2459 = vmatpush.bf16.msra.mxu0 %v2441
        %2460 = vmatmul.bf16.gmra.mxu0 %v2450
        %v2461 = vpop.f32.mrf.mxu0
        %v2462 = vadd.f32 %v2422, %v2461
        %v2463 = vpop.f32.mrf.mxu0
        %2464 = vdwg.mxu0
        %v2465 = vadd.s32 %v2322, 2
        %vm2466 = vcmp.eq.s32.totalorder %v2321, %v2465
        %v2467 = vsel %vm2466, 1, 0
        %v2468 = vcvt.s32.f32 %v2467
        %v2469 = vpack.c.bf16 %v2468, %v2468
        %v2471 = vsel %vm2327, %v2469, 0
        %2473 = vmatpush.bf16.msra.mxu0 0
        %2474 = vmatpush.bf16.msra.mxu0 0
        %2475 = vmatpush.bf16.msra.mxu0 0
        %2476 = vmatpush.bf16.msra.mxu0 0
        %2477 = vmatpush.bf16.msra.mxu0 0
        %2478 = vmatpush.bf16.msra.mxu0 0
        %2479 = vmatpush.bf16.msra.mxu0 %v2317
        %2480 = vmatpush.bf16.msra.mxu0 %v2316
        %2481 = vmatmul.bf16.gmra.mxu0 %v2471
        %v2482 = vpop.f32.mrf.mxu0
        %v2483 = vadd.f32 0.0, %v2482
        %v2484 = vpop.f32.mrf.mxu0
        %2485 = vdwg.mxu0
        %v2486 = vpack.c.bf16 %v2483, %v2483
        %s2487 = scalar_lea.vmem [#allocation2], 64
        %v2488 = vld [vmem:[%s2487] sm:$0xf]
        %v2489 = vld [vmem:[%s2487 + $0x4] sm:$0xf]
        %v2490 = vld [vmem:[%s2487 + $0x8] sm:$0xf]
        %v2491 = vld [vmem:[%s2487 + $0xc] sm:$0xf]
        %v2492 = vld [vmem:[%s2487 + $0x10] sm:$0xf]
        %v2493 = vld [vmem:[%s2487 + $0x14] sm:$0xf]
        %v2494 = vld [vmem:[%s2487 + $0x18] sm:$0xf]
        %v2495 = vld [vmem:[%s2487 + $0x1c] sm:$0xf]
        %v2504 = vunpack.c.l.b16 %v2488
        %v2505 = vunpack.c.l.b16 %v2489
        %v2506 = vunpack.c.l.b16 %v2490
        %v2507 = vunpack.c.l.b16 %v2491
        %v2508 = vunpack.c.l.b16 %v2492
        %v2509 = vunpack.c.l.b16 %v2493
        %v2510 = vunpack.c.l.b16 %v2494
        %v2511 = vunpack.c.l.b16 %v2495
        %v2512 = vpack.c.b16 %v2505, %v2504
        %v2513 = vpack.c.b16 %v2507, %v2506
        %v2514 = vpack.c.b16 %v2509, %v2508
        %v2515 = vpack.c.b16 %v2511, %v2510
        %v2521 = vsel %vm2408, %v2486, 0
        %2523 = vmatpush.bf16.msra.mxu0 0
        %2524 = vmatpush.bf16.msra.mxu0 0
        %2525 = vmatpush.bf16.msra.mxu0 0
        %2526 = vmatpush.bf16.msra.mxu0 0
        %2527 = vmatpush.bf16.msra.mxu0 %v2515
        %2528 = vmatpush.bf16.msra.mxu0 %v2514
        %2529 = vmatpush.bf16.msra.mxu0 %v2513
        %2530 = vmatpush.bf16.msra.mxu0 %v2512
        %2531 = vmatmul.bf16.gmra.mxu0 %v2521
        %v2532 = vpop.f32.mrf.mxu0
        %v2533 = vadd.f32 0.0, %v2532
        %v2534 = vpop.f32.mrf.mxu0
        %2535 = vdwg.mxu0
        %v2536 = vadd.f32 %v2462, %v2533
        %v2537 = vadd.s32 %v2322, 3
        %vm2538 = vcmp.eq.s32.totalorder %v2321, %v2537
        %v2539 = vsel %vm2538, 1, 0
        %v2540 = vcvt.s32.f32 %v2539
        %v2541 = vpack.c.bf16 %v2540, %v2540
        %v2543 = vsel %vm2327, %v2541, 0
        %2545 = vmatpush.bf16.msra.mxu0 0
        %2546 = vmatpush.bf16.msra.mxu0 0
        %2547 = vmatpush.bf16.msra.mxu0 0
        %2548 = vmatpush.bf16.msra.mxu0 0
        %2549 = vmatpush.bf16.msra.mxu0 0
        %2550 = vmatpush.bf16.msra.mxu0 0
        %2551 = vmatpush.bf16.msra.mxu0 %v2317
        %2552 = vmatpush.bf16.msra.mxu0 %v2316
        %2553 = vmatmul.bf16.gmra.mxu0 %v2543
        %v2554 = vpop.f32.mrf.mxu0
        %v2555 = vadd.f32 0.0, %v2554
        %v2556 = vpop.f32.mrf.mxu0
        %2557 = vdwg.mxu0
        %v2558 = vpack.c.bf16 %v2555, %v2555
        %s2559 = scalar_lea.vmem [#allocation2], 96
        %v2560 = vld [vmem:[%s2559] sm:$0xf]
        %v2561 = vld [vmem:[%s2559 + $0x4] sm:$0xf]
        %v2562 = vld [vmem:[%s2559 + $0x8] sm:$0xf]
        %v2563 = vld [vmem:[%s2559 + $0xc] sm:$0xf]
        %v2564 = vld [vmem:[%s2559 + $0x10] sm:$0xf]
        %v2565 = vld [vmem:[%s2559 + $0x14] sm:$0xf]
        %v2566 = vld [vmem:[%s2559 + $0x18] sm:$0xf]
        %v2567 = vld [vmem:[%s2559 + $0x1c] sm:$0xf]
        %v2576 = vunpack.c.l.b16 %v2560
        %v2577 = vunpack.c.l.b16 %v2561
        %v2578 = vunpack.c.l.b16 %v2562
        %v2579 = vunpack.c.l.b16 %v2563
        %v2580 = vunpack.c.l.b16 %v2564
        %v2581 = vunpack.c.l.b16 %v2565
        %v2582 = vunpack.c.l.b16 %v2566
        %v2583 = vunpack.c.l.b16 %v2567
        %v2584 = vpack.c.b16 %v2577, %v2576
        %v2585 = vpack.c.b16 %v2579, %v2578
        %v2586 = vpack.c.b16 %v2581, %v2580
        %v2587 = vpack.c.b16 %v2583, %v2582
        %v2593 = vsel %vm2408, %v2558, 0
        %2595 = vmatpush.bf16.msra.mxu0 0
        %2596 = vmatpush.bf16.msra.mxu0 0
        %2597 = vmatpush.bf16.msra.mxu0 0
        %2598 = vmatpush.bf16.msra.mxu0 0
        %2599 = vmatpush.bf16.msra.mxu0 %v2587
        %2600 = vmatpush.bf16.msra.mxu0 %v2586
        %2601 = vmatpush.bf16.msra.mxu0 %v2585
        %2602 = vmatpush.bf16.msra.mxu0 %v2584
        %2603 = vmatmul.bf16.gmra.mxu0 %v2593
        %v2604 = vpop.f32.mrf.mxu0
        %v2605 = vadd.f32 0.0, %v2604
        %v2606 = vpop.f32.mrf.mxu0
        %2607 = vdwg.mxu0
        %v2608 = vadd.f32 %v2536, %v2605
        %v2609 = vadd.s32 %v2322, 4
        %vm2610 = vcmp.eq.s32.totalorder %v2321, %v2609
        %v2611 = vsel %vm2610, 1, 0
        %v2612 = vcvt.s32.f32 %v2611
        %v2613 = vpack.c.bf16 %v2612, %v2612
        %v2615 = vsel %vm2327, %v2613, 0
        %2617 = vmatpush.bf16.msra.mxu0 0
        %2618 = vmatpush.bf16.msra.mxu0 0
        %2619 = vmatpush.bf16.msra.mxu0 0
        %2620 = vmatpush.bf16.msra.mxu0 0
        %2621 = vmatpush.bf16.msra.mxu0 0
        %2622 = vmatpush.bf16.msra.mxu0 0
        %2623 = vmatpush.bf16.msra.mxu0 %v2317
        %2624 = vmatpush.bf16.msra.mxu0 %v2316
        %2625 = vmatmul.bf16.gmra.mxu0 %v2615
        %v2626 = vpop.f32.mrf.mxu0
        %v2627 = vadd.f32 0.0, %v2626
        %v2628 = vpop.f32.mrf.mxu0
        %2629 = vdwg.mxu0
        %v2630 = vpack.c.bf16 %v2627, %v2627
        %s2631 = scalar_lea.vmem [#allocation2], 128
        %v2632 = vld [vmem:[%s2631] sm:$0xf]
        %v2633 = vld [vmem:[%s2631 + $0x4] sm:$0xf]
        %v2634 = vld [vmem:[%s2631 + $0x8] sm:$0xf]
        %v2635 = vld [vmem:[%s2631 + $0xc] sm:$0xf]
        %v2636 = vld [vmem:[%s2631 + $0x10] sm:$0xf]
        %v2637 = vld [vmem:[%s2631 + $0x14] sm:$0xf]
        %v2638 = vld [vmem:[%s2631 + $0x18] sm:$0xf]
        %v2639 = vld [vmem:[%s2631 + $0x1c] sm:$0xf]
        %v2648 = vunpack.c.l.b16 %v2632
        %v2649 = vunpack.c.l.b16 %v2633
        %v2650 = vunpack.c.l.b16 %v2634
        %v2651 = vunpack.c.l.b16 %v2635
        %v2652 = vunpack.c.l.b16 %v2636
        %v2653 = vunpack.c.l.b16 %v2637
        %v2654 = vunpack.c.l.b16 %v2638
        %v2655 = vunpack.c.l.b16 %v2639
        %v2656 = vpack.c.b16 %v2649, %v2648
        %v2657 = vpack.c.b16 %v2651, %v2650
        %v2658 = vpack.c.b16 %v2653, %v2652
        %v2659 = vpack.c.b16 %v2655, %v2654
        %v2665 = vsel %vm2408, %v2630, 0
        %2667 = vmatpush.bf16.msra.mxu0 0
        %2668 = vmatpush.bf16.msra.mxu0 0
        %2669 = vmatpush.bf16.msra.mxu0 0
        %2670 = vmatpush.bf16.msra.mxu0 0
        %2671 = vmatpush.bf16.msra.mxu0 %v2659
        %2672 = vmatpush.bf16.msra.mxu0 %v2658
        %2673 = vmatpush.bf16.msra.mxu0 %v2657
        %2674 = vmatpush.bf16.msra.mxu0 %v2656
        %2675 = vmatmul.bf16.gmra.mxu0 %v2665
        %v2676 = vpop.f32.mrf.mxu0
        %v2677 = vadd.f32 0.0, %v2676
        %v2678 = vpop.f32.mrf.mxu0
        %2679 = vdwg.mxu0
        %v2680 = vadd.f32 %v2608, %v2677
        %v2681 = vadd.s32 %v2322, 5
        %vm2682 = vcmp.eq.s32.totalorder %v2321, %v2681
        %v2683 = vsel %vm2682, 1, 0
        %v2684 = vcvt.s32.f32 %v2683
        %v2685 = vpack.c.bf16 %v2684, %v2684
        %v2687 = vsel %vm2327, %v2685, 0
        %2689 = vmatpush.bf16.msra.mxu0 0
        %2690 = vmatpush.bf16.msra.mxu0 0
        %2691 = vmatpush.bf16.msra.mxu0 0
        %2692 = vmatpush.bf16.msra.mxu0 0
        %2693 = vmatpush.bf16.msra.mxu0 0
        %2694 = vmatpush.bf16.msra.mxu0 0
        %2695 = vmatpush.bf16.msra.mxu0 %v2317
        %2696 = vmatpush.bf16.msra.mxu0 %v2316
        %2697 = vmatmul.bf16.gmra.mxu0 %v2687
        %v2698 = vpop.f32.mrf.mxu0
        %v2699 = vadd.f32 0.0, %v2698
        %v2700 = vpop.f32.mrf.mxu0
        %2701 = vdwg.mxu0
        %v2702 = vpack.c.bf16 %v2699, %v2699
        %s2703 = scalar_lea.vmem [#allocation2], 160
        %v2704 = vld [vmem:[%s2703] sm:$0xf]
        %v2705 = vld [vmem:[%s2703 + $0x4] sm:$0xf]
        %v2706 = vld [vmem:[%s2703 + $0x8] sm:$0xf]
        %v2707 = vld [vmem:[%s2703 + $0xc] sm:$0xf]
        %v2708 = vld [vmem:[%s2703 + $0x10] sm:$0xf]
        %v2709 = vld [vmem:[%s2703 + $0x14] sm:$0xf]
        %v2710 = vld [vmem:[%s2703 + $0x18] sm:$0xf]
        %v2711 = vld [vmem:[%s2703 + $0x1c] sm:$0xf]
        %v2720 = vunpack.c.l.b16 %v2704
        %v2721 = vunpack.c.l.b16 %v2705
        %v2722 = vunpack.c.l.b16 %v2706
        %v2723 = vunpack.c.l.b16 %v2707
        %v2724 = vunpack.c.l.b16 %v2708
        %v2725 = vunpack.c.l.b16 %v2709
        %v2726 = vunpack.c.l.b16 %v2710
        %v2727 = vunpack.c.l.b16 %v2711
        %v2728 = vpack.c.b16 %v2721, %v2720
        %v2729 = vpack.c.b16 %v2723, %v2722
        %v2730 = vpack.c.b16 %v2725, %v2724
        %v2731 = vpack.c.b16 %v2727, %v2726
        %v2737 = vsel %vm2408, %v2702, 0
        %2739 = vmatpush.bf16.msra.mxu0 0
        %2740 = vmatpush.bf16.msra.mxu0 0
        %2741 = vmatpush.bf16.msra.mxu0 0
        %2742 = vmatpush.bf16.msra.mxu0 0
        %2743 = vmatpush.bf16.msra.mxu0 %v2731
        %2744 = vmatpush.bf16.msra.mxu0 %v2730
        %2745 = vmatpush.bf16.msra.mxu0 %v2729
        %2746 = vmatpush.bf16.msra.mxu0 %v2728
        %2747 = vmatmul.bf16.gmra.mxu0 %v2737
        %v2748 = vpop.f32.mrf.mxu0
        %v2749 = vadd.f32 0.0, %v2748
        %v2750 = vpop.f32.mrf.mxu0
        %2751 = vdwg.mxu0
        %v2752 = vadd.f32 %v2680, %v2749
        %v2753 = vadd.s32 %v2322, 6
        %vm2754 = vcmp.eq.s32.totalorder %v2321, %v2753
        %v2755 = vsel %vm2754, 1, 0
        %v2756 = vcvt.s32.f32 %v2755
        %v2757 = vpack.c.bf16 %v2756, %v2756
        %v2759 = vsel %vm2327, %v2757, 0
        %2761 = vmatpush.bf16.msra.mxu0 0
        %2762 = vmatpush.bf16.msra.mxu0 0
        %2763 = vmatpush.bf16.msra.mxu0 0
        %2764 = vmatpush.bf16.msra.mxu0 0
        %2765 = vmatpush.bf16.msra.mxu0 0
        %2766 = vmatpush.bf16.msra.mxu0 0
        %2767 = vmatpush.bf16.msra.mxu0 %v2317
        %2768 = vmatpush.bf16.msra.mxu0 %v2316
        %2769 = vmatmul.bf16.gmra.mxu0 %v2759
        %v2770 = vpop.f32.mrf.mxu0
        %v2771 = vadd.f32 0.0, %v2770
        %v2772 = vpop.f32.mrf.mxu0
        %2773 = vdwg.mxu0
        %v2774 = vpack.c.bf16 %v2771, %v2771
        %s2775 = scalar_lea.vmem [#allocation2], 192
        %v2776 = vld [vmem:[%s2775] sm:$0xf]
        %v2777 = vld [vmem:[%s2775 + $0x4] sm:$0xf]
        %v2778 = vld [vmem:[%s2775 + $0x8] sm:$0xf]
        %v2779 = vld [vmem:[%s2775 + $0xc] sm:$0xf]
        %v2780 = vld [vmem:[%s2775 + $0x10] sm:$0xf]
        %v2781 = vld [vmem:[%s2775 + $0x14] sm:$0xf]
        %v2782 = vld [vmem:[%s2775 + $0x18] sm:$0xf]
        %v2783 = vld [vmem:[%s2775 + $0x1c] sm:$0xf]
        %v2792 = vunpack.c.l.b16 %v2776
        %v2793 = vunpack.c.l.b16 %v2777
        %v2794 = vunpack.c.l.b16 %v2778
        %v2795 = vunpack.c.l.b16 %v2779
        %v2796 = vunpack.c.l.b16 %v2780
        %v2797 = vunpack.c.l.b16 %v2781
        %v2798 = vunpack.c.l.b16 %v2782
        %v2799 = vunpack.c.l.b16 %v2783
        %v2800 = vpack.c.b16 %v2793, %v2792
        %v2801 = vpack.c.b16 %v2795, %v2794
        %v2802 = vpack.c.b16 %v2797, %v2796
        %v2803 = vpack.c.b16 %v2799, %v2798
        %v2809 = vsel %vm2408, %v2774, 0
        %2811 = vmatpush.bf16.msra.mxu0 0
        %2812 = vmatpush.bf16.msra.mxu0 0
        %2813 = vmatpush.bf16.msra.mxu0 0
        %2814 = vmatpush.bf16.msra.mxu0 0
        %2815 = vmatpush.bf16.msra.mxu0 %v2803
        %2816 = vmatpush.bf16.msra.mxu0 %v2802
        %2817 = vmatpush.bf16.msra.mxu0 %v2801
        %2818 = vmatpush.bf16.msra.mxu0 %v2800
        %2819 = vmatmul.bf16.gmra.mxu0 %v2809
        %v2820 = vpop.f32.mrf.mxu0
        %v2821 = vadd.f32 0.0, %v2820
        %v2822 = vpop.f32.mrf.mxu0
        %2823 = vdwg.mxu0
        %v2824 = vadd.f32 %v2752, %v2821
        %v2825 = vadd.s32 %v2322, 7
        %vm2826 = vcmp.eq.s32.totalorder %v2321, %v2825
        %v2827 = vsel %vm2826, 1, 0
        %v2828 = vcvt.s32.f32 %v2827
        %v2829 = vpack.c.bf16 %v2828, %v2828
        %v2831 = vsel %vm2327, %v2829, 0
        %2833 = vmatpush.bf16.msra.mxu0 0
        %2834 = vmatpush.bf16.msra.mxu0 0
        %2835 = vmatpush.bf16.msra.mxu0 0
        %2836 = vmatpush.bf16.msra.mxu0 0
        %2837 = vmatpush.bf16.msra.mxu0 0
        %2838 = vmatpush.bf16.msra.mxu0 0
        %2839 = vmatpush.bf16.msra.mxu0 %v2317
        %2840 = vmatpush.bf16.msra.mxu0 %v2316
        %2841 = vmatmul.bf16.gmra.mxu0 %v2831
        %v2842 = vpop.f32.mrf.mxu0
        %v2843 = vadd.f32 0.0, %v2842
        %v2844 = vpop.f32.mrf.mxu0
        %2845 = vdwg.mxu0
        %v2846 = vpack.c.bf16 %v2843, %v2843
        %s2847 = scalar_lea.vmem [#allocation2], 224
        %v2848 = vld [vmem:[%s2847] sm:$0xf]
        %v2849 = vld [vmem:[%s2847 + $0x4] sm:$0xf]
        %v2850 = vld [vmem:[%s2847 + $0x8] sm:$0xf]
        %v2851 = vld [vmem:[%s2847 + $0xc] sm:$0xf]
        %v2852 = vld [vmem:[%s2847 + $0x10] sm:$0xf]
        %v2853 = vld [vmem:[%s2847 + $0x14] sm:$0xf]
        %v2854 = vld [vmem:[%s2847 + $0x18] sm:$0xf]
        %v2855 = vld [vmem:[%s2847 + $0x1c] sm:$0xf]
        %v2864 = vunpack.c.l.b16 %v2848
        %v2865 = vunpack.c.l.b16 %v2849
        %v2866 = vunpack.c.l.b16 %v2850
        %v2867 = vunpack.c.l.b16 %v2851
        %v2868 = vunpack.c.l.b16 %v2852
        %v2869 = vunpack.c.l.b16 %v2853
        %v2870 = vunpack.c.l.b16 %v2854
        %v2871 = vunpack.c.l.b16 %v2855
        %v2872 = vpack.c.b16 %v2865, %v2864
        %v2873 = vpack.c.b16 %v2867, %v2866
        %v2874 = vpack.c.b16 %v2869, %v2868
        %v2875 = vpack.c.b16 %v2871, %v2870
        %v2881 = vsel %vm2408, %v2846, 0
        %2883 = vmatpush.bf16.msra.mxu0 0
        %2884 = vmatpush.bf16.msra.mxu0 0
        %2885 = vmatpush.bf16.msra.mxu0 0
        %2886 = vmatpush.bf16.msra.mxu0 0
        %2887 = vmatpush.bf16.msra.mxu0 %v2875
        %2888 = vmatpush.bf16.msra.mxu0 %v2874
        %2889 = vmatpush.bf16.msra.mxu0 %v2873
        %2890 = vmatpush.bf16.msra.mxu0 %v2872
        %2891 = vmatmul.bf16.gmra.mxu0 %v2881
        %v2892 = vpop.f32.mrf.mxu0
        %v2893 = vadd.f32 0.0, %v2892
        %v2894 = vpop.f32.mrf.mxu0
        %2895 = vdwg.mxu0
        %v2896 = vadd.f32 %v2824, %v2893
        %v2897 = vld [vmem:[%s19] sm:$0x1]
        %v2899 = vperm.slane %v2897, 0
        %v2901 = vadd.f32 %v2896, %v2899
        %2902 = vst [vmem:[%s725] sm:$0xf] %v2901
        %p2903 = scmp.lt.s32.totalorder %s35, 1
        %s2904 = scalar_select %p2903, %s35, 1
        %s2905 = smul.addr %s2904, 4
        %s2906 = scalar_lea.vmem %s23, %s2905
        // Predicated region
        $region124: #{transformer_forward.1} parent=111 // pred_check
          %p2907 = pneg %p541
        $region125: #{transformer_forward.1} parent=111 // pred_check_branch
          %2909 = sbr.rel (%p2907) target = $region127
        $region126: #{transformer_forward.1} parent=111 // pred_region
          _
        $region127: #{transformer_forward.1} parent=111 // pred_fallthru
          _
      $region112: #{transformer_forward.1} parent=5 // pred_fallthru
        _
      %p2910 = scmp.le.s32.totalorder 2, %s30
      // Predicated region
      $region128: #{transformer_forward.1} parent=5 // pred_check
        %p2911 = pneg %p2910
      $region129: #{transformer_forward.1} parent=5 // pred_check_branch
        %2913 = sbr.rel (%p2911) target = $region131
      $region130: #{transformer_forward.1} parent=5 // pred_region
        %s2914 = ssub.s32 %s30, 2
        // Predicated region
        $region132: #{transformer_forward.1} parent=130 // pred_check
          %p2915 = pneg %p547
        $region133: #{transformer_forward.1} parent=130 // pred_check_branch
          %2917 = sbr.rel (%p2915) target = $region135
        $region134: #{transformer_forward.1} parent=130 // pred_region
          %p2918 = scmp.lt.s32.totalorder %s36, 1
          %s2919 = scalar_select %p2918, %s36, 1
          %s2920 = smul.addr %s2919, 4
          %s2921 = scalar_lea.vmem %s23, %s2920
        $region135: #{transformer_forward.1} parent=130 // pred_fallthru
          _
      $region131: #{transformer_forward.1} parent=5 // pred_fallthru
        _
    $region6: #{transformer_forward.1} parent=1 // loop_footer
      %s34 = sadd.s32 1, %s30
    $region7: #{transformer_forward.1} parent=1 // loop_footer_branch
      %29 = sbr.rel target = $region3
    $region8: #{transformer_forward.1} parent=1 // loop_exit
      _
    %2922 = vsyncpa [#allocation3], 1
    %s2923 = scalar_lea.sflag [#allocation3], 1
    %2924 = vsyncpa %s2923, 1

</llo_original>
